<compile_context>
chip_gen: v6e
topology: v6e:2x2x1
jax: 0.10.0
libtpu: 0.0.40
codegen_flags: <defaults>
</compile_context>

<pallas_src>
import functools

import jax
import jax.numpy as jnp
import numpy as np
from jax import lax
from jax.experimental import pallas as pl
from jax.experimental.pallas import tpu as pltpu

NORM_EPS = 1e-5
HI = jax.lax.Precision.HIGHEST
_VMEM_LIMIT = 64 * 1024 * 1024


def _pick_tile(n, cap):
    """Largest 'nice' tile <= cap that divides n."""
    for t in (cap, 512, 256, 128, 64, 32, 16, 8):
        if t <= cap and n % t == 0:
            return t
    return n


def _pick_qkv_tile(hdh, dh, cap=512):
    """Output-dim tile for the fused QKV weight: divides H*Dh, multiple of Dh."""
    for t in (cap, 512, 256, 128):
        if t <= cap and hdh % t == 0 and t % dh == 0:
            return t
    return hdh


# ----------------------------- kernels -----------------------------

def _norm_qkv_rope_kernel(x_ref, nw_ref, w_ref, cos_ref, sin_ref,
                          qkv_ref, xn_sc, *, eps, head_dim, tn, hdh):
    """RMSNorm (cached at j==0) + streamed QKV projection + in-VMEM RoPE.

    grid = (M//tm, 3*H*Dh//tn); the weight is streamed over its output dim.
    wq/wk output channels are pre-permuted per head into half-split order
    ([evens | odds]) and 1/sqrt(Dh) is folded into wq, so RoPE is a contiguous
    rotate-half applied only to tiles in the q/k region.
    """
    j = pl.program_id(1)
    d2 = head_dim // 2

    @pl.when(j == 0)
    def _norm():
        x = x_ref[...].astype(jnp.float32)
        ms = jnp.mean(x * x, axis=-1, keepdims=True)
        xn_sc[...] = ((x * lax.rsqrt(ms + eps)) * nw_ref[...]).astype(jnp.bfloat16)

    y = jnp.dot(xn_sc[...], w_ref[...], preferred_element_type=jnp.float32)

    is_qk = j * tn < 2 * hdh          # tiles in the q/k region get RoPE

    @pl.when(is_qk)
    def _rope():
        c = cos_ref[...]              # (tm, d2) f32
        s = sin_ref[...]
        parts = []
        for h in range(tn // head_dim):
            ye = y[:, h * head_dim:h * head_dim + d2]
            yo = y[:, h * head_dim + d2:(h + 1) * head_dim]
            parts += [ye * c - yo * s, ye * s + yo * c]
        qkv_ref[...] = jnp.concatenate(parts, axis=-1).astype(qkv_ref.dtype)

    @pl.when(jnp.logical_not(is_qk))
    def _copy():
        qkv_ref[...] = y.astype(qkv_ref.dtype)


def _flash_attn_kernel(q_ref, k_ref, v_ref, o_ref, m_sc, l_sc, acc_sc,
                       *, hsub, dh, tq, tkv):
    """Flash-style causal attention on pre-rotated, pre-scaled bf16 q/k.

    grid = (B, H//hsub, S//tq, S//tkv); kv axis innermost ("arbitrary").
    K/V index maps are clamped to min(ki, qi) so fully-masked tiles are not
    fetched; compute for them is skipped below.
    """
    qi = pl.program_id(2)
    ki = pl.program_id(3)

    @pl.when(ki == 0)
    def _init():
        m_sc[...] = jnp.full(m_sc.shape, -1e30, dtype=jnp.float32)
        l_sc[...] = jnp.zeros(l_sc.shape, jnp.float32)
        acc_sc[...] = jnp.zeros(acc_sc.shape, jnp.float32)

    @pl.when(ki * tkv <= qi * tq + (tq - 1))
    def _compute():
        q_all = q_ref[0]                                    # (tq,  hsub*dh) bf16
        k_all = k_ref[0]                                    # (tkv, hsub*dh) bf16
        v_all = v_ref[0]                                    # (tkv, hsub*dh) bf16
        row = qi * tq + lax.broadcasted_iota(jnp.int32, (tq, tkv), 0)
        col = ki * tkv + lax.broadcasted_iota(jnp.int32, (tq, tkv), 1)
        bias = jnp.where(col <= row, 0.0, -1e30).astype(jnp.float32)

        for h in range(hsub):
            qh = q_all[:, h * dh:(h + 1) * dh]
            kh = k_all[:, h * dh:(h + 1) * dh]
            vh = v_all[:, h * dh:(h + 1) * dh]
            # q @ k^T without materializing a transpose.
            s = lax.dot_general(qh, kh, (((1,), (1,)), ((), ())),
                                preferred_element_type=jnp.float32) + bias
            m_prev = m_sc[h]                                # (tq, 1)
            m_new = jnp.maximum(m_prev, jnp.max(s, axis=-1, keepdims=True))
            alpha = jnp.exp(m_prev - m_new)
            p = jnp.exp(s - m_new)
            l_sc[h] = alpha * l_sc[h] + jnp.sum(p, axis=-1, keepdims=True)
            acc_sc[h] = alpha * acc_sc[h] + lax.dot_general(
                p.astype(jnp.bfloat16), vh, (((1,), (0,)), ((), ())),
                preferred_element_type=jnp.float32)
            m_sc[h] = m_new

    @pl.when(ki == pl.num_programs(3) - 1)
    def _finalize():
        # Exact divide: runs once per q-tile, cost negligible.
        outs = [acc_sc[h] / l_sc[h] for h in range(hsub)]
        o_ref[0] = jnp.concatenate(outs, axis=-1).astype(o_ref.dtype)


def _proj_ffn_kernel(att_ref, x_ref, wo_ref, nw_ref, w1_ref, w3_ref, w2_ref,
                     o_ref, h_sc, xn_sc, acc_sc, *, eps):
    """h = x + att@wo (built at j==0), then out = h + w2(silu(w1·n(h)) * w3·n(h)).

    Hidden dim tiled over grid axis j ("arbitrary"); h never touches HBM.
    """
    j = pl.program_id(1)

    @pl.when(j == 0)
    def _init():
        h = x_ref[...].astype(jnp.float32) + jnp.dot(
            att_ref[...], wo_ref[...], preferred_element_type=jnp.float32)
        h_sc[...] = h
        ms = jnp.mean(h * h, axis=-1, keepdims=True)
        xn_sc[...] = ((h * lax.rsqrt(ms + eps)) * nw_ref[...]).astype(jnp.bfloat16)
        acc_sc[...] = jnp.zeros(acc_sc.shape, jnp.float32)

    xn = xn_sc[...]
    a = jnp.dot(xn, w1_ref[...], preferred_element_type=jnp.float32)
    b = jnp.dot(xn, w3_ref[...], preferred_element_type=jnp.float32)
    g = (a * jax.nn.sigmoid(a)) * b                    # SwiGLU, f32 elementwise
    acc_sc[...] += jnp.dot(g.astype(jnp.bfloat16), w2_ref[...],
                           preferred_element_type=jnp.float32)

    @pl.when(j == pl.num_programs(1) - 1)
    def _fin():
        o_ref[...] = (h_sc[...] + acc_sc[...]).astype(o_ref.dtype)


# ----------------------------- wrappers -----------------------------

def norm_qkv_rope(x2, norm_w, wqkv_t, cos_m, sin_m, *, tm, n_heads, head_dim,
                  eps=NORM_EPS):
    M, D = x2.shape
    hdh = n_heads * head_dim
    d2 = head_dim // 2
    tn = _pick_qkv_tile(hdh, head_dim)
    return pl.pallas_call(
        functools.partial(_norm_qkv_rope_kernel, eps=eps, head_dim=head_dim,
                          tn=tn, hdh=hdh),
        out_shape=jax.ShapeDtypeStruct((M, 3 * hdh), jnp.bfloat16),
        grid=(M // tm, (3 * hdh) // tn),
        in_specs=[
            pl.BlockSpec((tm, D), lambda i, j: (i, 0)),
            pl.BlockSpec((1, D), lambda i, j: (0, 0)),
            pl.BlockSpec((D, tn), lambda i, j: (0, j)),
            pl.BlockSpec((tm, d2), lambda i, j: (i, 0)),
            pl.BlockSpec((tm, d2), lambda i, j: (i, 0)),
        ],
        out_specs=pl.BlockSpec((tm, tn), lambda i, j: (i, j)),
        scratch_shapes=[pltpu.VMEM((tm, D), jnp.bfloat16)],
        compiler_params=pltpu.CompilerParams(
            dimension_semantics=("parallel", "arbitrary"),
            vmem_limit_bytes=_VMEM_LIMIT),
    )(x2, norm_w, wqkv_t, cos_m, sin_m)


def flash_attention(qkv3, *, n_heads, head_dim):
    B, S, _ = qkv3.shape
    H, Dh = n_heads, head_dim
    HDh = H * Dh
    # Pack heads so the lane axis of each block is >= 128 wide.
    if Dh <= 128 and 128 % Dh == 0 and H % max(1, 128 // Dh) == 0:
        hsub = max(1, 128 // Dh)
    else:
        hsub = H   # TODO(synk): head_dim not dividing 128 -> unaligned lanes.
    G = H // hsub
    lane = hsub * Dh
    ts = _pick_tile(S, 256)
    nq = nkv = S // ts

    # q/k/v are sliced out of the fused (B, S, 3*H*Dh) buffer via index maps.
    # The kv block index is clamped to min(ki, qi): tiles above the causal
    # diagonal repeat the previous block index, so Pallas skips their DMA.
    q_spec = pl.BlockSpec((1, ts, lane), lambda b, g, qi, ki: (b, qi, g))
    k_spec = pl.BlockSpec(
        (1, ts, lane), lambda b, g, qi, ki: (b, jnp.minimum(ki, qi), G + g))
    v_spec = pl.BlockSpec(
        (1, ts, lane), lambda b, g, qi, ki: (b, jnp.minimum(ki, qi), 2 * G + g))

    return pl.pallas_call(
        functools.partial(_flash_attn_kernel, hsub=hsub, dh=Dh, tq=ts, tkv=ts),
        out_shape=jax.ShapeDtypeStruct((B, S, HDh), jnp.bfloat16),
        grid=(B, G, nq, nkv),
        in_specs=[q_spec, k_spec, v_spec],
        out_specs=pl.BlockSpec((1, ts, lane), lambda b, g, qi, ki: (b, qi, g)),
        scratch_shapes=[
            pltpu.VMEM((hsub, ts, 1), jnp.float32),    # m
            pltpu.VMEM((hsub, ts, 1), jnp.float32),    # l
            pltpu.VMEM((hsub, ts, Dh), jnp.float32),   # acc
        ],
        compiler_params=pltpu.CompilerParams(
            dimension_semantics=("parallel", "parallel", "parallel", "arbitrary"),
            vmem_limit_bytes=_VMEM_LIMIT),
    )(qkv3, qkv3, qkv3)


def proj_ffn(att2, x2, wo_t, norm_w, w1_t, w3_t, w2_t, *, tm, eps=NORM_EPS):
    M, HDh = att2.shape
    D = wo_t.shape[1]
    Hd = w1_t.shape[1]
    tnh = _pick_tile(Hd, 512)
    return pl.pallas_call(
        functools.partial(_proj_ffn_kernel, eps=eps),
        out_shape=jax.ShapeDtypeStruct((M, D), jnp.float32),
        grid=(M // tm, Hd // tnh),
        in_specs=[
            pl.BlockSpec((tm, HDh), lambda i, j: (i, 0)),
            pl.BlockSpec((tm, D), lambda i, j: (i, 0)),
            pl.BlockSpec((HDh, D), lambda i, j: (0, 0)),
            pl.BlockSpec((1, D), lambda i, j: (0, 0)),
            pl.BlockSpec((D, tnh), lambda i, j: (0, j)),
            pl.BlockSpec((D, tnh), lambda i, j: (0, j)),
            pl.BlockSpec((tnh, D), lambda i, j: (j, 0)),
        ],
        out_specs=pl.BlockSpec((tm, D), lambda i, j: (i, 0)),
        scratch_shapes=[
            pltpu.VMEM((tm, D), jnp.float32),      # h = x + att@wo
            pltpu.VMEM((tm, D), jnp.bfloat16),     # normalized activations
            pltpu.VMEM((tm, D), jnp.float32),      # f32 FFN accumulator
        ],
        compiler_params=pltpu.CompilerParams(
            dimension_semantics=("parallel", "arbitrary"),
            vmem_limit_bytes=_VMEM_LIMIT),
    )(att2, x2, wo_t, norm_w, w1_t, w3_t, w2_t)


# -------------------- offline weight prep (outside jit) --------------------

def prepare_params(params, cos, sin, *, n_heads, batch_size):
    """Per-head half-split permutation of wq/wk, scale fold, transposes, bf16
    casts, fused QKV weight, cos/sin tiling.  Runs ONCE, outside the forward."""
    HDh, D = params["wq"].shape
    Dh = HDh // n_heads
    idx = np.arange(HDh).reshape(n_heads, Dh // 2, 2)
    perm = np.concatenate([idx[..., 0], idx[..., 1]], axis=-1).reshape(-1)
    scale = 1.0 / float(np.sqrt(Dh))
    wq_p = params["wq"][perm] * scale
    wk_p = params["wk"][perm]
    return {
        "wqkv_t": jnp.concatenate([wq_p, wk_p, params["wv"]],
                                  axis=0).T.astype(jnp.bfloat16),
        "wo_t": params["wo"].T.astype(jnp.bfloat16),
        "w1_t": params["w1"].T.astype(jnp.bfloat16),
        "w3_t": params["w3"].T.astype(jnp.bfloat16),
        "w2_t": params["w2"].T.astype(jnp.bfloat16),
        "attn_norm_w": params["attn_norm_w"].reshape(1, D),
        "ffn_norm_w": params["ffn_norm_w"].reshape(1, D),
        "cos_m": jnp.tile(cos, (batch_size, 1)),   # (B*S, Dh//2)
        "sin_m": jnp.tile(sin, (batch_size, 1)),
    }


def transformer_block(x, prepped, *, n_heads, head_dim):
    B, S, D = x.shape
    HDh = n_heads * head_dim
    M = B * S
    x2 = x.reshape(M, D)
    tm = _pick_tile(M, 512)

    # RMSNorm + streamed QKV projection + RoPE (fused qkv output, bf16)
    qkv2 = norm_qkv_rope(x2, prepped["attn_norm_w"], prepped["wqkv_t"],
                         prepped["cos_m"], prepped["sin_m"],
                         tm=tm, n_heads=n_heads, head_dim=head_dim)

    # flash attention on pre-rotated q/k, fed straight from the fused buffer
    att3 = flash_attention(qkv2.reshape(B, S, 3 * HDh),
                           n_heads=n_heads, head_dim=head_dim)

    # out-proj + residual + RMSNorm + SwiGLU FFN + residual (single kernel)
    out2 = proj_ffn(att3.reshape(M, HDh), x2, prepped["wo_t"],
                    prepped["ffn_norm_w"], prepped["w1_t"], prepped["w3_t"],
                    prepped["w2_t"], tm=tm)
    return out2.reshape(B, S, D)


# ----------------------------- pure-JAX reference -----------------------------

def reference_block(x, params, cos, sin, *, n_heads):
    mm = functools.partial(jnp.matmul, precision=HI)

    def rms(t, w):
        ms = jnp.mean(t * t, axis=-1, keepdims=True)
        return t * lax.rsqrt(ms + NORM_EPS) * w

    B, S, D = x.shape
    H = n_heads
    Dh = D // H
    xn = rms(x, params["attn_norm_w"])
    xq = mm(xn, params["wq"].T).reshape(B, S, H, Dh)
    xk = mm(xn, params["wk"].T).reshape(B, S, H, Dh)
    xv = mm(xn, params["wv"].T).reshape(B, S, H, Dh)

    def rope(t):
        tr = t.reshape(B, S, H, Dh // 2, 2)
        te, to = tr[..., 0], tr[..., 1]
        c = cos[None, :, None, :]
        s = sin[None, :, None, :]
        return jnp.stack([te * c - to * s, te * s + to * c],
                         axis=-1).reshape(B, S, H, Dh)

    q = jnp.transpose(rope(xq), (0, 2, 1, 3))
    k = jnp.transpose(rope(xk), (0, 2, 1, 3))
    v = jnp.transpose(xv, (0, 2, 1, 3))
    scale = 1.0 / np.sqrt(Dh)
    s = jnp.einsum("bhqd,bhkd->bhqk", q, k, precision=HI) * scale
    mask = jnp.tril(jnp.ones((S, S), dtype=bool))
    s = jnp.where(mask, s, -1e30)
    p = jax.nn.softmax(s, axis=-1)
    o = jnp.einsum("bhqk,bhkd->bhqd", p, v, precision=HI)
    o = jnp.transpose(o, (0, 2, 1, 3)).reshape(B, S, H * Dh)
    h = x + mm(o, params["wo"].T)
    hn = rms(h, params["ffn_norm_w"])
    a = mm(hn, params["w1"].T)
    b = mm(hn, params["w3"].T)
    return h + mm(jax.nn.silu(a) * b, params["w2"].T)


# ----------------------------- main -----------------------------

if __name__ == "__main__":
    # ModelArgs-like small config
    B, S, D, H = 2, 8, 256, 4
    Dh = D // H
    multiple_of = 256
    hidden = int((8.0 / 3.0) * D)
    hidden = multiple_of * ((hidden + multiple_of - 1) // multiple_of)   # 768
    rope_theta = 10000.0

    key = jax.random.PRNGKey(0)
    ks = jax.random.split(key, 10)
    init = lambda k, shape: (0.02 * jax.random.normal(k, shape)).astype(jnp.float32)

    params = {
        "wq": init(ks[0], (H * Dh, D)),      # nn.Linear weight layout: (out, in)
        "wk": init(ks[1], (H * Dh, D)),
        "wv": init(ks[2], (H * Dh, D)),
        "wo": init(ks[3], (D, H * Dh)),
        "w1": init(ks[4], (hidden, D)),
        "w2": init(ks[5], (D, hidden)),
        "w3": init(ks[6], (hidden, D)),
        "attn_norm_w": (1.0 + 0.01 * jax.random.normal(ks[7], (D,))).astype(jnp.float32),
        "ffn_norm_w": (1.0 + 0.01 * jax.random.normal(ks[8], (D,))).astype(jnp.float32),
    }
    x = jax.random.normal(ks[9], (B, S, D), dtype=jnp.float32)

    # precompute_freqs_cis equivalent (real cos/sin parts)
    inv_freq = 1.0 / (rope_theta ** (jnp.arange(0, Dh, 2, dtype=jnp.float32) / Dh))
    t = jnp.arange(S, dtype=jnp.float32)
    ang = jnp.outer(t, inv_freq)                 # (S, Dh//2)
    cos, sin = jnp.cos(ang), jnp.sin(ang)

    # Weight prep hoisted out of the jitted forward (runs once).
    prepped = prepare_params(params, cos, sin, n_heads=H, batch_size=B)
    prepped = jax.tree_util.tree_map(jax.block_until_ready, prepped)

    block_fn = jax.jit(functools.partial(transformer_block, n_heads=H, head_dim=Dh))
    out = jax.block_until_ready(block_fn(x, prepped))

    ref = reference_block(x, params, cos, sin, n_heads=H)
    np.testing.assert_allclose(np.asarray(out), np.asarray(ref), rtol=2e-2, atol=5e-3)

    print("KERNEL_OK")
</pallas_src>

<mosaic_0001>
module attributes {stable_mosaic.version = 11 : i64} {
  func.func @_norm_qkv_rope_kernel(%arg0: i32, %arg1: i32, %arg2: memref<16x256xf32, #tpu.memory_space<vmem>>, %arg3: memref<1x256xf32, #tpu.memory_space<vmem>>, %arg4: memref<256x256xbf16, #tpu.memory_space<vmem>>, %arg5: memref<16x32xf32, #tpu.memory_space<vmem>>, %arg6: memref<16x32xf32, #tpu.memory_space<vmem>>, %arg7: memref<16x256xbf16, #tpu.memory_space<vmem>>, %arg8: memref<16x256xbf16, #tpu.memory_space<vmem>>) attributes {dimension_semantics = [#tpu.dimension_semantics<parallel>, #tpu.dimension_semantics<arbitrary>], iteration_bounds = array<i64: 1, 3>, scalar_prefetch = 0 : i64, scratch_operands = 1 : i64, tpu.core_type = #tpu.core_type<tc>, window_params = [{transform_indices = @transform_0, window_bounds = array<i64: 16, 256>}, {pipeline_mode = #tpu.pipeline_mode<synchronous>, transform_indices = @transform_1, window_bounds = array<i64: 1, 256>}, {transform_indices = @transform_2, window_bounds = array<i64: 256, 256>}, {transform_indices = @transform_3, window_bounds = array<i64: 16, 32>}, {transform_indices = @transform_4, window_bounds = array<i64: 16, 32>}, {transform_indices = @transform_5, window_bounds = array<i64: 16, 256>}]} {
    %c0_i32 = arith.constant 0 : i32
    %0 = arith.cmpi eq, %arg1, %c0_i32 : i32
    %1 = arith.extui %0 : i1 to i32
    %c0_i32_0 = arith.constant 0 : i32
    %2 = arith.cmpi ne, %1, %c0_i32_0 : i32
    scf.if %2 {
      %c0_6 = arith.constant 0 : index
      %c0_7 = arith.constant 0 : index
      %13 = vector.load %arg2[%c0_6, %c0_7] : memref<16x256xf32, #tpu.memory_space<vmem>>, vector<16x256xf32>
      %14 = arith.mulf %13, %13 : vector<16x256xf32>
      %cst_8 = arith.constant dense<0.000000e+00> : vector<16xf32>
      %15 = vector.multi_reduction <add>, %14, %cst_8 [1] : vector<16x256xf32> to vector<16xf32>
      %16 = vector.shape_cast %15 : vector<16xf32> to vector<16x1xf32>
      %cst_9 = arith.constant 2.560000e+02 : f32
      %17 = vector.broadcast %cst_9 : f32 to vector<16x1xf32>
      %18 = arith.divf %16, %17 : vector<16x1xf32>
      %cst_10 = arith.constant 9.99999974E-6 : f32
      %19 = vector.broadcast %cst_10 : f32 to vector<16x1xf32>
      %20 = arith.addf %18, %19 : vector<16x1xf32>
      %21 = math.rsqrt %20 : vector<16x1xf32>
      %22 = vector.broadcast %21 : vector<16x1xf32> to vector<16x256xf32>
      %23 = arith.mulf %13, %22 : vector<16x256xf32>
      %c0_11 = arith.constant 0 : index
      %c0_12 = arith.constant 0 : index
      %24 = vector.load %arg3[%c0_11, %c0_12] : memref<1x256xf32, #tpu.memory_space<vmem>>, vector<1x256xf32>
      %25 = vector.broadcast %24 : vector<1x256xf32> to vector<16x256xf32>
      %26 = arith.mulf %23, %25 : vector<16x256xf32>
      %27 = arith.truncf %26 : vector<16x256xf32> to vector<16x256xbf16>
      %c0_13 = arith.constant 0 : index
      %c0_14 = arith.constant 0 : index
      %28 = vector.load %arg8[%c0_13, %c0_14] : memref<16x256xbf16, #tpu.memory_space<vmem>>, vector<16x256xbf16>
      tpu.vector_store %arg8[%c0_13, %c0_14], %27 {strides = array<i32>} : memref<16x256xbf16, #tpu.memory_space<vmem>>, vector<16x256xbf16>,
    } else {
    }
    %c0 = arith.constant 0 : index
    %c0_1 = arith.constant 0 : index
    %3 = vector.load %arg8[%c0, %c0_1] : memref<16x256xbf16, #tpu.memory_space<vmem>>, vector<16x256xbf16>
    %c0_2 = arith.constant 0 : index
    %c0_3 = arith.constant 0 : index
    %4 = vector.load %arg4[%c0_2, %c0_3] : memref<256x256xbf16, #tpu.memory_space<vmem>>, vector<256x256xbf16>
    %cst = arith.constant dense<0.000000e+00> : vector<16x256xf32>
    %5 = tpu.matmul %3, %4, %cst {dimension_numbers = #tpu.dot_dimension_numbers<[1], [0], [0], [1], [0, 0, 1, 1], [], []>} : vector<16x256xbf16>, vector<256x256xbf16>, vector<16x256xf32> -> vector<16x256xf32>
    %c256_i32 = arith.constant 256 : i32
    %6 = arith.muli %arg1, %c256_i32 : i32
    %c512_i32 = arith.constant 512 : i32
    %7 = arith.cmpi slt, %6, %c512_i32 : i32
    %8 = arith.extui %7 : i1 to i32
    %c0_i32_4 = arith.constant 0 : i32
    %9 = arith.cmpi ne, %8, %c0_i32_4 : i32
    scf.if %9 {
      %c0_6 = arith.constant 0 : index
      %c0_7 = arith.constant 0 : index
      %13 = vector.load %arg5[%c0_6, %c0_7] : memref<16x32xf32, #tpu.memory_space<vmem>>, vector<16x32xf32>
      %c0_8 = arith.constant 0 : index
      %c0_9 = arith.constant 0 : index
      %14 = vector.load %arg6[%c0_8, %c0_9] : memref<16x32xf32, #tpu.memory_space<vmem>>, vector<16x32xf32>
      %15 = vector.extract_strided_slice %5 {offsets = [0, 0], sizes = [16, 32], strides = [1, 1]} : vector<16x256xf32> to vector<16x32xf32>
      %16 = vector.extract_strided_slice %5 {offsets = [0, 32], sizes = [16, 32], strides = [1, 1]} : vector<16x256xf32> to vector<16x32xf32>
      %17 = arith.mulf %15, %13 : vector<16x32xf32>
      %18 = arith.mulf %16, %14 : vector<16x32xf32>
      %19 = arith.subf %17, %18 : vector<16x32xf32>
      %20 = arith.mulf %15, %14 : vector<16x32xf32>
      %21 = arith.mulf %16, %13 : vector<16x32xf32>
      %22 = arith.addf %20, %21 : vector<16x32xf32>
      %23 = vector.extract_strided_slice %5 {offsets = [0, 64], sizes = [16, 32], strides = [1, 1]} : vector<16x256xf32> to vector<16x32xf32>
      %24 = vector.extract_strided_slice %5 {offsets = [0, 96], sizes = [16, 32], strides = [1, 1]} : vector<16x256xf32> to vector<16x32xf32>
      %25 = arith.mulf %23, %13 : vector<16x32xf32>
      %26 = arith.mulf %24, %14 : vector<16x32xf32>
      %27 = arith.subf %25, %26 : vector<16x32xf32>
      %28 = arith.mulf %23, %14 : vector<16x32xf32>
      %29 = arith.mulf %24, %13 : vector<16x32xf32>
      %30 = arith.addf %28, %29 : vector<16x32xf32>
      %31 = vector.extract_strided_slice %5 {offsets = [0, 128], sizes = [16, 32], strides = [1, 1]} : vector<16x256xf32> to vector<16x32xf32>
      %32 = vector.extract_strided_slice %5 {offsets = [0, 160], sizes = [16, 32], strides = [1, 1]} : vector<16x256xf32> to vector<16x32xf32>
      %33 = arith.mulf %31, %13 : vector<16x32xf32>
      %34 = arith.mulf %32, %14 : vector<16x32xf32>
      %35 = arith.subf %33, %34 : vector<16x32xf32>
      %36 = arith.mulf %31, %14 : vector<16x32xf32>
      %37 = arith.mulf %32, %13 : vector<16x32xf32>
      %38 = arith.addf %36, %37 : vector<16x32xf32>
      %39 = vector.extract_strided_slice %5 {offsets = [0, 192], sizes = [16, 32], strides = [1, 1]} : vector<16x256xf32> to vector<16x32xf32>
      %40 = vector.extract_strided_slice %5 {offsets = [0, 224], sizes = [16, 32], strides = [1, 1]} : vector<16x256xf32> to vector<16x32xf32>
      %41 = arith.mulf %39, %13 : vector<16x32xf32>
      %42 = arith.mulf %40, %14 : vector<16x32xf32>
      %43 = arith.subf %41, %42 : vector<16x32xf32>
      %44 = arith.mulf %39, %14 : vector<16x32xf32>
      %45 = arith.mulf %40, %13 : vector<16x32xf32>
      %46 = arith.addf %44, %45 : vector<16x32xf32>
      %47 = tpu.concatenate %19, %22, %27, %30, %35, %38, %43, %46 in 1 : vector<16x32xf32>, vector<16x32xf32>, vector<16x32xf32>, vector<16x32xf32>, vector<16x32xf32>, vector<16x32xf32>, vector<16x32xf32>, vector<16x32xf32> -> vector<16x256xf32>
      %48 = arith.truncf %47 : vector<16x256xf32> to vector<16x256xbf16>
      %c0_10 = arith.constant 0 : index
      %c0_11 = arith.constant 0 : index
      %49 = vector.load %arg7[%c0_10, %c0_11] : memref<16x256xbf16, #tpu.memory_space<vmem>>, vector<16x256xbf16>
      tpu.vector_store %arg7[%c0_10, %c0_11], %48 {strides = array<i32>} : memref<16x256xbf16, #tpu.memory_space<vmem>>, vector<16x256xbf16>,
    } else {
    }
    %true = arith.constant true
    %10 = arith.xori %7, %true : i1
    %11 = arith.extui %10 : i1 to i32
    %c0_i32_5 = arith.constant 0 : i32
    %12 = arith.cmpi ne, %11, %c0_i32_5 : i32
    scf.if %12 {
      %13 = arith.truncf %5 : vector<16x256xf32> to vector<16x256xbf16>
      %c0_6 = arith.constant 0 : index
      %c0_7 = arith.constant 0 : index
      %14 = vector.load %arg7[%c0_6, %c0_7] : memref<16x256xbf16, #tpu.memory_space<vmem>>, vector<16x256xbf16>
      tpu.vector_store %arg7[%c0_6, %c0_7], %13 {strides = array<i32>} : memref<16x256xbf16, #tpu.memory_space<vmem>>, vector<16x256xbf16>,
    } else {
    }
    return
  }
  func.func @transform_0(%arg0: i32, %arg1: i32) -> (i32, i32) {
    %c0_i32 = arith.constant 0 : i32
    %c0_i32_0 = arith.constant 0 : i32
    return %arg0, %c0_i32 : i32, i32
  }
  func.func @transform_1(%arg0: i32, %arg1: i32) -> (i32, i32) {
    %c0_i32 = arith.constant 0 : i32
    %c0_i32_0 = arith.constant 0 : i32
    %c0_i32_1 = arith.constant 0 : i32
    return %c0_i32, %c0_i32_0 : i32, i32
  }
  func.func @transform_2(%arg0: i32, %arg1: i32) -> (i32, i32) {
    %c0_i32 = arith.constant 0 : i32
    %c0_i32_0 = arith.constant 0 : i32
    return %c0_i32, %arg1 : i32, i32
  }
  func.func @transform_3(%arg0: i32, %arg1: i32) -> (i32, i32) {
    %c0_i32 = arith.constant 0 : i32
    %c0_i32_0 = arith.constant 0 : i32
    return %arg0, %c0_i32 : i32, i32
  }
  func.func @transform_4(%arg0: i32, %arg1: i32) -> (i32, i32) {
    %c0_i32 = arith.constant 0 : i32
    %c0_i32_0 = arith.constant 0 : i32
    return %arg0, %c0_i32 : i32, i32
  }
  func.func @transform_5(%arg0: i32, %arg1: i32) -> (i32, i32) {
    %c0_i32 = arith.constant 0 : i32
    return %arg0, %arg1 : i32, i32
  }
}

module attributes {stable_mosaic.version = 11 : i64} {
  func.func @_flash_attn_kernel(%arg0: i32, %arg1: i32, %arg2: i32, %arg3: i32, %arg4: memref<1x8x128xbf16, #tpu.memory_space<vmem>>, %arg5: memref<1x8x128xbf16, #tpu.memory_space<vmem>>, %arg6: memref<1x8x128xbf16, #tpu.memory_space<vmem>>, %arg7: memref<1x8x128xbf16, #tpu.memory_space<vmem>>, %arg8: memref<2x8x1xf32, #tpu.memory_space<vmem>>, %arg9: memref<2x8x1xf32, #tpu.memory_space<vmem>>, %arg10: memref<2x8x64xf32, #tpu.memory_space<vmem>>) attributes {dimension_semantics = [#tpu.dimension_semantics<parallel>, #tpu.dimension_semantics<parallel>, #tpu.dimension_semantics<parallel>, #tpu.dimension_semantics<arbitrary>], iteration_bounds = array<i64: 2, 2, 1, 1>, scalar_prefetch = 0 : i64, scratch_operands = 3 : i64, tpu.core_type = #tpu.core_type<tc>, window_params = [{transform_indices = @transform_0, window_bounds = array<i64: 1, 8, 128>}, {transform_indices = @transform_1, window_bounds = array<i64: 1, 8, 128>}, {transform_indices = @transform_2, window_bounds = array<i64: 1, 8, 128>}, {transform_indices = @transform_3, window_bounds = array<i64: 1, 8, 128>}]} {
    %c0_i32 = arith.constant 0 : i32
    %0 = arith.cmpi eq, %arg3, %c0_i32 : i32
    %1 = arith.extui %0 : i1 to i32
    %c0_i32_0 = arith.constant 0 : i32
    %2 = arith.cmpi ne, %1, %c0_i32_0 : i32
    scf.if %2 {
      %cst = arith.constant -1.000000e+30 : f32
      %12 = vector.broadcast %cst : f32 to vector<2x8x1xf32>
      %c0 = arith.constant 0 : index
      %c0_5 = arith.constant 0 : index
      %c0_6 = arith.constant 0 : index
      %13 = vector.load %arg8[%c0, %c0_5, %c0_6] : memref<2x8x1xf32, #tpu.memory_space<vmem>>, vector<2x8x1xf32>
      tpu.vector_store %arg8[%c0, %c0_5, %c0_6], %12 {strides = array<i32>} : memref<2x8x1xf32, #tpu.memory_space<vmem>>, vector<2x8x1xf32>,
      %cst_7 = arith.constant 0.000000e+00 : f32
      %14 = vector.broadcast %cst_7 : f32 to vector<2x8x1xf32>
      %c0_8 = arith.constant 0 : index
      %c0_9 = arith.constant 0 : index
      %c0_10 = arith.constant 0 : index
      %15 = vector.load %arg9[%c0_8, %c0_9, %c0_10] : memref<2x8x1xf32, #tpu.memory_space<vmem>>, vector<2x8x1xf32>
      tpu.vector_store %arg9[%c0_8, %c0_9, %c0_10], %14 {strides = array<i32>} : memref<2x8x1xf32, #tpu.memory_space<vmem>>, vector<2x8x1xf32>,
      %cst_11 = arith.constant 0.000000e+00 : f32
      %16 = vector.broadcast %cst_11 : f32 to vector<2x8x64xf32>
      %c0_12 = arith.constant 0 : index
      %c0_13 = arith.constant 0 : index
      %c0_14 = arith.constant 0 : index
      %17 = vector.load %arg10[%c0_12, %c0_13, %c0_14] : memref<2x8x64xf32, #tpu.memory_space<vmem>>, vector<2x8x64xf32>
      tpu.vector_store %arg10[%c0_12, %c0_13, %c0_14], %16 {strides = array<i32>} : memref<2x8x64xf32, #tpu.memory_space<vmem>>, vector<2x8x64xf32>,
    } else {
    }
    %c8_i32 = arith.constant 8 : i32
    %3 = arith.muli %arg3, %c8_i32 : i32
    %c8_i32_1 = arith.constant 8 : i32
    %4 = arith.muli %arg2, %c8_i32_1 : i32
    %c7_i32 = arith.constant 7 : i32
    %5 = arith.addi %4, %c7_i32 : i32
    %6 = arith.cmpi sle, %3, %5 : i32
    %7 = arith.extui %6 : i1 to i32
    %c0_i32_2 = arith.constant 0 : i32
    %8 = arith.cmpi ne, %7, %c0_i32_2 : i32
    scf.if %8 {
      %c0 = arith.constant 0 : index
      %c0_5 = arith.constant 0 : index
      %c0_6 = arith.constant 0 : index
      %12 = vector.load %arg4[%c0, %c0_5, %c0_6] : memref<1x8x128xbf16, #tpu.memory_space<vmem>>, vector<1x8x128xbf16>
      %13 = vector.shape_cast %12 : vector<1x8x128xbf16> to vector<8x128xbf16>
      %c0_7 = arith.constant 0 : index
      %c0_8 = arith.constant 0 : index
      %c0_9 = arith.constant 0 : index
      %14 = vector.load %arg5[%c0_7, %c0_8, %c0_9] : memref<1x8x128xbf16, #tpu.memory_space<vmem>>, vector<1x8x128xbf16>
      %15 = vector.shape_cast %14 : vector<1x8x128xbf16> to vector<8x128xbf16>
      %c0_10 = arith.constant 0 : index
      %c0_11 = arith.constant 0 : index
      %c0_12 = arith.constant 0 : index
      %16 = vector.load %arg6[%c0_10, %c0_11, %c0_12] : memref<1x8x128xbf16, #tpu.memory_space<vmem>>, vector<1x8x128xbf16>
      %17 = vector.shape_cast %16 : vector<1x8x128xbf16> to vector<8x128xbf16>
      %c8_i32_13 = arith.constant 8 : i32
      %18 = arith.muli %arg2, %c8_i32_13 : i32
      %19 = tpu.iota {dimensions = array<i32: 0>} : vector<8x8xi32>
      %20 = vector.broadcast %18 : i32 to vector<8x8xi32>
      %21 = arith.addi %20, %19 : vector<8x8xi32>
      %c8_i32_14 = arith.constant 8 : i32
      %22 = arith.muli %arg3, %c8_i32_14 : i32
      %23 = tpu.iota {dimensions = array<i32: 1>} : vector<8x8xi32>
      %24 = vector.broadcast %22 : i32 to vector<8x8xi32>
      %25 = arith.addi %24, %23 : vector<8x8xi32>
      %26 = arith.cmpi sle, %25, %21 : vector<8x8xi32>
      %cst = arith.constant 0.000000e+00 : f32
      %cst_15 = arith.constant -1.000000e+30 : f32
      %27 = vector.broadcast %cst : f32 to vector<8x8xf32>
      %28 = vector.broadcast %cst_15 : f32 to vector<8x8xf32>
      %29 = arith.select %26, %27, %28 : vector<8x8xi1>, vector<8x8xf32>
      %30 = vector.extract_strided_slice %13 {offsets = [0, 0], sizes = [8, 64], strides = [1, 1]} : vector<8x128xbf16> to vector<8x64xbf16>
      %31 = vector.extract_strided_slice %15 {offsets = [0, 0], sizes = [8, 64], strides = [1, 1]} : vector<8x128xbf16> to vector<8x64xbf16>
      %32 = vector.extract_strided_slice %17 {offsets = [0, 0], sizes = [8, 64], strides = [1, 1]} : vector<8x128xbf16> to vector<8x64xbf16>
      %cst_16 = arith.constant dense<0.000000e+00> : vector<8x8xf32>
      %33 = tpu.matmul %30, %31, %cst_16 {dimension_numbers = #tpu.dot_dimension_numbers<[1], [1], [0], [0], [0, 0, 1, 0], [], []>} : vector<8x64xbf16>, vector<8x64xbf16>, vector<8x8xf32> -> vector<8x8xf32>
      %34 = arith.addf %33, %29 : vector<8x8xf32>
      %c0_17 = arith.constant 0 : index
      %c0_18 = arith.constant 0 : index
      %c0_19 = arith.constant 0 : index
      %35 = vector.load %arg8[%c0_17, %c0_18, %c0_19] : memref<2x8x1xf32, #tpu.memory_space<vmem>>, vector<1x8x1xf32>
      %36 = vector.shape_cast %35 : vector<1x8x1xf32> to vector<8x1xf32>
      %cst_20 = arith.constant dense<0xFF800000> : vector<8xf32>
      %37 = vector.multi_reduction <maximumf>, %34, %cst_20 [1] : vector<8x8xf32> to vector<8xf32>
      %38 = vector.shape_cast %37 : vector<8xf32> to vector<8x1xf32>
      %39 = arith.maximumf %36, %38 : vector<8x1xf32>
      %40 = arith.subf %36, %39 : vector<8x1xf32>
      %41 = math.exp %40 : vector<8x1xf32>
      %42 = vector.broadcast %39 : vector<8x1xf32> to vector<8x8xf32>
      %43 = arith.subf %34, %42 : vector<8x8xf32>
      %44 = math.exp %43 : vector<8x8xf32>
      %c0_21 = arith.constant 0 : index
      %c0_22 = arith.constant 0 : index
      %c0_23 = arith.constant 0 : index
      %45 = vector.load %arg9[%c0_21, %c0_22, %c0_23] : memref<2x8x1xf32, #tpu.memory_space<vmem>>, vector<1x8x1xf32>
      %46 = vector.shape_cast %45 : vector<1x8x1xf32> to vector<8x1xf32>
      %47 = arith.mulf %41, %46 : vector<8x1xf32>
      %cst_24 = arith.constant dense<0.000000e+00> : vector<8xf32>
      %48 = vector.multi_reduction <add>, %44, %cst_24 [1] : vector<8x8xf32> to vector<8xf32>
      %49 = vector.shape_cast %48 : vector<8xf32> to vector<8x1xf32>
      %50 = arith.addf %47, %49 : vector<8x1xf32>
      %c0_25 = arith.constant 0 : index
      %c0_26 = arith.constant 0 : index
      %c0_27 = arith.constant 0 : index
      %51 = vector.load %arg9[%c0_25, %c0_26, %c0_27] : memref<2x8x1xf32, #tpu.memory_space<vmem>>, vector<1x8x1xf32>
      %52 = vector.shape_cast %51 : vector<1x8x1xf32> to vector<8x1xf32>
      %53 = vector.shape_cast %50 : vector<8x1xf32> to vector<1x8x1xf32>
      tpu.vector_store %arg9[%c0_25, %c0_26, %c0_27], %53 {strides = array<i32>} : memref<2x8x1xf32, #tpu.memory_space<vmem>>, vector<1x8x1xf32>,
      %c0_28 = arith.constant 0 : index
      %c0_29 = arith.constant 0 : index
      %c0_30 = arith.constant 0 : index
      %54 = vector.load %arg10[%c0_28, %c0_29, %c0_30] : memref<2x8x64xf32, #tpu.memory_space<vmem>>, vector<1x8x64xf32>
      %55 = vector.shape_cast %54 : vector<1x8x64xf32> to vector<8x64xf32>
      %56 = vector.broadcast %41 : vector<8x1xf32> to vector<8x64xf32>
      %57 = arith.mulf %56, %55 : vector<8x64xf32>
      %58 = arith.truncf %44 : vector<8x8xf32> to vector<8x8xbf16>
      %cst_31 = arith.constant dense<0.000000e+00> : vector<8x64xf32>
      %59 = tpu.matmul %58, %32, %cst_31 {dimension_numbers = #tpu.dot_dimension_numbers<[1], [0], [0], [1], [0, 0, 1, 1], [], []>} : vector<8x8xbf16>, vector<8x64xbf16>, vector<8x64xf32> -> vector<8x64xf32>
      %60 = arith.addf %57, %59 : vector<8x64xf32>
      %c0_32 = arith.constant 0 : index
      %c0_33 = arith.constant 0 : index
      %c0_34 = arith.constant 0 : index
      %61 = vector.load %arg10[%c0_32, %c0_33, %c0_34] : memref<2x8x64xf32, #tpu.memory_space<vmem>>, vector<1x8x64xf32>
      %62 = vector.shape_cast %61 : vector<1x8x64xf32> to vector<8x64xf32>
      %63 = vector.shape_cast %60 : vector<8x64xf32> to vector<1x8x64xf32>
      tpu.vector_store %arg10[%c0_32, %c0_33, %c0_34], %63 {strides = array<i32>} : memref<2x8x64xf32, #tpu.memory_space<vmem>>, vector<1x8x64xf32>,
      %c0_35 = arith.constant 0 : index
      %c0_36 = arith.constant 0 : index
      %c0_37 = arith.constant 0 : index
      %64 = vector.load %arg8[%c0_35, %c0_36, %c0_37] : memref<2x8x1xf32, #tpu.memory_space<vmem>>, vector<1x8x1xf32>
      %65 = vector.shape_cast %64 : vector<1x8x1xf32> to vector<8x1xf32>
      %66 = vector.shape_cast %39 : vector<8x1xf32> to vector<1x8x1xf32>
      tpu.vector_store %arg8[%c0_35, %c0_36, %c0_37], %66 {strides = array<i32>} : memref<2x8x1xf32, #tpu.memory_space<vmem>>, vector<1x8x1xf32>,
      %67 = vector.extract_strided_slice %13 {offsets = [0, 64], sizes = [8, 64], strides = [1, 1]} : vector<8x128xbf16> to vector<8x64xbf16>
      %68 = vector.extract_strided_slice %15 {offsets = [0, 64], sizes = [8, 64], strides = [1, 1]} : vector<8x128xbf16> to vector<8x64xbf16>
      %69 = vector.extract_strided_slice %17 {offsets = [0, 64], sizes = [8, 64], strides = [1, 1]} : vector<8x128xbf16> to vector<8x64xbf16>
      %cst_38 = arith.constant dense<0.000000e+00> : vector<8x8xf32>
      %70 = tpu.matmul %67, %68, %cst_38 {dimension_numbers = #tpu.dot_dimension_numbers<[1], [1], [0], [0], [0, 0, 1, 0], [], []>} : vector<8x64xbf16>, vector<8x64xbf16>, vector<8x8xf32> -> vector<8x8xf32>
      %71 = arith.addf %70, %29 : vector<8x8xf32>
      %c1 = arith.constant 1 : index
      %c0_39 = arith.constant 0 : index
      %c0_40 = arith.constant 0 : index
      %72 = vector.load %arg8[%c1, %c0_39, %c0_40] : memref<2x8x1xf32, #tpu.memory_space<vmem>>, vector<1x8x1xf32>
      %73 = vector.shape_cast %72 : vector<1x8x1xf32> to vector<8x1xf32>
      %cst_41 = arith.constant dense<0xFF800000> : vector<8xf32>
      %74 = vector.multi_reduction <maximumf>, %71, %cst_41 [1] : vector<8x8xf32> to vector<8xf32>
      %75 = vector.shape_cast %74 : vector<8xf32> to vector<8x1xf32>
      %76 = arith.maximumf %73, %75 : vector<8x1xf32>
      %77 = arith.subf %73, %76 : vector<8x1xf32>
      %78 = math.exp %77 : vector<8x1xf32>
      %79 = vector.broadcast %76 : vector<8x1xf32> to vector<8x8xf32>
      %80 = arith.subf %71, %79 : vector<8x8xf32>
      %81 = math.exp %80 : vector<8x8xf32>
      %c1_42 = arith.constant 1 : index
      %c0_43 = arith.constant 0 : index
      %c0_44 = arith.constant 0 : index
      %82 = vector.load %arg9[%c1_42, %c0_43, %c0_44] : memref<2x8x1xf32, #tpu.memory_space<vmem>>, vector<1x8x1xf32>
      %83 = vector.shape_cast %82 : vector<1x8x1xf32> to vector<8x1xf32>
      %84 = arith.mulf %78, %83 : vector<8x1xf32>
      %cst_45 = arith.constant dense<0.000000e+00> : vector<8xf32>
      %85 = vector.multi_reduction <add>, %81, %cst_45 [1] : vector<8x8xf32> to vector<8xf32>
      %86 = vector.shape_cast %85 : vector<8xf32> to vector<8x1xf32>
      %87 = arith.addf %84, %86 : vector<8x1xf32>
      %c1_46 = arith.constant 1 : index
      %c0_47 = arith.constant 0 : index
      %c0_48 = arith.constant 0 : index
      %88 = vector.load %arg9[%c1_46, %c0_47, %c0_48] : memref<2x8x1xf32, #tpu.memory_space<vmem>>, vector<1x8x1xf32>
      %89 = vector.shape_cast %88 : vector<1x8x1xf32> to vector<8x1xf32>
      %90 = vector.shape_cast %87 : vector<8x1xf32> to vector<1x8x1xf32>
      tpu.vector_store %arg9[%c1_46, %c0_47, %c0_48], %90 {strides = array<i32>} : memref<2x8x1xf32, #tpu.memory_space<vmem>>, vector<1x8x1xf32>,
      %c1_49 = arith.constant 1 : index
      %c0_50 = arith.constant 0 : index
      %c0_51 = arith.constant 0 : index
      %91 = vector.load %arg10[%c1_49, %c0_50, %c0_51] : memref<2x8x64xf32, #tpu.memory_space<vmem>>, vector<1x8x64xf32>
      %92 = vector.shape_cast %91 : vector<1x8x64xf32> to vector<8x64xf32>
      %93 = vector.broadcast %78 : vector<8x1xf32> to vector<8x64xf32>
      %94 = arith.mulf %93, %92 : vector<8x64xf32>
      %95 = arith.truncf %81 : vector<8x8xf32> to vector<8x8xbf16>
      %cst_52 = arith.constant dense<0.000000e+00> : vector<8x64xf32>
      %96 = tpu.matmul %95, %69, %cst_52 {dimension_numbers = #tpu.dot_dimension_numbers<[1], [0], [0], [1], [0, 0, 1, 1], [], []>} : vector<8x8xbf16>, vector<8x64xbf16>, vector<8x64xf32> -> vector<8x64xf32>
      %97 = arith.addf %94, %96 : vector<8x64xf32>
      %c1_53 = arith.constant 1 : index
      %c0_54 = arith.constant 0 : index
      %c0_55 = arith.constant 0 : index
      %98 = vector.load %arg10[%c1_53, %c0_54, %c0_55] : memref<2x8x64xf32, #tpu.memory_space<vmem>>, vector<1x8x64xf32>
      %99 = vector.shape_cast %98 : vector<1x8x64xf32> to vector<8x64xf32>
      %100 = vector.shape_cast %97 : vector<8x64xf32> to vector<1x8x64xf32>
      tpu.vector_store %arg10[%c1_53, %c0_54, %c0_55], %100 {strides = array<i32>} : memref<2x8x64xf32, #tpu.memory_space<vmem>>, vector<1x8x64xf32>,
      %c1_56 = arith.constant 1 : index
      %c0_57 = arith.constant 0 : index
      %c0_58 = arith.constant 0 : index
      %101 = vector.load %arg8[%c1_56, %c0_57, %c0_58] : memref<2x8x1xf32, #tpu.memory_space<vmem>>, vector<1x8x1xf32>
      %102 = vector.shape_cast %101 : vector<1x8x1xf32> to vector<8x1xf32>
      %103 = vector.shape_cast %76 : vector<8x1xf32> to vector<1x8x1xf32>
      tpu.vector_store %arg8[%c1_56, %c0_57, %c0_58], %103 {strides = array<i32>} : memref<2x8x1xf32, #tpu.memory_space<vmem>>, vector<1x8x1xf32>,
    } else {
    }
    %c0_i32_3 = arith.constant 0 : i32
    %9 = arith.cmpi eq, %arg3, %c0_i32_3 : i32
    %10 = arith.extui %9 : i1 to i32
    %c0_i32_4 = arith.constant 0 : i32
    %11 = arith.cmpi ne, %10, %c0_i32_4 : i32
    scf.if %11 {
      %c0 = arith.constant 0 : index
      %c0_5 = arith.constant 0 : index
      %c0_6 = arith.constant 0 : index
      %12 = vector.load %arg10[%c0, %c0_5, %c0_6] : memref<2x8x64xf32, #tpu.memory_space<vmem>>, vector<1x8x64xf32>
      %13 = vector.shape_cast %12 : vector<1x8x64xf32> to vector<8x64xf32>
      %c0_7 = arith.constant 0 : index
      %c0_8 = arith.constant 0 : index
      %c0_9 = arith.constant 0 : index
      %14 = vector.load %arg9[%c0_7, %c0_8, %c0_9] : memref<2x8x1xf32, #tpu.memory_space<vmem>>, vector<1x8x1xf32>
      %15 = vector.shape_cast %14 : vector<1x8x1xf32> to vector<8x1xf32>
      %16 = vector.broadcast %15 : vector<8x1xf32> to vector<8x64xf32>
      %17 = arith.divf %13, %16 : vector<8x64xf32>
      %c1 = arith.constant 1 : index
      %c0_10 = arith.constant 0 : index
      %c0_11 = arith.constant 0 : index
      %18 = vector.load %arg10[%c1, %c0_10, %c0_11] : memref<2x8x64xf32, #tpu.memory_space<vmem>>, vector<1x8x64xf32>
      %19 = vector.shape_cast %18 : vector<1x8x64xf32> to vector<8x64xf32>
      %c1_12 = arith.constant 1 : index
      %c0_13 = arith.constant 0 : index
      %c0_14 = arith.constant 0 : index
      %20 = vector.load %arg9[%c1_12, %c0_13, %c0_14] : memref<2x8x1xf32, #tpu.memory_space<vmem>>, vector<1x8x1xf32>
      %21 = vector.shape_cast %20 : vector<1x8x1xf32> to vector<8x1xf32>
      %22 = vector.broadcast %21 : vector<8x1xf32> to vector<8x64xf32>
      %23 = arith.divf %19, %22 : vector<8x64xf32>
      %24 = tpu.concatenate %17, %23 in 1 : vector<8x64xf32>, vector<8x64xf32> -> vector<8x128xf32>
      %25 = arith.truncf %24 : vector<8x128xf32> to vector<8x128xbf16>
      %c0_15 = arith.constant 0 : index
      %c0_16 = arith.constant 0 : index
      %c0_17 = arith.constant 0 : index
      %26 = vector.load %arg7[%c0_15, %c0_16, %c0_17] : memref<1x8x128xbf16, #tpu.memory_space<vmem>>, vector<1x8x128xbf16>
      %27 = vector.shape_cast %26 : vector<1x8x128xbf16> to vector<8x128xbf16>
      %28 = vector.shape_cast %25 : vector<8x128xbf16> to vector<1x8x128xbf16>
      tpu.vector_store %arg7[%c0_15, %c0_16, %c0_17], %28 {strides = array<i32>} : memref<1x8x128xbf16, #tpu.memory_space<vmem>>, vector<1x8x128xbf16>,
    } else {
    }
    return
  }
  func.func @transform_0(%arg0: i32, %arg1: i32, %arg2: i32, %arg3: i32) -> (i32, i32, i32) {
    %c0_i32 = arith.constant 0 : i32
    return %arg0, %arg2, %arg1 : i32, i32, i32
  }
  func.func @transform_1(%arg0: i32, %arg1: i32, %arg2: i32, %arg3: i32) -> (i32, i32, i32) {
    %0 = arith.minsi %arg3, %arg2 : i32
    %c2_i32 = arith.constant 2 : i32
    %1 = arith.addi %c2_i32, %arg1 : i32
    %c0_i32 = arith.constant 0 : i32
    return %arg0, %0, %1 : i32, i32, i32
  }
  func.func @transform_2(%arg0: i32, %arg1: i32, %arg2: i32, %arg3: i32) -> (i32, i32, i32) {
    %0 = arith.minsi %arg3, %arg2 : i32
    %c4_i32 = arith.constant 4 : i32
    %1 = arith.addi %c4_i32, %arg1 : i32
    %c0_i32 = arith.constant 0 : i32
    return %arg0, %0, %1 : i32, i32, i32
  }
  func.func @transform_3(%arg0: i32, %arg1: i32, %arg2: i32, %arg3: i32) -> (i32, i32, i32) {
    %c0_i32 = arith.constant 0 : i32
    return %arg0, %arg2, %arg1 : i32, i32, i32
  }
}

module attributes {stable_mosaic.version = 11 : i64} {
  func.func @_proj_ffn_kernel(%arg0: i32, %arg1: i32, %arg2: memref<16x256xbf16, #tpu.memory_space<vmem>>, %arg3: memref<16x256xf32, #tpu.memory_space<vmem>>, %arg4: memref<256x256xbf16, #tpu.memory_space<vmem>>, %arg5: memref<1x256xf32, #tpu.memory_space<vmem>>, %arg6: memref<256x256xbf16, #tpu.memory_space<vmem>>, %arg7: memref<256x256xbf16, #tpu.memory_space<vmem>>, %arg8: memref<256x256xbf16, #tpu.memory_space<vmem>>, %arg9: memref<16x256xf32, #tpu.memory_space<vmem>>, %arg10: memref<16x256xf32, #tpu.memory_space<vmem>>, %arg11: memref<16x256xbf16, #tpu.memory_space<vmem>>, %arg12: memref<16x256xf32, #tpu.memory_space<vmem>>) attributes {dimension_semantics = [#tpu.dimension_semantics<parallel>, #tpu.dimension_semantics<arbitrary>], iteration_bounds = array<i64: 1, 3>, scalar_prefetch = 0 : i64, scratch_operands = 3 : i64, tpu.core_type = #tpu.core_type<tc>, window_params = [{transform_indices = @transform_0, window_bounds = array<i64: 16, 256>}, {transform_indices = @transform_1, window_bounds = array<i64: 16, 256>}, {pipeline_mode = #tpu.pipeline_mode<synchronous>, transform_indices = @transform_2, window_bounds = array<i64: 256, 256>}, {pipeline_mode = #tpu.pipeline_mode<synchronous>, transform_indices = @transform_3, window_bounds = array<i64: 1, 256>}, {transform_indices = @transform_4, window_bounds = array<i64: 256, 256>}, {transform_indices = @transform_5, window_bounds = array<i64: 256, 256>}, {transform_indices = @transform_6, window_bounds = array<i64: 256, 256>}, {transform_indices = @transform_7, window_bounds = array<i64: 16, 256>}]} {
    %c0_i32 = arith.constant 0 : i32
    %0 = arith.cmpi eq, %arg1, %c0_i32 : i32
    %1 = arith.extui %0 : i1 to i32
    %c0_i32_0 = arith.constant 0 : i32
    %2 = arith.cmpi ne, %1, %c0_i32_0 : i32
    scf.if %2 {
      %c0_16 = arith.constant 0 : index
      %c0_17 = arith.constant 0 : index
      %24 = vector.load %arg3[%c0_16, %c0_17] : memref<16x256xf32, #tpu.memory_space<vmem>>, vector<16x256xf32>
      %c0_18 = arith.constant 0 : index
      %c0_19 = arith.constant 0 : index
      %25 = vector.load %arg2[%c0_18, %c0_19] : memref<16x256xbf16, #tpu.memory_space<vmem>>, vector<16x256xbf16>
      %c0_20 = arith.constant 0 : index
      %c0_21 = arith.constant 0 : index
      %26 = vector.load %arg4[%c0_20, %c0_21] : memref<256x256xbf16, #tpu.memory_space<vmem>>, vector<256x256xbf16>
      %cst_22 = arith.constant dense<0.000000e+00> : vector<16x256xf32>
      %27 = tpu.matmul %25, %26, %cst_22 {dimension_numbers = #tpu.dot_dimension_numbers<[1], [0], [0], [1], [0, 0, 1, 1], [], []>} : vector<16x256xbf16>, vector<256x256xbf16>, vector<16x256xf32> -> vector<16x256xf32>
      %28 = arith.addf %24, %27 : vector<16x256xf32>
      %c0_23 = arith.constant 0 : index
      %c0_24 = arith.constant 0 : index
      %29 = vector.load %arg10[%c0_23, %c0_24] : memref<16x256xf32, #tpu.memory_space<vmem>>, vector<16x256xf32>
      tpu.vector_store %arg10[%c0_23, %c0_24], %28 {strides = array<i32>} : memref<16x256xf32, #tpu.memory_space<vmem>>, vector<16x256xf32>,
      %30 = arith.mulf %28, %28 : vector<16x256xf32>
      %cst_25 = arith.constant dense<0.000000e+00> : vector<16xf32>
      %31 = vector.multi_reduction <add>, %30, %cst_25 [1] : vector<16x256xf32> to vector<16xf32>
      %32 = vector.shape_cast %31 : vector<16xf32> to vector<16x1xf32>
      %cst_26 = arith.constant 2.560000e+02 : f32
      %33 = vector.broadcast %cst_26 : f32 to vector<16x1xf32>
      %34 = arith.divf %32, %33 : vector<16x1xf32>
      %cst_27 = arith.constant 9.99999974E-6 : f32
      %35 = vector.broadcast %cst_27 : f32 to vector<16x1xf32>
      %36 = arith.addf %34, %35 : vector<16x1xf32>
      %37 = math.rsqrt %36 : vector<16x1xf32>
      %38 = vector.broadcast %37 : vector<16x1xf32> to vector<16x256xf32>
      %39 = arith.mulf %28, %38 : vector<16x256xf32>
      %c0_28 = arith.constant 0 : index
      %c0_29 = arith.constant 0 : index
      %40 = vector.load %arg5[%c0_28, %c0_29] : memref<1x256xf32, #tpu.memory_space<vmem>>, vector<1x256xf32>
      %41 = vector.broadcast %40 : vector<1x256xf32> to vector<16x256xf32>
      %42 = arith.mulf %39, %41 : vector<16x256xf32>
      %43 = arith.truncf %42 : vector<16x256xf32> to vector<16x256xbf16>
      %c0_30 = arith.constant 0 : index
      %c0_31 = arith.constant 0 : index
      %44 = vector.load %arg11[%c0_30, %c0_31] : memref<16x256xbf16, #tpu.memory_space<vmem>>, vector<16x256xbf16>
      tpu.vector_store %arg11[%c0_30, %c0_31], %43 {strides = array<i32>} : memref<16x256xbf16, #tpu.memory_space<vmem>>, vector<16x256xbf16>,
      %cst_32 = arith.constant 0.000000e+00 : f32
      %45 = vector.broadcast %cst_32 : f32 to vector<16x256xf32>
      %c0_33 = arith.constant 0 : index
      %c0_34 = arith.constant 0 : index
      %46 = vector.load %arg12[%c0_33, %c0_34] : memref<16x256xf32, #tpu.memory_space<vmem>>, vector<16x256xf32>
      tpu.vector_store %arg12[%c0_33, %c0_34], %45 {strides = array<i32>} : memref<16x256xf32, #tpu.memory_space<vmem>>, vector<16x256xf32>,
    } else {
    }
    %c0 = arith.constant 0 : index
    %c0_1 = arith.constant 0 : index
    %3 = vector.load %arg11[%c0, %c0_1] : memref<16x256xbf16, #tpu.memory_space<vmem>>, vector<16x256xbf16>
    %c0_2 = arith.constant 0 : index
    %c0_3 = arith.constant 0 : index
    %4 = vector.load %arg6[%c0_2, %c0_3] : memref<256x256xbf16, #tpu.memory_space<vmem>>, vector<256x256xbf16>
    %cst = arith.constant dense<0.000000e+00> : vector<16x256xf32>
    %5 = tpu.matmul %3, %4, %cst {dimension_numbers = #tpu.dot_dimension_numbers<[1], [0], [0], [1], [0, 0, 1, 1], [], []>} : vector<16x256xbf16>, vector<256x256xbf16>, vector<16x256xf32> -> vector<16x256xf32>
    %c0_4 = arith.constant 0 : index
    %c0_5 = arith.constant 0 : index
    %6 = vector.load %arg7[%c0_4, %c0_5] : memref<256x256xbf16, #tpu.memory_space<vmem>>, vector<256x256xbf16>
    %cst_6 = arith.constant dense<0.000000e+00> : vector<16x256xf32>
    %7 = tpu.matmul %3, %6, %cst_6 {dimension_numbers = #tpu.dot_dimension_numbers<[1], [0], [0], [1], [0, 0, 1, 1], [], []>} : vector<16x256xbf16>, vector<256x256xbf16>, vector<16x256xf32> -> vector<16x256xf32>
    %8 = arith.negf %5 : vector<16x256xf32>
    %9 = math.exp %8 : vector<16x256xf32>
    %cst_7 = arith.constant 1.000000e+00 : f32
    %10 = vector.broadcast %cst_7 : f32 to vector<16x256xf32>
    %11 = arith.addf %10, %9 : vector<16x256xf32>
    %12 = arith.divf %10, %11 : vector<16x256xf32>
    %13 = arith.mulf %5, %12 : vector<16x256xf32>
    %14 = arith.mulf %13, %7 : vector<16x256xf32>
    %c0_8 = arith.constant 0 : index
    %c0_9 = arith.constant 0 : index
    %15 = vector.load %arg12[%c0_8, %c0_9] : memref<16x256xf32, #tpu.memory_space<vmem>>, vector<16x256xf32>
    %16 = arith.truncf %14 : vector<16x256xf32> to vector<16x256xbf16>
    %c0_10 = arith.constant 0 : index
    %c0_11 = arith.constant 0 : index
    %17 = vector.load %arg8[%c0_10, %c0_11] : memref<256x256xbf16, #tpu.memory_space<vmem>>, vector<256x256xbf16>
    %cst_12 = arith.constant dense<0.000000e+00> : vector<16x256xf32>
    %18 = tpu.matmul %16, %17, %cst_12 {dimension_numbers = #tpu.dot_dimension_numbers<[1], [0], [0], [1], [0, 0, 1, 1], [], []>} : vector<16x256xbf16>, vector<256x256xbf16>, vector<16x256xf32> -> vector<16x256xf32>
    %19 = arith.addf %15, %18 : vector<16x256xf32>
    %c0_13 = arith.constant 0 : index
    %c0_14 = arith.constant 0 : index
    %20 = vector.load %arg12[%c0_13, %c0_14] : memref<16x256xf32, #tpu.memory_space<vmem>>, vector<16x256xf32>
    tpu.vector_store %arg12[%c0_13, %c0_14], %19 {strides = array<i32>} : memref<16x256xf32, #tpu.memory_space<vmem>>, vector<16x256xf32>,
    %c2_i32 = arith.constant 2 : i32
    %21 = arith.cmpi eq, %arg1, %c2_i32 : i32
    %22 = arith.extui %21 : i1 to i32
    %c0_i32_15 = arith.constant 0 : i32
    %23 = arith.cmpi ne, %22, %c0_i32_15 : i32
    scf.if %23 {
      %c0_16 = arith.constant 0 : index
      %c0_17 = arith.constant 0 : index
      %24 = vector.load %arg10[%c0_16, %c0_17] : memref<16x256xf32, #tpu.memory_space<vmem>>, vector<16x256xf32>
      %c0_18 = arith.constant 0 : index
      %c0_19 = arith.constant 0 : index
      %25 = vector.load %arg12[%c0_18, %c0_19] : memref<16x256xf32, #tpu.memory_space<vmem>>, vector<16x256xf32>
      %26 = arith.addf %24, %25 : vector<16x256xf32>
      %c0_20 = arith.constant 0 : index
      %c0_21 = arith.constant 0 : index
      %27 = vector.load %arg9[%c0_20, %c0_21] : memref<16x256xf32, #tpu.memory_space<vmem>>, vector<16x256xf32>
      tpu.vector_store %arg9[%c0_20, %c0_21], %26 {strides = array<i32>} : memref<16x256xf32, #tpu.memory_space<vmem>>, vector<16x256xf32>,
    } else {
    }
    return
  }
  func.func @transform_0(%arg0: i32, %arg1: i32) -> (i32, i32) {
    %c0_i32 = arith.constant 0 : i32
    %c0_i32_0 = arith.constant 0 : i32
    return %arg0, %c0_i32 : i32, i32
  }
  func.func @transform_1(%arg0: i32, %arg1: i32) -> (i32, i32) {
    %c0_i32 = arith.constant 0 : i32
    %c0_i32_0 = arith.constant 0 : i32
    return %arg0, %c0_i32 : i32, i32
  }
  func.func @transform_2(%arg0: i32, %arg1: i32) -> (i32, i32) {
    %c0_i32 = arith.constant 0 : i32
    %c0_i32_0 = arith.constant 0 : i32
    %c0_i32_1 = arith.constant 0 : i32
    return %c0_i32, %c0_i32_0 : i32, i32
  }
  func.func @transform_3(%arg0: i32, %arg1: i32) -> (i32, i32) {
    %c0_i32 = arith.constant 0 : i32
    %c0_i32_0 = arith.constant 0 : i32
    %c0_i32_1 = arith.constant 0 : i32
    return %c0_i32, %c0_i32_0 : i32, i32
  }
  func.func @transform_4(%arg0: i32, %arg1: i32) -> (i32, i32) {
    %c0_i32 = arith.constant 0 : i32
    %c0_i32_0 = arith.constant 0 : i32
    return %c0_i32, %arg1 : i32, i32
  }
  func.func @transform_5(%arg0: i32, %arg1: i32) -> (i32, i32) {
    %c0_i32 = arith.constant 0 : i32
    %c0_i32_0 = arith.constant 0 : i32
    return %c0_i32, %arg1 : i32, i32
  }
  func.func @transform_6(%arg0: i32, %arg1: i32) -> (i32, i32) {
    %c0_i32 = arith.constant 0 : i32
    %c0_i32_0 = arith.constant 0 : i32
    return %arg1, %c0_i32 : i32, i32
  }
  func.func @transform_7(%arg0: i32, %arg1: i32) -> (i32, i32) {
    %c0_i32 = arith.constant 0 : i32
    %c0_i32_0 = arith.constant 0 : i32
    return %arg0, %c0_i32 : i32, i32
  }
}

</mosaic_0001>

<llo_original>
// kernel: transformer_block.4
$region0: #{transformer_block.4}
  #allocation0 [shape = 'u32[]', space=smem, size = 0x4, offset = 0x4, fixed_abs, tag = 'smem constant byte address 0x4 - core index']
  #allocation1 [shape = 'u32[144,128]{1,0:T(1,128)}', space=vmem, size = 0x12000, scoped, tag = 'internal scratch']
  #allocation2 [shape = 'f32[2,8,1]{2,1,0:T(8,128)}', space=vmem, size = 0x2000, scoped, tag = 'scratch operand']
  #allocation3 [shape = 'f32[2,8,1]{2,1,0:T(8,128)}', space=vmem, size = 0x2000, scoped, tag = 'scratch operand']
  #allocation4 [shape = 'f32[2,8,64]{2,1,0:T(8,128)}', space=vmem, size = 0x2000, scoped, tag = 'scratch operand']
  %s0 = inlined_call_operand.vmem [shape: bf16[2,8,768], index: 0, kind: input, shape index: {}, may-alias: {0,1,2}]
  %s1 = inlined_call_operand.vmem [shape: bf16[2,8,768], index: 1, kind: input, shape index: {}, may-alias: {0,1,2}]
  %s2 = inlined_call_operand.vmem [shape: bf16[2,8,768], index: 2, kind: input, shape index: {}, may-alias: {0,1,2}]
  %s3 = inlined_call_operand.vmem [shape: bf16[2,8,256], index: 3, kind: output, shape index: {}]
  %s4 = sld [smem:[#allocation0]]
  $region57: #{transformer_block.4} parent=0
    _
  %s6 = ssub.s32 1, %s4
  %s7 = scalar_select 0, %s6, %s4
  loop: start=0, step=1, limit=6
  $region2: #{transformer_block.4} parent=0 // loop_pre_header
    _
  $region3: #{transformer_block.4} parent=0 // loop_header
    %s9 = sphi 0, %s13
    %p10 = scmp.ge.s32.totalorder %s9, 6
    %s16 = sphi 0, %s42
    %s17 = sphi 0, %s38
    %s18 = sphi 0, %s34
    %s19 = sphi 0, %s30
    %s20 = sphi 0, %s16
    %s21 = sphi 0, %s17
    %s22 = sphi 0, %s18
    %s23 = sphi 0, %s19
    %s24 = sphi 0, %s20
    %s25 = sphi 0, %s21
    %s26 = sphi 0, %s22
    %s27 = sphi 0, %s23
    %s49 = sphi 0, %s51
    %s52 = sphi 0, %s49
    %s53 = sphi 0, %s52
    %s69 = sphi 0, %s53
    %s85 = sphi 0, %s87
    %s88 = sphi 0, %s85
    %s89 = sphi 0, %s88
    %s105 = sphi 0, %s89
    %s121 = sphi 0, %s123
    %s124 = sphi 0, %s121
    %s125 = sphi 0, %s124
    %s141 = sphi 0, %s125
    %s151 = sphi 0, %s153
    %s154 = sphi 0, %s151
    %s155 = sphi 0, %s154
    %s171 = sphi 0, %s155
  $region4: #{transformer_block.4} parent=0 // loop_header_branch
    %12 = sbr.rel (%p10) target = $region8
  $region5: #{transformer_block.4} parent=0 // loop_body
    %s14 = ssub.s32 %s9, 1
    %s15 = ssub.s32 %s9, 2
    %s28 = sadd.s32 1, %s19
    %p29 = scmp.ge.s32.totalorder %s28, 1
    %s30 = scalar_select %p29, 0, %s28
    %s31 = sadd.s32 1, %s18
    %s32 = scalar_select %p29, %s31, %s18
    %p33 = scmp.ge.s32.totalorder %s32, 1
    %s34 = scalar_select %p33, 0, %s32
    %s35 = sadd.s32 1, %s17
    %s36 = scalar_select %p33, %s35, %s17
    %p37 = scmp.ge.s32.totalorder %s36, 2
    %s38 = scalar_select %p37, 0, %s36
    %s39 = sadd.s32 1, %s16
    %s40 = scalar_select %p37, %s39, %s16
    %p41 = scmp.ge.s32.totalorder %s40, 2
    %s42 = scalar_select %p41, 0, %s40
    %s43 = ssub.s32 %s16, %s42
    %s44 = ssub.s32 %s18, %s34
    %s45 = sor.u32 %s43, %s44
    %s46 = ssub.s32 %s17, %s38
    %s47 = sor.u32 %s45, %s46
    %p48 = scmp.eq.s32.totalorder %s47, 0
    %s50 = sadd.s32 %s49, 1
    %s51 = scalar_select %p48, %s49, %s50
    %p54 = pneg %p48
    %p55 = scmp.eq.s32.totalorder %s9, 3
    %p56 = por %p54, %p55
    %p57 = scmp.ne.s32.totalorder %s49, %s52
    %p58 = scmp.eq.s32.totalorder %s9, 0
    %p59 = por %p57, %p58
    %p60 = scmp.ne.s32.totalorder %s49, %s52
    %p61 = scmp.eq.s32.totalorder %s14, 3
    %p62 = por %p60, %p61
    %p63 = scmp.ne.s32.totalorder %s52, %s53
    %p64 = scmp.eq.s32.totalorder %s14, 0
    %p65 = por %p63, %p64
    %p66 = scmp.ne.s32.totalorder %s52, %s53
    %p67 = scmp.eq.s32.totalorder %s15, 3
    %p68 = por %p66, %p67
    %p70 = scmp.ne.s32.totalorder %s53, %s69
    %p71 = scmp.eq.s32.totalorder %s15, 0
    %p72 = por %p70, %p71
    %p73 = scmp.lt.s32.totalorder %s19, %s18
    %s74 = scalar_select %p73, %s19, %s18
    %s75 = sadd.s32 %s17, 2
    %p76 = scmp.lt.s32.totalorder %s30, %s34
    %s77 = scalar_select %p76, %s30, %s34
    %s78 = sadd.s32 %s38, 2
    %s79 = ssub.s32 %s16, %s42
    %s80 = ssub.s32 %s74, %s77
    %s81 = sor.u32 %s79, %s80
    %s82 = ssub.s32 %s75, %s78
    %s83 = sor.u32 %s81, %s82
    %p84 = scmp.eq.s32.totalorder %s83, 0
    %s86 = sadd.s32 %s85, 1
    %s87 = scalar_select %p84, %s85, %s86
    %p90 = pneg %p84
    %p91 = scmp.eq.s32.totalorder %s9, 3
    %p92 = por %p90, %p91
    %p93 = scmp.ne.s32.totalorder %s85, %s88
    %p94 = scmp.eq.s32.totalorder %s9, 0
    %p95 = por %p93, %p94
    %p96 = scmp.ne.s32.totalorder %s85, %s88
    %p97 = scmp.eq.s32.totalorder %s14, 3
    %p98 = por %p96, %p97
    %p99 = scmp.ne.s32.totalorder %s88, %s89
    %p100 = scmp.eq.s32.totalorder %s14, 0
    %p101 = por %p99, %p100
    %p102 = scmp.ne.s32.totalorder %s88, %s89
    %p103 = scmp.eq.s32.totalorder %s15, 3
    %p104 = por %p102, %p103
    %p106 = scmp.ne.s32.totalorder %s89, %s105
    %p107 = scmp.eq.s32.totalorder %s15, 0
    %p108 = por %p106, %p107
    %p109 = scmp.lt.s32.totalorder %s19, %s18
    %s110 = scalar_select %p109, %s19, %s18
    %s111 = sadd.s32 %s17, 4
    %p112 = scmp.lt.s32.totalorder %s30, %s34
    %s113 = scalar_select %p112, %s30, %s34
    %s114 = sadd.s32 %s38, 4
    %s115 = ssub.s32 %s16, %s42
    %s116 = ssub.s32 %s110, %s113
    %s117 = sor.u32 %s115, %s116
    %s118 = ssub.s32 %s111, %s114
    %s119 = sor.u32 %s117, %s118
    %p120 = scmp.eq.s32.totalorder %s119, 0
    %s122 = sadd.s32 %s121, 1
    %s123 = scalar_select %p120, %s121, %s122
    %p126 = pneg %p120
    %p127 = scmp.eq.s32.totalorder %s9, 3
    %p128 = por %p126, %p127
    %p129 = scmp.ne.s32.totalorder %s121, %s124
    %p130 = scmp.eq.s32.totalorder %s9, 0
    %p131 = por %p129, %p130
    %p132 = scmp.ne.s32.totalorder %s121, %s124
    %p133 = scmp.eq.s32.totalorder %s14, 3
    %p134 = por %p132, %p133
    %p135 = scmp.ne.s32.totalorder %s124, %s125
    %p136 = scmp.eq.s32.totalorder %s14, 0
    %p137 = por %p135, %p136
    %p138 = scmp.ne.s32.totalorder %s124, %s125
    %p139 = scmp.eq.s32.totalorder %s15, 3
    %p140 = por %p138, %p139
    %p142 = scmp.ne.s32.totalorder %s125, %s141
    %p143 = scmp.eq.s32.totalorder %s15, 0
    %p144 = por %p142, %p143
    %s145 = ssub.s32 %s16, %s42
    %s146 = ssub.s32 %s18, %s34
    %s147 = sor.u32 %s145, %s146
    %s148 = ssub.s32 %s17, %s38
    %s149 = sor.u32 %s147, %s148
    %p150 = scmp.eq.s32.totalorder %s149, 0
    %s152 = sadd.s32 %s151, 1
    %s153 = scalar_select %p150, %s151, %s152
    %p156 = pneg %p150
    %p157 = scmp.eq.s32.totalorder %s9, 3
    %p158 = por %p156, %p157
    %p159 = scmp.ne.s32.totalorder %s151, %s154
    %p160 = scmp.eq.s32.totalorder %s9, 0
    %p161 = por %p159, %p160
    %p162 = scmp.ne.s32.totalorder %s151, %s154
    %p163 = scmp.eq.s32.totalorder %s14, 3
    %p164 = por %p162, %p163
    %p165 = scmp.ne.s32.totalorder %s154, %s155
    %p166 = scmp.eq.s32.totalorder %s14, 0
    %p167 = por %p165, %p166
    %p168 = scmp.ne.s32.totalorder %s154, %s155
    %p169 = scmp.eq.s32.totalorder %s15, 3
    %p170 = por %p168, %p169
    %p172 = scmp.ne.s32.totalorder %s155, %s171
    %p173 = scmp.eq.s32.totalorder %s15, 0
    %p174 = por %p172, %p173
    %p175 = scmp.le.s32.totalorder 1, %s9
    %p176 = scmp.lt.s32.totalorder %s9, 5
    %p177 = pnand %p175, %p176
    %p178 = pneg %p177
    // Predicated region
    $region9: #{transformer_block.4} parent=5 // pred_check
      _
    $region10: #{transformer_block.4} parent=5 // pred_check_branch
      %180 = sbr.rel (%p177) target = $region12
    $region11: #{transformer_block.4} parent=5 // pred_region
      %s181 = ssub.s32 %s9, 1
    $region12: #{transformer_block.4} parent=5 // pred_fallthru
      _
    %p182 = scmp.lt.s32.totalorder %s9, 4
    // Predicated region
    $region13: #{transformer_block.4} parent=5 // pred_check
      %p183 = pneg %p182
    $region14: #{transformer_block.4} parent=5 // pred_check_branch
      %185 = sbr.rel (%p183) target = $region16
    $region15: #{transformer_block.4} parent=5 // pred_region
      // Predicated region
      $region17: #{transformer_block.4} parent=15 // pred_check
        %p186 = pneg %p59
      $region18: #{transformer_block.4} parent=15 // pred_check_branch
        %188 = sbr.rel (%p186) target = $region20
      $region19: #{transformer_block.4} parent=15 // pred_region
        %p189 = scmp.lt.s32.totalorder %s16, 1
        %s190 = scalar_select %p189, %s16, 1
        %p191 = scmp.lt.s32.totalorder %s18, 0
        %s192 = scalar_select %p191, %s18, 0
        %p193 = scmp.lt.s32.totalorder %s17, 5
        %s194 = scalar_select %p193, %s17, 5
        %s195 = smul.addr %s192, 6
        %s196 = sadd.s32 %s194, %s195
        %s197 = smul.addr %s190, 6
        %s198 = sadd.s32 %s196, %s197
        %s199 = smul.addr %s198, 4
        %s200 = scalar_lea.vmem %s0, %s199
      $region20: #{transformer_block.4} parent=15 // pred_fallthru
        _
      // Predicated region
      $region21: #{transformer_block.4} parent=15 // pred_check
        %p201 = pneg %p95
      $region22: #{transformer_block.4} parent=15 // pred_check_branch
        %203 = sbr.rel (%p201) target = $region24
      $region23: #{transformer_block.4} parent=15 // pred_region
        %p204 = scmp.lt.s32.totalorder %s19, %s18
        %s205 = scalar_select %p204, %s19, %s18
        %s206 = sadd.s32 %s17, 2
        %p207 = scmp.lt.s32.totalorder %s16, 1
        %s208 = scalar_select %p207, %s16, 1
        %p209 = scmp.lt.s32.totalorder %s205, 0
        %s210 = scalar_select %p209, %s205, 0
        %p211 = scmp.lt.s32.totalorder %s206, 5
        %s212 = scalar_select %p211, %s206, 5
        %s213 = smul.addr %s210, 6
        %s214 = sadd.s32 %s212, %s213
        %s215 = smul.addr %s208, 6
        %s216 = sadd.s32 %s214, %s215
        %s217 = smul.addr %s216, 4
        %s218 = scalar_lea.vmem %s1, %s217
        %p219 = scmp.lt.s32.totalorder %s19, %s18
        %s220 = scalar_select %p219, %s19, %s18
        %s221 = sadd.s32 %s17, 2
      $region24: #{transformer_block.4} parent=15 // pred_fallthru
        _
      // Predicated region
      $region25: #{transformer_block.4} parent=15 // pred_check
        %p222 = pneg %p131
      $region26: #{transformer_block.4} parent=15 // pred_check_branch
        %224 = sbr.rel (%p222) target = $region28
      $region27: #{transformer_block.4} parent=15 // pred_region
        %p225 = scmp.lt.s32.totalorder %s19, %s18
        %s226 = scalar_select %p225, %s19, %s18
        %s227 = sadd.s32 %s17, 4
        %p228 = scmp.lt.s32.totalorder %s16, 1
        %s229 = scalar_select %p228, %s16, 1
        %p230 = scmp.lt.s32.totalorder %s226, 0
        %s231 = scalar_select %p230, %s226, 0
        %p232 = scmp.lt.s32.totalorder %s227, 5
        %s233 = scalar_select %p232, %s227, 5
        %s234 = smul.addr %s231, 6
        %s235 = sadd.s32 %s233, %s234
        %s236 = smul.addr %s229, 6
        %s237 = sadd.s32 %s235, %s236
        %s238 = smul.addr %s237, 4
        %s239 = scalar_lea.vmem %s2, %s238
        %p240 = scmp.lt.s32.totalorder %s19, %s18
        %s241 = scalar_select %p240, %s19, %s18
        %s242 = sadd.s32 %s17, 4
      $region28: #{transformer_block.4} parent=15 // pred_fallthru
        _
    $region16: #{transformer_block.4} parent=5 // pred_fallthru
      _
    %p243 = scmp.le.s32.totalorder 1, %s9
    %p244 = scmp.lt.s32.totalorder %s9, 5
    %p245 = pnand %p243, %p244
    %p246 = pneg %p245
    // Predicated region
    $region29: #{transformer_block.4} parent=5 // pred_check
      _
    $region30: #{transformer_block.4} parent=5 // pred_check_branch
      %248 = sbr.rel (%p245) target = $region32
    $region31: #{transformer_block.4} parent=5 // pred_region
      %s249 = ssub.s32 %s9, 1
      %p250 = scmp.lt.s32.totalorder %s20, 1
      %s251 = scalar_select %p250, %s20, 1
      %p252 = scmp.lt.s32.totalorder %s22, 0
      %s253 = scalar_select %p252, %s22, 0
      %p254 = scmp.lt.s32.totalorder %s21, 5
      %s255 = scalar_select %p254, %s21, 5
      %s256 = smul.addr %s253, 6
      %s257 = sadd.s32 %s255, %s256
      %s258 = smul.addr %s251, 6
      %s259 = sadd.s32 %s257, %s258
      %s260 = smul.addr %s259, 4
      %s261 = scalar_lea.vmem %s0, %s260
      %p262 = pneg %p65
      %p263 = pneg %p62
      %p264 = scmp.lt.s32.totalorder %s23, %s22
      %s265 = scalar_select %p264, %s23, %s22
      %s266 = sadd.s32 %s21, 2
      %p267 = scmp.lt.s32.totalorder %s20, 1
      %s268 = scalar_select %p267, %s20, 1
      %p269 = scmp.lt.s32.totalorder %s265, 0
      %s270 = scalar_select %p269, %s265, 0
      %p271 = scmp.lt.s32.totalorder %s266, 5
      %s272 = scalar_select %p271, %s266, 5
      %s273 = smul.addr %s270, 6
      %s274 = sadd.s32 %s272, %s273
      %s275 = smul.addr %s268, 6
      %s276 = sadd.s32 %s274, %s275
      %s277 = smul.addr %s276, 4
      %s278 = scalar_lea.vmem %s1, %s277
      %p279 = pneg %p101
      %p280 = pneg %p98
      %p281 = scmp.lt.s32.totalorder %s23, %s22
      %s282 = scalar_select %p281, %s23, %s22
      %s283 = sadd.s32 %s21, 4
      %p284 = scmp.lt.s32.totalorder %s20, 1
      %s285 = scalar_select %p284, %s20, 1
      %p286 = scmp.lt.s32.totalorder %s282, 0
      %s287 = scalar_select %p286, %s282, 0
      %p288 = scmp.lt.s32.totalorder %s283, 5
      %s289 = scalar_select %p288, %s283, 5
      %s290 = smul.addr %s287, 6
      %s291 = sadd.s32 %s289, %s290
      %s292 = smul.addr %s285, 6
      %s293 = sadd.s32 %s291, %s292
      %s294 = smul.addr %s293, 4
      %s295 = scalar_lea.vmem %s2, %s294
      %p296 = pneg %p137
      %p297 = pneg %p134
      %p298 = pneg %p167
      %p299 = pneg %p164
      %p300 = scmp.lt.s32.totalorder %s20, 1
      %s301 = scalar_select %p300, %s20, 1
      %p302 = scmp.lt.s32.totalorder %s22, 0
      %s303 = scalar_select %p302, %s22, 0
      %p304 = scmp.lt.s32.totalorder %s21, 1
      %s305 = scalar_select %p304, %s21, 1
      %s306 = smul.addr %s303, 2
      %s307 = sadd.s32 %s305, %s306
      %s308 = smul.addr %s301, 2
      %s309 = sadd.s32 %s307, %s308
      %s310 = smul.addr %s309, 4
      %s311 = scalar_lea.vmem %s3, %s310
      %p312 = scmp.lt.s32.totalorder %s20, 1
      %s313 = scalar_select %p312, %s20, 1
      %p314 = scmp.lt.s32.totalorder %s22, 0
      %s315 = scalar_select %p314, %s22, 0
      %p316 = scmp.lt.s32.totalorder %s21, 5
      %s317 = scalar_select %p316, %s21, 5
      %s318 = smul.addr %s315, 6
      %s319 = sadd.s32 %s317, %s318
      %s320 = smul.addr %s313, 6
      %s321 = sadd.s32 %s319, %s320
      %s322 = smul.addr %s321, 4
      %s323 = scalar_lea.vmem %s0, %s322
      %p324 = scmp.lt.s32.totalorder %s23, %s22
      %s325 = scalar_select %p324, %s23, %s22
      %s326 = sadd.s32 %s21, 2
      %p327 = scmp.lt.s32.totalorder %s20, 1
      %s328 = scalar_select %p327, %s20, 1
      %p329 = scmp.lt.s32.totalorder %s325, 0
      %s330 = scalar_select %p329, %s325, 0
      %p331 = scmp.lt.s32.totalorder %s326, 5
      %s332 = scalar_select %p331, %s326, 5
      %s333 = smul.addr %s330, 6
      %s334 = sadd.s32 %s332, %s333
      %s335 = smul.addr %s328, 6
      %s336 = sadd.s32 %s334, %s335
      %s337 = smul.addr %s336, 4
      %s338 = scalar_lea.vmem %s1, %s337
      %p339 = scmp.lt.s32.totalorder %s23, %s22
      %s340 = scalar_select %p339, %s23, %s22
      %s341 = sadd.s32 %s21, 2
      %p342 = scmp.lt.s32.totalorder %s23, %s22
      %s343 = scalar_select %p342, %s23, %s22
      %s344 = sadd.s32 %s21, 4
      %p345 = scmp.lt.s32.totalorder %s20, 1
      %s346 = scalar_select %p345, %s20, 1
      %p347 = scmp.lt.s32.totalorder %s343, 0
      %s348 = scalar_select %p347, %s343, 0
      %p349 = scmp.lt.s32.totalorder %s344, 5
      %s350 = scalar_select %p349, %s344, 5
      %s351 = smul.addr %s348, 6
      %s352 = sadd.s32 %s350, %s351
      %s353 = smul.addr %s346, 6
      %s354 = sadd.s32 %s352, %s353
      %s355 = smul.addr %s354, 4
      %s356 = scalar_lea.vmem %s2, %s355
      %p357 = scmp.lt.s32.totalorder %s23, %s22
      %s358 = scalar_select %p357, %s23, %s22
      %s359 = sadd.s32 %s21, 4
      %p360 = scmp.lt.s32.totalorder %s20, 1
      %s361 = scalar_select %p360, %s20, 1
      %p362 = scmp.lt.s32.totalorder %s22, 0
      %s363 = scalar_select %p362, %s22, 0
      %p364 = scmp.lt.s32.totalorder %s21, 1
      %s365 = scalar_select %p364, %s21, 1
      %s366 = smul.addr %s363, 2
      %s367 = sadd.s32 %s365, %s366
      %s368 = smul.addr %s361, 2
      %s369 = sadd.s32 %s367, %s368
      %s370 = smul.addr %s369, 4
      %s371 = scalar_lea.vmem %s3, %s370
      %p373 = scmp.eq.s32.totalorder %s23, 0
      // Predicated region
      $region33: #{transformer_block.4} parent=31 // pred_check
        %p374 = pneg %p373
      $region34: #{transformer_block.4} parent=31 // pred_check_branch
        %376 = sbr.rel (%p374) target = $region36
      $region35: #{transformer_block.4} parent=31 // pred_region
        %vm377 = vcmask 7168
        %378 = vst.msk [vmem:[#allocation2] sm:$0xff] %vm377, -1e+30
        %379 = vst.msk [vmem:[#allocation2 + $0x8] sm:$0xff] %vm377, -1e+30
        %380 = vst.msk [vmem:[#allocation3] sm:$0xff] %vm377, 0.0
        %381 = vst.msk [vmem:[#allocation3 + $0x8] sm:$0xff] %vm377, 0.0
        %vm382 = vcmask 523264
        %383 = vst.msk [vmem:[#allocation4] sm:$0xff] %vm382, 0.0
        %384 = vst.msk [vmem:[#allocation4 + $0x8] sm:$0xff] %vm382, 0.0
      $region36: #{transformer_block.4} parent=31 // pred_fallthru
        _
      %s385 = smul.u32 %s23, 8
      %s386 = smul.u32 %s22, 8
      %s387 = sadd.s32 %s386, 7
      %p388 = scmp.le.s32.totalorder %s385, %s387
      // Predicated region
      $region37: #{transformer_block.4} parent=31 // pred_check
        %p389 = pneg %p388
      $region38: #{transformer_block.4} parent=31 // pred_check_branch
        %391 = sbr.rel (%p389) target = $region40
      $region39: #{transformer_block.4} parent=31 // pred_region
        %v392 = vld [vmem:[%s323] sm:$0xf]
        %v393 = vld [vmem:[%s338] sm:$0xf]
        %v394 = vld [vmem:[%s356] sm:$0xf]
        %v395 = vlaneseq
        %v396 = vshrl.u32 %v395, 7
        %v397 = vstv %s386
        %v398 = vadd.s32 %v397, %v396
        %v399 = vlaneseq
        %v400 = vand.u32 %v399, 127
        %v401 = vstv %s385
        %v402 = vadd.s32 %v401, %v400
        %vm403 = vcmp.le.s32.totalorder %v402, %v398
        %v404 = vsel %vm403, 0.0, -1e+30
        %vm405 = vcmask 523264
        %v407 = vsel %vm405, %v392, 0
        %v410 = vsel %vm405, %v393, 0
        %412 = vmatprep.subr.bf16.mxu0 0
        %413 = vmatpush1.bf16.xpose.msra.mxu0 0
        %414 = vmatprep.subr.bf16.mxu0 0
        %415 = vmatpush1.bf16.xpose.msra.mxu0 0
        %416 = vmatprep.subr.bf16.mxu0 0
        %417 = vmatpush1.bf16.xpose.msra.mxu0 0
        %418 = vmatprep.subr.bf16.mxu0 0
        %419 = vmatpush1.bf16.xpose.msra.mxu0 0
        %420 = vmatprep.subr.bf16.mxu0 0
        %421 = vmatpush1.bf16.xpose.msra.mxu0 0
        %422 = vmatprep.subr.bf16.mxu0 0
        %423 = vmatpush1.bf16.xpose.msra.mxu0 0
        %424 = vmatprep.subr.bf16.mxu0 0
        %425 = vmatpush1.bf16.xpose.msra.mxu0 0
        %426 = vmatprep.subr.bf16.mxu0 0
        %427 = vmatpush1.bf16.xpose.msra.mxu0 %v410
        %428 = vmatprep.subr.bf16.mxu0 0
        %429 = vmatpush2.bf16.xpose.msra.mxu0 0
        %430 = vmatprep.subr.bf16.mxu0 0
        %431 = vmatpush2.bf16.xpose.msra.mxu0 0
        %432 = vmatprep.subr.bf16.mxu0 0
        %433 = vmatpush2.bf16.xpose.msra.mxu0 0
        %434 = vmatprep.subr.bf16.mxu0 0
        %435 = vmatpush2.bf16.xpose.msra.mxu0 0
        %436 = vmatprep.subr.bf16.mxu0 0
        %437 = vmatpush2.bf16.xpose.msra.mxu0 0
        %438 = vmatprep.subr.bf16.mxu0 0
        %439 = vmatpush2.bf16.xpose.msra.mxu0 0
        %440 = vmatprep.subr.bf16.mxu0 0
        %441 = vmatpush2.bf16.xpose.msra.mxu0 0
        %442 = vmatprep.subr.bf16.mxu0 0
        %443 = vmatpush2.bf16.xpose.msra.mxu0 0
        %444 = vmatprep.mubr.bf16.mxu0 0
        %445 = vmatmul.mubr.bf16.gmra.mxu0 %v407
        %v446 = vpop.f32.mrf.mxu0
        %v447 = vadd.f32 %v404, %v446
        %v448 = vpop.f32.mrf.mxu0
        %v449 = vpop.f32.mrf.mxu0
        %v450 = vpop.f32.mrf.mxu0
        %451 = vdwg.mxu0
        %v452 = vld [vmem:[#allocation2] sm:$0xff]
        %vm453 = vcmask 64512
        %v454 = vsel %vm453, %v447, -inf
        %455 = vmax.xlane.f32.xlu0 %v454
        %v456 = vpop.xlane.xlu0 %455
        %v457 = vmax.f32 %v452, %v456
        %v458 = vsub.f32 %v452, %v457
        %v459 = vmul.f32 %v458, 1.442695
        %v460 = vpow.pop %v459
        %462 = vset.pattern.permute.xlu0 0
        %463 = vperm.xlu0 %462, %v457
        %v464 = vpop.permute.xlu0 %463
        %v466 = vsub.f32 %v447, %v464
        %v467 = vmul.f32 %v466, 1.442695
        %v468 = vpow.pop %v467
        %v469 = vld [vmem:[#allocation3] sm:$0xff]
        %v470 = vmul.f32 %v460, %v469
        %v471 = vsel %vm453, %v468, 0.0
        %472 = vadd.xlane.f32.xlu0 %v471
        %v473 = vpop.xlane.xlu0 %472
        %v474 = vadd.f32 %v470, %v473
        %vm475 = vcmask 7168
        %476 = vst.msk [vmem:[#allocation3] sm:$0xff] %vm475, %v474
        %v477 = vld [vmem:[#allocation4] sm:$0xff]
        %479 = vset.pattern.permute.xlu0 0
        %480 = vperm.xlu0 %479, %v460
        %v481 = vpop.permute.xlu0 %480
        %v483 = vmul.f32 %v481, %v477
        %v484 = vpack.c.bf16 %v468, %v468
        %v486 = vsel %vm453, %v484, 0
        %vm488 = vcmask 1043456
        %v490 = vsel %vm488, %v394, 0
        %492 = vmatprep.subr.bf16.mxu0 0
        %493 = vmatpush1.bf16.msra.mxu0 0
        %494 = vmatprep.subr.bf16.mxu0 0
        %495 = vmatpush1.bf16.msra.mxu0 0
        %496 = vmatprep.subr.bf16.mxu0 0
        %497 = vmatpush1.bf16.msra.mxu0 0
        %498 = vmatprep.subr.bf16.mxu0 0
        %499 = vmatpush1.bf16.msra.mxu0 0
        %500 = vmatprep.subr.bf16.mxu0 0
        %501 = vmatpush1.bf16.msra.mxu0 0
        %502 = vmatprep.subr.bf16.mxu0 0
        %503 = vmatpush1.bf16.msra.mxu0 0
        %504 = vmatprep.subr.bf16.mxu0 0
        %505 = vmatpush1.bf16.msra.mxu0 0
        %506 = vmatprep.subr.bf16.mxu0 0
        %507 = vmatpush1.bf16.msra.mxu0 %v490
        %508 = vmatprep.subr.bf16.mxu0 0
        %509 = vmatpush2.bf16.msra.mxu0 0
        %510 = vmatprep.subr.bf16.mxu0 0
        %511 = vmatpush2.bf16.msra.mxu0 0
        %512 = vmatprep.subr.bf16.mxu0 0
        %513 = vmatpush2.bf16.msra.mxu0 0
        %514 = vmatprep.subr.bf16.mxu0 0
        %515 = vmatpush2.bf16.msra.mxu0 0
        %516 = vmatprep.subr.bf16.mxu0 0
        %517 = vmatpush2.bf16.msra.mxu0 0
        %518 = vmatprep.subr.bf16.mxu0 0
        %519 = vmatpush2.bf16.msra.mxu0 0
        %520 = vmatprep.subr.bf16.mxu0 0
        %521 = vmatpush2.bf16.msra.mxu0 0
        %522 = vmatprep.subr.bf16.mxu0 0
        %523 = vmatpush2.bf16.msra.mxu0 0
        %524 = vmatprep.mubr.bf16.mxu0 0
        %525 = vmatmul.mubr.bf16.gmra.mxu0 %v486
        %v526 = vpop.f32.mrf.mxu0
        %v527 = vadd.f32 0.0, %v526
        %v528 = vpop.f32.mrf.mxu0
        %v529 = vpop.f32.mrf.mxu0
        %v530 = vpop.f32.mrf.mxu0
        %531 = vdwg.mxu0
        %v532 = vadd.f32 %v483, %v527
        %533 = vst.msk [vmem:[#allocation4] sm:$0xff] %vm405, %v532
        %534 = vst.msk [vmem:[#allocation2] sm:$0xff] %vm475, %v457
        %v536 = vunpack.c.l.b16 %v392
        %v537 = vpack.c.b16 %v536, %v536
        %538 = vrot.lane.b32.xlu0 %v537, 64
        %v539 = vpop.permute.xlu0 %538
        %v541 = vunpack.c.l.b16 %v393
        %v542 = vpack.c.b16 %v541, %v541
        %543 = vrot.lane.b32.xlu0 %v542, 64
        %v544 = vpop.permute.xlu0 %543
        %v546 = vsel %vm405, %v539, 0
        %v549 = vsel %vm405, %v544, 0
        %551 = vmatprep.subr.bf16.mxu0 0
        %552 = vmatpush1.bf16.xpose.msra.mxu0 0
        %553 = vmatprep.subr.bf16.mxu0 0
        %554 = vmatpush1.bf16.xpose.msra.mxu0 0
        %555 = vmatprep.subr.bf16.mxu0 0
        %556 = vmatpush1.bf16.xpose.msra.mxu0 0
        %557 = vmatprep.subr.bf16.mxu0 0
        %558 = vmatpush1.bf16.xpose.msra.mxu0 0
        %559 = vmatprep.subr.bf16.mxu0 0
        %560 = vmatpush1.bf16.xpose.msra.mxu0 0
        %561 = vmatprep.subr.bf16.mxu0 0
        %562 = vmatpush1.bf16.xpose.msra.mxu0 0
        %563 = vmatprep.subr.bf16.mxu0 0
        %564 = vmatpush1.bf16.xpose.msra.mxu0 0
        %565 = vmatprep.subr.bf16.mxu0 0
        %566 = vmatpush1.bf16.xpose.msra.mxu0 %v549
        %567 = vmatprep.subr.bf16.mxu0 0
        %568 = vmatpush2.bf16.xpose.msra.mxu0 0
        %569 = vmatprep.subr.bf16.mxu0 0
        %570 = vmatpush2.bf16.xpose.msra.mxu0 0
        %571 = vmatprep.subr.bf16.mxu0 0
        %572 = vmatpush2.bf16.xpose.msra.mxu0 0
        %573 = vmatprep.subr.bf16.mxu0 0
        %574 = vmatpush2.bf16.xpose.msra.mxu0 0
        %575 = vmatprep.subr.bf16.mxu0 0
        %576 = vmatpush2.bf16.xpose.msra.mxu0 0
        %577 = vmatprep.subr.bf16.mxu0 0
        %578 = vmatpush2.bf16.xpose.msra.mxu0 0
        %579 = vmatprep.subr.bf16.mxu0 0
        %580 = vmatpush2.bf16.xpose.msra.mxu0 0
        %581 = vmatprep.subr.bf16.mxu0 0
        %582 = vmatpush2.bf16.xpose.msra.mxu0 0
        %583 = vmatprep.mubr.bf16.mxu0 0
        %584 = vmatmul.mubr.bf16.gmra.mxu0 %v546
        %v585 = vpop.f32.mrf.mxu0
        %v586 = vadd.f32 %v404, %v585
        %v587 = vpop.f32.mrf.mxu0
        %v588 = vpop.f32.mrf.mxu0
        %v589 = vpop.f32.mrf.mxu0
        %590 = vdwg.mxu0
        %s591 = scalar_lea.vmem [#allocation2], 8
        %v592 = vld [vmem:[%s591] sm:$0xff]
        %v593 = vsel %vm453, %v586, -inf
        %594 = vmax.xlane.f32.xlu0 %v593
        %v595 = vpop.xlane.xlu0 %594
        %v596 = vmax.f32 %v592, %v595
        %v597 = vsub.f32 %v592, %v596
        %v598 = vmul.f32 %v597, 1.442695
        %v599 = vpow.pop %v598
        %601 = vset.pattern.permute.xlu0 0
        %602 = vperm.xlu0 %601, %v596
        %v603 = vpop.permute.xlu0 %602
        %v605 = vsub.f32 %v586, %v603
        %v606 = vmul.f32 %v605, 1.442695
        %v607 = vpow.pop %v606
        %s608 = scalar_lea.vmem [#allocation3], 8
        %v609 = vld [vmem:[%s608] sm:$0xff]
        %v610 = vmul.f32 %v599, %v609
        %v611 = vsel %vm453, %v607, 0.0
        %612 = vadd.xlane.f32.xlu0 %v611
        %v613 = vpop.xlane.xlu0 %612
        %v614 = vadd.f32 %v610, %v613
        %615 = vst.msk [vmem:[%s608] sm:$0xff] %vm475, %v614
        %s616 = scalar_lea.vmem [#allocation4], 8
        %v617 = vld [vmem:[%s616] sm:$0xff]
        %619 = vset.pattern.permute.xlu0 0
        %620 = vperm.xlu0 %619, %v599
        %v621 = vpop.permute.xlu0 %620
        %v623 = vmul.f32 %v621, %v617
        %v624 = vpack.c.bf16 %v607, %v607
        %v626 = vunpack.c.l.b16 %v394
        %v627 = vpack.c.b16 %v626, %v626
        %628 = vrot.lane.b32.xlu0 %v627, 64
        %v629 = vpop.permute.xlu0 %628
        %v631 = vsel %vm453, %v624, 0
        %v634 = vsel %vm488, %v629, 0
        %636 = vmatprep.subr.bf16.mxu0 0
        %637 = vmatpush1.bf16.msra.mxu0 0
        %638 = vmatprep.subr.bf16.mxu0 0
        %639 = vmatpush1.bf16.msra.mxu0 0
        %640 = vmatprep.subr.bf16.mxu0 0
        %641 = vmatpush1.bf16.msra.mxu0 0
        %642 = vmatprep.subr.bf16.mxu0 0
        %643 = vmatpush1.bf16.msra.mxu0 0
        %644 = vmatprep.subr.bf16.mxu0 0
        %645 = vmatpush1.bf16.msra.mxu0 0
        %646 = vmatprep.subr.bf16.mxu0 0
        %647 = vmatpush1.bf16.msra.mxu0 0
        %648 = vmatprep.subr.bf16.mxu0 0
        %649 = vmatpush1.bf16.msra.mxu0 0
        %650 = vmatprep.subr.bf16.mxu0 0
        %651 = vmatpush1.bf16.msra.mxu0 %v634
        %652 = vmatprep.subr.bf16.mxu0 0
        %653 = vmatpush2.bf16.msra.mxu0 0
        %654 = vmatprep.subr.bf16.mxu0 0
        %655 = vmatpush2.bf16.msra.mxu0 0
        %656 = vmatprep.subr.bf16.mxu0 0
        %657 = vmatpush2.bf16.msra.mxu0 0
        %658 = vmatprep.subr.bf16.mxu0 0
        %659 = vmatpush2.bf16.msra.mxu0 0
        %660 = vmatprep.subr.bf16.mxu0 0
        %661 = vmatpush2.bf16.msra.mxu0 0
        %662 = vmatprep.subr.bf16.mxu0 0
        %663 = vmatpush2.bf16.msra.mxu0 0
        %664 = vmatprep.subr.bf16.mxu0 0
        %665 = vmatpush2.bf16.msra.mxu0 0
        %666 = vmatprep.subr.bf16.mxu0 0
        %667 = vmatpush2.bf16.msra.mxu0 0
        %668 = vmatprep.mubr.bf16.mxu0 0
        %669 = vmatmul.mubr.bf16.gmra.mxu0 %v631
        %v670 = vpop.f32.mrf.mxu0
        %v671 = vadd.f32 0.0, %v670
        %v672 = vpop.f32.mrf.mxu0
        %v673 = vpop.f32.mrf.mxu0
        %v674 = vpop.f32.mrf.mxu0
        %675 = vdwg.mxu0
        %v676 = vadd.f32 %v623, %v671
        %677 = vst.msk [vmem:[%s616] sm:$0xff] %vm405, %v676
        %678 = vst.msk [vmem:[%s591] sm:$0xff] %vm475, %v596
      $region40: #{transformer_block.4} parent=31 // pred_fallthru
        _
      // Predicated region
      $region41: #{transformer_block.4} parent=31 // pred_check
        %p679 = pneg %p373
      $region42: #{transformer_block.4} parent=31 // pred_check_branch
        %681 = sbr.rel (%p679) target = $region44
      $region43: #{transformer_block.4} parent=31 // pred_region
        %v682 = vld [vmem:[#allocation4] sm:$0xff]
        %v683 = vld [vmem:[#allocation3] sm:$0xff]
        %685 = vset.pattern.permute.xlu0 0
        %686 = vperm.xlu0 %685, %v683
        %v687 = vpop.permute.xlu0 %686
        %v689 = vrcp.pop %v687
        %v690 = vmul.f32 %v682, %v689
        %s691 = scalar_lea.vmem [#allocation4], 8
        %v692 = vld [vmem:[%s691] sm:$0xff]
        %s693 = scalar_lea.vmem [#allocation3], 8
        %v694 = vld [vmem:[%s693] sm:$0xff]
        %696 = vset.pattern.permute.xlu0 0
        %697 = vperm.xlu0 %696, %v694
        %v698 = vpop.permute.xlu0 %697
        %v700 = vrcp.pop %v698
        %v701 = vmul.f32 %v692, %v700
        %703 = vrot.lane.b32.xlu0 %v701, 64
        %v704 = vpop.permute.xlu0 %703
        %vm706 = vcmask 523264
        %v707 = vsel %vm706, %v690, %v704
        %v708 = vpack.c.bf16 %v707, %v707
        %709 = vst [vmem:[%s371] sm:$0xf] %v708
      $region44: #{transformer_block.4} parent=31 // pred_fallthru
        _
      %p710 = scmp.lt.s32.totalorder %s20, 1
      %s711 = scalar_select %p710, %s20, 1
      %p712 = scmp.lt.s32.totalorder %s22, 0
      %s713 = scalar_select %p712, %s22, 0
      %p714 = scmp.lt.s32.totalorder %s21, 1
      %s715 = scalar_select %p714, %s21, 1
      %s716 = smul.addr %s713, 2
      %s717 = sadd.s32 %s715, %s716
      %s718 = smul.addr %s711, 2
      %s719 = sadd.s32 %s717, %s718
      %s720 = smul.addr %s719, 4
      %s721 = scalar_lea.vmem %s3, %s720
      // Predicated region
      $region45: #{transformer_block.4} parent=31 // pred_check
        %p722 = pneg %p164
      $region46: #{transformer_block.4} parent=31 // pred_check_branch
        %724 = sbr.rel (%p722) target = $region48
      $region47: #{transformer_block.4} parent=31 // pred_region
        _
      $region48: #{transformer_block.4} parent=31 // pred_fallthru
        _
    $region32: #{transformer_block.4} parent=5 // pred_fallthru
      _
    %p725 = scmp.le.s32.totalorder 2, %s9
    // Predicated region
    $region49: #{transformer_block.4} parent=5 // pred_check
      %p726 = pneg %p725
    $region50: #{transformer_block.4} parent=5 // pred_check_branch
      %728 = sbr.rel (%p726) target = $region52
    $region51: #{transformer_block.4} parent=5 // pred_region
      %s729 = ssub.s32 %s9, 2
      // Predicated region
      $region53: #{transformer_block.4} parent=51 // pred_check
        %p730 = pneg %p170
      $region54: #{transformer_block.4} parent=51 // pred_check_branch
        %732 = sbr.rel (%p730) target = $region56
      $region55: #{transformer_block.4} parent=51 // pred_region
        %p733 = scmp.lt.s32.totalorder %s24, 1
        %s734 = scalar_select %p733, %s24, 1
        %p735 = scmp.lt.s32.totalorder %s26, 0
        %s736 = scalar_select %p735, %s26, 0
        %p737 = scmp.lt.s32.totalorder %s25, 1
        %s738 = scalar_select %p737, %s25, 1
        %s739 = smul.addr %s736, 2
        %s740 = sadd.s32 %s738, %s739
        %s741 = smul.addr %s734, 2
        %s742 = sadd.s32 %s740, %s741
        %s743 = smul.addr %s742, 4
        %s744 = scalar_lea.vmem %s3, %s743
      $region56: #{transformer_block.4} parent=51 // pred_fallthru
        _
    $region52: #{transformer_block.4} parent=5 // pred_fallthru
      _
  $region6: #{transformer_block.4} parent=0 // loop_footer
    %s13 = sadd.s32 1, %s9
  $region7: #{transformer_block.4} parent=0 // loop_footer_branch
    %8 = sbr.rel target = $region3
  $region8: #{transformer_block.4} parent=0 // loop_exit
    _

// kernel: transformer_block.3
$region0: #{transformer_block.3}
  #allocation0 [shape = 'u32[]', space=smem, size = 0x4, offset = 0x4, fixed_abs, tag = 'smem constant byte address 0x4 - core index']
  #allocation1 [shape = 'u32[144,128]{1,0:T(1,128)}', space=vmem, size = 0x12000, scoped, tag = 'internal scratch']
  #allocation2 [shape = 'bf16[16,256]{1,0:T(8,128)(2,1)}', space=vmem, size = 0x2000, scoped, tag = 'scratch operand']
  %s0 = inlined_call_operand.hbm [shape: f32[16,256], index: 0, kind: input, shape index: {}]
  %s1 = inlined_call_operand.hbm [shape: f32[1,256], index: 1, kind: input, shape index: {}]
  %s2 = inlined_call_operand.hbm [shape: bf16[256,768], index: 2, kind: input, shape index: {}]
  %s3 = inlined_call_operand.hbm [shape: f32[16,32], index: 3, kind: input, shape index: {}]
  %s4 = inlined_call_operand.hbm [shape: f32[16,32], index: 4, kind: input, shape index: {}]
  %s5 = inlined_call_operand.vmem [shape: bf16[16,768], index: 5, kind: output, shape index: {}]
  %s6 = sld [smem:[#allocation0]]
  $region119: #{transformer_block.3} parent=0
    _
  %s8 = ssub.s32 1, %s6
  %s9 = scalar_select 0, %s8, %s6
  $region1: #{transformer_block.3} parent=0
    #allocation3 [shape = 'u8[16384]{0}', space=vmem, size = 0x4000, scoped, tag = 'input window, operand 0, single buffered']
    #allocation4 [shape = 's32[2]{0}', space=sflag, size = 0x8, scoped, tag = 'scoped memory for transformer_block.3']
    #allocation5 [shape = 'u8[1024]{0}', space=vmem, size = 0x400, scoped, tag = 'input window, operand 1, single buffered']
    #allocation6 [shape = 's32[1]{0}', space=sflag, size = 0x4, scoped, tag = 'scoped memory for transformer_block.3']
    #allocation7 [shape = 'u8[262144]{0}', space=vmem, size = 0x40000, scoped, tag = 'input window, operand 2']
    #allocation8 [shape = 'u8[8192]{0}', space=vmem, size = 0x2000, scoped, tag = 'input window, operand 3, single buffered']
    #allocation9 [shape = 'u8[8192]{0}', space=vmem, size = 0x2000, scoped, tag = 'input window, operand 4, single buffered']
    #allocation10 [shape = 's32[1]{0}', space=sflag, size = 0x4, scoped, tag = 'scoped memory for transformer_block.3']
    #allocation11 [shape = 'u8[16384]{0}', space=vmem, size = 0x4000, scoped, tag = 'output window, operand 0']
    %10 = vsyncpa [#allocation4], 0
    %11 = vsyncpa [#allocation6], 0
    %12 = vsyncpa [#allocation10], 0
    loop: start=0, step=1, limit=5
    $region2: #{transformer_block.3} parent=1 // loop_pre_header
      _
    $region3: #{transformer_block.3} parent=1 // loop_header
      %s14 = sphi 0, %s18
      %p15 = scmp.ge.s32.totalorder %s14, 5
      %s21 = sphi 0, %s33
      %s22 = sphi 0, %s29
      %s23 = sphi 0, %s21
      %s24 = sphi 0, %s22
      %s25 = sphi 0, %s23
      %s26 = sphi 0, %s24
      %s36 = sphi 0, %s38
      %s39 = sphi 0, %s36
      %s40 = sphi 0, %s39
      %s56 = sphi 0, %s40
      %s60 = sphi 0, %s60
      %s62 = sphi 0, %s60
      %s63 = sphi 0, %s62
      %s77 = sphi 0, %s63
      %s83 = sphi 0, %s85
      %s86 = sphi 0, %s83
      %s87 = sphi 0, %s86
      %s103 = sphi 0, %s87
      %s109 = sphi 0, %s111
      %s112 = sphi 0, %s109
      %s113 = sphi 0, %s112
      %s129 = sphi 0, %s113
      %s135 = sphi 0, %s137
      %s138 = sphi 0, %s135
      %s139 = sphi 0, %s138
      %s155 = sphi 0, %s139
      %s163 = sphi 0, %s165
      %s166 = sphi 0, %s163
      %s167 = sphi 0, %s166
      %s183 = sphi 0, %s167
    $region4: #{transformer_block.3} parent=1 // loop_header_branch
      %17 = sbr.rel (%p15) target = $region8
    $region5: #{transformer_block.3} parent=1 // loop_body
      %s19 = ssub.s32 %s14, 1
      %s20 = ssub.s32 %s14, 2
      %s27 = sadd.s32 1, %s22
      %p28 = scmp.ge.s32.totalorder %s27, 3
      %s29 = scalar_select %p28, 0, %s27
      %s30 = sadd.s32 1, %s21
      %s31 = scalar_select %p28, %s30, %s21
      %p32 = scmp.ge.s32.totalorder %s31, 1
      %s33 = scalar_select %p32, 0, %s31
      %s34 = ssub.s32 %s21, %s33
      %p35 = scmp.eq.s32.totalorder %s34, 0
      %s37 = sadd.s32 %s36, 1
      %s38 = scalar_select %p35, %s36, %s37
      %p41 = pneg %p35
      %p42 = scmp.eq.s32.totalorder %s14, 2
      %p43 = por %p41, %p42
      %p44 = scmp.ne.s32.totalorder %s36, %s39
      %p45 = scmp.eq.s32.totalorder %s14, 0
      %p46 = por %p44, %p45
      %p47 = scmp.ne.s32.totalorder %s36, %s39
      %p48 = scmp.eq.s32.totalorder %s19, 2
      %p49 = por %p47, %p48
      %p50 = scmp.ne.s32.totalorder %s39, %s40
      %p51 = scmp.eq.s32.totalorder %s19, 0
      %p52 = por %p50, %p51
      %p53 = scmp.ne.s32.totalorder %s39, %s40
      %p54 = scmp.eq.s32.totalorder %s20, 2
      %p55 = por %p53, %p54
      %p57 = scmp.ne.s32.totalorder %s40, %s56
      %p58 = scmp.eq.s32.totalorder %s20, 0
      %p59 = por %p57, %p58
      %s61 = sadd.s32 %s60, 1
      %p64 = scmp.eq.s32.totalorder %s14, 2
      %p65 = scmp.ne.s32.totalorder %s60, %s62
      %p66 = scmp.eq.s32.totalorder %s14, 0
      %p67 = por %p65, %p66
      %p68 = scmp.ne.s32.totalorder %s60, %s62
      %p69 = scmp.eq.s32.totalorder %s19, 2
      %p70 = por %p68, %p69
      %p71 = scmp.ne.s32.totalorder %s62, %s63
      %p72 = scmp.eq.s32.totalorder %s19, 0
      %p73 = por %p71, %p72
      %p74 = scmp.ne.s32.totalorder %s62, %s63
      %p75 = scmp.eq.s32.totalorder %s20, 2
      %p76 = por %p74, %p75
      %p78 = scmp.ne.s32.totalorder %s63, %s77
      %p79 = scmp.eq.s32.totalorder %s20, 0
      %p80 = por %p78, %p79
      %s81 = ssub.s32 %s22, %s29
      %p82 = scmp.eq.s32.totalorder %s81, 0
      %s84 = sadd.s32 %s83, 1
      %s85 = scalar_select %p82, %s83, %s84
      %p88 = pneg %p82
      %p89 = scmp.eq.s32.totalorder %s14, 2
      %p90 = por %p88, %p89
      %p91 = scmp.ne.s32.totalorder %s83, %s86
      %p92 = scmp.eq.s32.totalorder %s14, 0
      %p93 = por %p91, %p92
      %p94 = scmp.ne.s32.totalorder %s83, %s86
      %p95 = scmp.eq.s32.totalorder %s19, 2
      %p96 = por %p94, %p95
      %p97 = scmp.ne.s32.totalorder %s86, %s87
      %p98 = scmp.eq.s32.totalorder %s19, 0
      %p99 = por %p97, %p98
      %p100 = scmp.ne.s32.totalorder %s86, %s87
      %p101 = scmp.eq.s32.totalorder %s20, 2
      %p102 = por %p100, %p101
      %p104 = scmp.ne.s32.totalorder %s87, %s103
      %p105 = scmp.eq.s32.totalorder %s20, 0
      %p106 = por %p104, %p105
      %s107 = ssub.s32 %s21, %s33
      %p108 = scmp.eq.s32.totalorder %s107, 0
      %s110 = sadd.s32 %s109, 1
      %s111 = scalar_select %p108, %s109, %s110
      %p114 = pneg %p108
      %p115 = scmp.eq.s32.totalorder %s14, 2
      %p116 = por %p114, %p115
      %p117 = scmp.ne.s32.totalorder %s109, %s112
      %p118 = scmp.eq.s32.totalorder %s14, 0
      %p119 = por %p117, %p118
      %p120 = scmp.ne.s32.totalorder %s109, %s112
      %p121 = scmp.eq.s32.totalorder %s19, 2
      %p122 = por %p120, %p121
      %p123 = scmp.ne.s32.totalorder %s112, %s113
      %p124 = scmp.eq.s32.totalorder %s19, 0
      %p125 = por %p123, %p124
      %p126 = scmp.ne.s32.totalorder %s112, %s113
      %p127 = scmp.eq.s32.totalorder %s20, 2
      %p128 = por %p126, %p127
      %p130 = scmp.ne.s32.totalorder %s113, %s129
      %p131 = scmp.eq.s32.totalorder %s20, 0
      %p132 = por %p130, %p131
      %s133 = ssub.s32 %s21, %s33
      %p134 = scmp.eq.s32.totalorder %s133, 0
      %s136 = sadd.s32 %s135, 1
      %s137 = scalar_select %p134, %s135, %s136
      %p140 = pneg %p134
      %p141 = scmp.eq.s32.totalorder %s14, 2
      %p142 = por %p140, %p141
      %p143 = scmp.ne.s32.totalorder %s135, %s138
      %p144 = scmp.eq.s32.totalorder %s14, 0
      %p145 = por %p143, %p144
      %p146 = scmp.ne.s32.totalorder %s135, %s138
      %p147 = scmp.eq.s32.totalorder %s19, 2
      %p148 = por %p146, %p147
      %p149 = scmp.ne.s32.totalorder %s138, %s139
      %p150 = scmp.eq.s32.totalorder %s19, 0
      %p151 = por %p149, %p150
      %p152 = scmp.ne.s32.totalorder %s138, %s139
      %p153 = scmp.eq.s32.totalorder %s20, 2
      %p154 = por %p152, %p153
      %p156 = scmp.ne.s32.totalorder %s139, %s155
      %p157 = scmp.eq.s32.totalorder %s20, 0
      %p158 = por %p156, %p157
      %s159 = ssub.s32 %s21, %s33
      %s160 = ssub.s32 %s22, %s29
      %s161 = sor.u32 %s159, %s160
      %p162 = scmp.eq.s32.totalorder %s161, 0
      %s164 = sadd.s32 %s163, 1
      %s165 = scalar_select %p162, %s163, %s164
      %p168 = pneg %p162
      %p169 = scmp.eq.s32.totalorder %s14, 2
      %p170 = por %p168, %p169
      %p171 = scmp.ne.s32.totalorder %s163, %s166
      %p172 = scmp.eq.s32.totalorder %s14, 0
      %p173 = por %p171, %p172
      %p174 = scmp.ne.s32.totalorder %s163, %s166
      %p175 = scmp.eq.s32.totalorder %s19, 2
      %p176 = por %p174, %p175
      %p177 = scmp.ne.s32.totalorder %s166, %s167
      %p178 = scmp.eq.s32.totalorder %s19, 0
      %p179 = por %p177, %p178
      %p180 = scmp.ne.s32.totalorder %s166, %s167
      %p181 = scmp.eq.s32.totalorder %s20, 2
      %p182 = por %p180, %p181
      %p184 = scmp.ne.s32.totalorder %s167, %s183
      %p185 = scmp.eq.s32.totalorder %s20, 0
      %p186 = por %p184, %p185
      %p187 = scmp.le.s32.totalorder 1, %s14
      %p188 = scmp.lt.s32.totalorder %s14, 4
      %p189 = pnand %p187, %p188
      %p190 = pneg %p189
      // Predicated region
      $region9: #{transformer_block.3} parent=5 // pred_check
        _
      $region10: #{transformer_block.3} parent=5 // pred_check_branch
        %192 = sbr.rel (%p189) target = $region12
      $region11: #{transformer_block.3} parent=5 // pred_region
        %s193 = ssub.s32 %s14, 1
        // Predicated region
        $region13: #{transformer_block.3} parent=11 // pred_check
          %p194 = pneg %p52
        $region14: #{transformer_block.3} parent=11 // pred_check_branch
          %196 = sbr.rel (%p194) target = $region16
        $region15: #{transformer_block.3} parent=11 // pred_region
          %s197 = smul.u32 2, %s23
          %s199 = ssub.s32 512, 512
          %200 = vsyncadd [#allocation4], %s199
          %s201 = smul.addr %s197, 2
          %s202 = smul.addr %s201, 128
          %s203 = scalar_lea.hbm %s0, %s202
          %s204 = sshll.u32 [#allocation3], 4
          %s205 = int_to_ptr.vmem [resolvable:$true] %s204
          %210 = dma.hbm_to_vmem [thread:$0]  %s203, 512, %s205, [#allocation4], 256, 256, 16
        $region16: #{transformer_block.3} parent=11 // pred_fallthru
          _
        // Predicated region
        $region17: #{transformer_block.3} parent=11 // pred_check
          %p211 = pneg %p73
        $region18: #{transformer_block.3} parent=11 // pred_check_branch
          %213 = sbr.rel (%p211) target = $region20
        $region19: #{transformer_block.3} parent=11 // pred_region
          %s215 = ssub.s32 32, 32
          %216 = vsyncadd [#allocation6], %s215
          %s218 = sshll.u32 [#allocation5], 4
          %s219 = int_to_ptr.vmem [resolvable:$true] %s218
          %221 = dma.hbm_to_vmem [thread:$0]  %s1, 32, %s219, [#allocation6]
        $region20: #{transformer_block.3} parent=11 // pred_fallthru
          _
        // Predicated region
        $region21: #{transformer_block.3} parent=11 // pred_check
          %p222 = pneg %p125
        $region22: #{transformer_block.3} parent=11 // pred_check_branch
          %224 = sbr.rel (%p222) target = $region24
        $region23: #{transformer_block.3} parent=11 // pred_region
          %s225 = smul.u32 2, %s23
          %s227 = ssub.s32 256, 256
          %228 = vsyncadd [#allocation6], %s227
          %s229 = smul.addr %s225, 128
          %s230 = scalar_lea.hbm %s3, %s229
          %s231 = sshll.u32 [#allocation8], 4
          %s232 = int_to_ptr.vmem [resolvable:$true] %s231
          %237 = dma.hbm_to_vmem [thread:$0]  %s230, 256, %s232, [#allocation6], 128, 128, 8
        $region24: #{transformer_block.3} parent=11 // pred_fallthru
          _
        // Predicated region
        $region25: #{transformer_block.3} parent=11 // pred_check
          %p238 = pneg %p151
        $region26: #{transformer_block.3} parent=11 // pred_check_branch
          %240 = sbr.rel (%p238) target = $region28
        $region27: #{transformer_block.3} parent=11 // pred_region
          %s241 = smul.u32 2, %s23
          %s243 = ssub.s32 256, 256
          %244 = vsyncadd [#allocation10], %s243
          %s245 = smul.addr %s241, 128
          %s246 = scalar_lea.hbm %s4, %s245
          %s247 = sshll.u32 [#allocation9], 4
          %s248 = int_to_ptr.vmem [resolvable:$true] %s247
          %253 = dma.hbm_to_vmem [thread:$0]  %s246, 256, %s248, [#allocation10], 128, 128, 8
        $region28: #{transformer_block.3} parent=11 // pred_fallthru
          _
      $region12: #{transformer_block.3} parent=5 // pred_fallthru
        _
      %p254 = scmp.lt.s32.totalorder %s14, 3
      // Predicated region
      $region29: #{transformer_block.3} parent=5 // pred_check
        %p255 = pneg %p254
      $region30: #{transformer_block.3} parent=5 // pred_check_branch
        %257 = sbr.rel (%p255) target = $region32
      $region31: #{transformer_block.3} parent=5 // pred_region
        // Predicated region
        $region33: #{transformer_block.3} parent=31 // pred_check
          %p258 = pneg %p93
        $region34: #{transformer_block.3} parent=31 // pred_check_branch
          %260 = sbr.rel (%p258) target = $region36
        $region35: #{transformer_block.3} parent=31 // pred_region
          %s261 = sand.u32 %s14, 1
          %s262 = scalar_lea.sflag [#allocation4], %s261
          %s263 = sand.u32 %s83, 1
          %s264 = smul.addr %s263, 256
          %s265 = scalar_lea.vmem [#allocation7], %s264
          %s266 = smul.u32 2, %s22
          %s268 = ssub.s32 4096, 4096
          %269 = vsyncadd %s262, %s268
          %s270 = smul.addr %s266, 64
          %s271 = scalar_lea.hbm %s2, %s270
          %s272 = sshll.u32 %s265, 4
          %s273 = int_to_ptr.vmem [resolvable:$true] %s272
          %278 = dma.hbm_to_vmem [thread:$0]  %s271, 4096, %s273, %s262, 384, 128, 8
        $region36: #{transformer_block.3} parent=31 // pred_fallthru
          _
      $region32: #{transformer_block.3} parent=5 // pred_fallthru
        _
      %p279 = scmp.le.s32.totalorder 1, %s14
      %p280 = scmp.lt.s32.totalorder %s14, 4
      %p281 = pnand %p279, %p280
      %p282 = pneg %p281
      // Predicated region
      $region37: #{transformer_block.3} parent=5 // pred_check
        _
      $region38: #{transformer_block.3} parent=5 // pred_check_branch
        %284 = sbr.rel (%p281) target = $region40
      $region39: #{transformer_block.3} parent=5 // pred_region
        %s285 = ssub.s32 %s14, 1
        // Predicated region
        $region41: #{transformer_block.3} parent=39 // pred_check
          %p286 = pneg %p52
        $region42: #{transformer_block.3} parent=39 // pred_check_branch
          %288 = sbr.rel (%p286) target = $region44
        $region43: #{transformer_block.3} parent=39 // pred_region
          %289 = dma.done [#allocation4], 512
        $region44: #{transformer_block.3} parent=39 // pred_fallthru
          _
        // Predicated region
        $region45: #{transformer_block.3} parent=39 // pred_check
          %p290 = pneg %p73
        $region46: #{transformer_block.3} parent=39 // pred_check_branch
          %292 = sbr.rel (%p290) target = $region48
        $region47: #{transformer_block.3} parent=39 // pred_region
          %293 = dma.done [#allocation6], 32
        $region48: #{transformer_block.3} parent=39 // pred_fallthru
          _
        %s294 = sand.u32 %s19, 1
        %s295 = scalar_lea.sflag [#allocation4], %s294
        %s296 = sand.u32 %s86, 1
        %s297 = smul.addr %s296, 256
        %s298 = scalar_lea.vmem [#allocation7], %s297
        // Predicated region
        $region49: #{transformer_block.3} parent=39 // pred_check
          %p299 = pneg %p99
        $region50: #{transformer_block.3} parent=39 // pred_check_branch
          %301 = sbr.rel (%p299) target = $region52
        $region51: #{transformer_block.3} parent=39 // pred_region
          %302 = dma.done %s295, 4096
        $region52: #{transformer_block.3} parent=39 // pred_fallthru
          _
        // Predicated region
        $region53: #{transformer_block.3} parent=39 // pred_check
          %p303 = pneg %p125
        $region54: #{transformer_block.3} parent=39 // pred_check_branch
          %305 = sbr.rel (%p303) target = $region56
        $region55: #{transformer_block.3} parent=39 // pred_region
          %306 = dma.done [#allocation6], 256
        $region56: #{transformer_block.3} parent=39 // pred_fallthru
          _
        // Predicated region
        $region57: #{transformer_block.3} parent=39 // pred_check
          %p307 = pneg %p151
        $region58: #{transformer_block.3} parent=39 // pred_check_branch
          %309 = sbr.rel (%p307) target = $region60
        $region59: #{transformer_block.3} parent=39 // pred_region
          %310 = dma.done [#allocation10], 256
        $region60: #{transformer_block.3} parent=39 // pred_fallthru
          _
        %p311 = pneg %p52
        %p312 = pneg %p49
        %p313 = pneg %p73
        %p314 = pneg %p70
        %s315 = sand.u32 %s19, 1
        %s316 = scalar_lea.sflag [#allocation4], %s315
        %s317 = sand.u32 %s86, 1
        %s318 = smul.addr %s317, 256
        %s319 = scalar_lea.vmem [#allocation7], %s318
        %p320 = pneg %p99
        %p321 = pneg %p96
        %p322 = pneg %p125
        %p323 = pneg %p122
        %p324 = pneg %p151
        %p325 = pneg %p148
        %p326 = pneg %p179
        %p327 = pneg %p176
        %s328 = sand.u32 %s166, 1
        %s329 = sand.u32 %s166, 1
        %s330 = smul.addr %s329, 16
        %s331 = scalar_lea.vmem [#allocation11], %s330
        %s332 = smul.u32 2, %s23
        %s333 = smul.u32 2, %s24
        %s334 = smul.u32 2, %s23
        %s335 = smul.u32 2, %s23
        %s336 = smul.u32 2, %s23
        %s337 = smul.u32 2, %s24
        %p338 = scmp.eq.s32.totalorder %s24, 0
        // Predicated region
        $region61: #{transformer_block.3} parent=39 // pred_check
          %p339 = pneg %p338
        $region62: #{transformer_block.3} parent=39 // pred_check_branch
          %341 = sbr.rel (%p339) target = $region64
        $region63: #{transformer_block.3} parent=39 // pred_region
          %v342 = vld [vmem:[#allocation3] sm:$0xff]
          %v343 = vld [vmem:[#allocation3 + $0x8] sm:$0xff]
          %v344 = vld [vmem:[#allocation3 + $0x10] sm:$0xff]
          %v345 = vld [vmem:[#allocation3 + $0x18] sm:$0xff]
          %v346 = vmul.f32 %v342, %v342
          %v347 = vmul.f32 %v343, %v343
          %v348 = vmul.f32 %v344, %v344
          %v349 = vmul.f32 %v345, %v345
          %v350 = vadd.f32 %v346, %v347
          %351 = vadd.xlane.f32.xlu0 %v350
          %v352 = vpop.xlane.xlu0 %351
          %v353 = vadd.f32 %v348, %v349
          %354 = vadd.xlane.f32.xlu0 %v353
          %v355 = vpop.xlane.xlu0 %354
          %v356 = vrcp.pop 256.0
          %v357 = vmul.f32 %v352, %v356
          %v358 = vmul.f32 %v355, %v356
          %v359 = vadd.f32 %v357, 1e-05
          %v360 = vadd.f32 %v358, 1e-05
          %v361 = vrsqrt.pop %v359
          %v362 = vrsqrt.pop %v360
          %v363 = vmul.f32 %v342, %v361
          %v364 = vmul.f32 %v343, %v361
          %v365 = vmul.f32 %v344, %v362
          %v366 = vmul.f32 %v345, %v362
          %v367 = vld [vmem:[#allocation5] sm:$0x3]
          %v369 = vlaneseq
          %v370 = vshrl.u32 %v369, 7
          %v371 = vsub.s32 0, %v370
          %v372 = vrot.slane %v367, %v371
          %v373 = vlaneseq
          %v374 = vshrl.u32 %v373, 7
          %v375 = vsub.s32 1, %v374
          %v376 = vrot.slane %v367, %v375
          %v379 = vmul.f32 %v363, %v372
          %v380 = vmul.f32 %v364, %v376
          %v381 = vmul.f32 %v365, %v372
          %v382 = vmul.f32 %v366, %v376
          %v383 = vpack.c.bf16 %v381, %v379
          %v384 = vpack.c.bf16 %v382, %v380
          %v387 = vunpack.c.l.b16 %v383
          %v388 = vunpack.c.l.b16 %v384
          %v389 = vunpack.c.h.b16 %v383
          %v390 = vunpack.c.h.b16 %v384
          %v391 = vpack.c.b16 %v388, %v387
          %v392 = vpack.c.b16 %v390, %v389
          %395 = vst [vmem:[#allocation2] sm:$0xff] %v391
          %396 = vst [vmem:[#allocation2 + $0x8] sm:$0xff] %v392
        $region64: #{transformer_block.3} parent=39 // pred_fallthru
          _
        %v397 = vld [vmem:[#allocation2] sm:$0xff]
        %v398 = vld [vmem:[#allocation2 + $0x8] sm:$0xff]
        %v399 = vld [vmem:[%s298] sm:$0xff]
        %v400 = vld [vmem:[%s298 + $0x8] sm:$0xff]
        %v401 = vld [vmem:[%s298 + $0x10] sm:$0xff]
        %v402 = vld [vmem:[%s298 + $0x18] sm:$0xff]
        %v403 = vld [vmem:[%s298 + $0x20] sm:$0xff]
        %v404 = vld [vmem:[%s298 + $0x28] sm:$0xff]
        %v405 = vld [vmem:[%s298 + $0x30] sm:$0xff]
        %v406 = vld [vmem:[%s298 + $0x38] sm:$0xff]
        %v407 = vld [vmem:[%s298 + $0x40] sm:$0xff]
        %v408 = vld [vmem:[%s298 + $0x48] sm:$0xff]
        %v409 = vld [vmem:[%s298 + $0x50] sm:$0xff]
        %v410 = vld [vmem:[%s298 + $0x58] sm:$0xff]
        %v411 = vld [vmem:[%s298 + $0x60] sm:$0xff]
        %v412 = vld [vmem:[%s298 + $0x68] sm:$0xff]
        %v413 = vld [vmem:[%s298 + $0x70] sm:$0xff]
        %v414 = vld [vmem:[%s298 + $0x78] sm:$0xff]
        %v415 = vld [vmem:[%s298 + $0x80] sm:$0xff]
        %v416 = vld [vmem:[%s298 + $0x88] sm:$0xff]
        %v417 = vld [vmem:[%s298 + $0x90] sm:$0xff]
        %v418 = vld [vmem:[%s298 + $0x98] sm:$0xff]
        %v419 = vld [vmem:[%s298 + $0xa0] sm:$0xff]
        %v420 = vld [vmem:[%s298 + $0xa8] sm:$0xff]
        %v421 = vld [vmem:[%s298 + $0xb0] sm:$0xff]
        %v422 = vld [vmem:[%s298 + $0xb8] sm:$0xff]
        %v423 = vld [vmem:[%s298 + $0xc0] sm:$0xff]
        %v424 = vld [vmem:[%s298 + $0xc8] sm:$0xff]
        %v425 = vld [vmem:[%s298 + $0xd0] sm:$0xff]
        %v426 = vld [vmem:[%s298 + $0xd8] sm:$0xff]
        %v427 = vld [vmem:[%s298 + $0xe0] sm:$0xff]
        %v428 = vld [vmem:[%s298 + $0xe8] sm:$0xff]
        %v429 = vld [vmem:[%s298 + $0xf0] sm:$0xff]
        %v430 = vld [vmem:[%s298 + $0xf8] sm:$0xff]
        %v433 = vunpack.c.l.b16 %v397
        %v434 = vunpack.c.h.b16 %v397
        %v435 = vunpack.c.l.b16 %v398
        %v436 = vunpack.c.h.b16 %v398
        %v437 = vpack.c.b16 %v435, %v433
        %v438 = vpack.c.b16 %v436, %v434
        %v473 = vunpack.c.l.b16 %v399
        %v474 = vunpack.c.h.b16 %v399
        %v475 = vunpack.c.l.b16 %v400
        %v476 = vunpack.c.h.b16 %v400
        %v477 = vunpack.c.l.b16 %v401
        %v478 = vunpack.c.h.b16 %v401
        %v479 = vunpack.c.l.b16 %v402
        %v480 = vunpack.c.h.b16 %v402
        %v481 = vunpack.c.l.b16 %v403
        %v482 = vunpack.c.h.b16 %v403
        %v483 = vunpack.c.l.b16 %v404
        %v484 = vunpack.c.h.b16 %v404
        %v485 = vunpack.c.l.b16 %v405
        %v486 = vunpack.c.h.b16 %v405
        %v487 = vunpack.c.l.b16 %v406
        %v488 = vunpack.c.h.b16 %v406
        %v489 = vunpack.c.l.b16 %v407
        %v490 = vunpack.c.h.b16 %v407
        %v491 = vunpack.c.l.b16 %v408
        %v492 = vunpack.c.h.b16 %v408
        %v493 = vunpack.c.l.b16 %v409
        %v494 = vunpack.c.h.b16 %v409
        %v495 = vunpack.c.l.b16 %v410
        %v496 = vunpack.c.h.b16 %v410
        %v497 = vunpack.c.l.b16 %v411
        %v498 = vunpack.c.h.b16 %v411
        %v499 = vunpack.c.l.b16 %v412
        %v500 = vunpack.c.h.b16 %v412
        %v501 = vunpack.c.l.b16 %v413
        %v502 = vunpack.c.h.b16 %v413
        %v503 = vunpack.c.l.b16 %v414
        %v504 = vunpack.c.h.b16 %v414
        %v505 = vunpack.c.l.b16 %v415
        %v506 = vunpack.c.h.b16 %v415
        %v507 = vunpack.c.l.b16 %v416
        %v508 = vunpack.c.h.b16 %v416
        %v509 = vunpack.c.l.b16 %v417
        %v510 = vunpack.c.h.b16 %v417
        %v511 = vunpack.c.l.b16 %v418
        %v512 = vunpack.c.h.b16 %v418
        %v513 = vunpack.c.l.b16 %v419
        %v514 = vunpack.c.h.b16 %v419
        %v515 = vunpack.c.l.b16 %v420
        %v516 = vunpack.c.h.b16 %v420
        %v517 = vunpack.c.l.b16 %v421
        %v518 = vunpack.c.h.b16 %v421
        %v519 = vunpack.c.l.b16 %v422
        %v520 = vunpack.c.h.b16 %v422
        %v521 = vunpack.c.l.b16 %v423
        %v522 = vunpack.c.h.b16 %v423
        %v523 = vunpack.c.l.b16 %v424
        %v524 = vunpack.c.h.b16 %v424
        %v525 = vunpack.c.l.b16 %v425
        %v526 = vunpack.c.h.b16 %v425
        %v527 = vunpack.c.l.b16 %v426
        %v528 = vunpack.c.h.b16 %v426
        %v529 = vunpack.c.l.b16 %v427
        %v530 = vunpack.c.h.b16 %v427
        %v531 = vunpack.c.l.b16 %v428
        %v532 = vunpack.c.h.b16 %v428
        %v533 = vunpack.c.l.b16 %v429
        %v534 = vunpack.c.h.b16 %v429
        %v535 = vunpack.c.l.b16 %v430
        %v536 = vunpack.c.h.b16 %v430
        %v537 = vpack.c.b16 %v475, %v473
        %v538 = vpack.c.b16 %v476, %v474
        %v539 = vpack.c.b16 %v479, %v477
        %v540 = vpack.c.b16 %v480, %v478
        %v541 = vpack.c.b16 %v483, %v481
        %v542 = vpack.c.b16 %v484, %v482
        %v543 = vpack.c.b16 %v487, %v485
        %v544 = vpack.c.b16 %v488, %v486
        %v545 = vpack.c.b16 %v491, %v489
        %v546 = vpack.c.b16 %v492, %v490
        %v547 = vpack.c.b16 %v495, %v493
        %v548 = vpack.c.b16 %v496, %v494
        %v549 = vpack.c.b16 %v499, %v497
        %v550 = vpack.c.b16 %v500, %v498
        %v551 = vpack.c.b16 %v503, %v501
        %v552 = vpack.c.b16 %v504, %v502
        %v553 = vpack.c.b16 %v507, %v505
        %v554 = vpack.c.b16 %v508, %v506
        %v555 = vpack.c.b16 %v511, %v509
        %v556 = vpack.c.b16 %v512, %v510
        %v557 = vpack.c.b16 %v515, %v513
        %v558 = vpack.c.b16 %v516, %v514
        %v559 = vpack.c.b16 %v519, %v517
        %v560 = vpack.c.b16 %v520, %v518
        %v561 = vpack.c.b16 %v523, %v521
        %v562 = vpack.c.b16 %v524, %v522
        %v563 = vpack.c.b16 %v527, %v525
        %v564 = vpack.c.b16 %v528, %v526
        %v565 = vpack.c.b16 %v531, %v529
        %v566 = vpack.c.b16 %v532, %v530
        %v567 = vpack.c.b16 %v535, %v533
        %v568 = vpack.c.b16 %v536, %v534
        %601 = vmatprep.subr.bf16.mxu0 %v552
        %602 = vmatpush1.bf16.msra.mxu0 %v551
        %603 = vmatprep.subr.bf16.mxu0 %v550
        %604 = vmatpush1.bf16.msra.mxu0 %v549
        %605 = vmatprep.subr.bf16.mxu0 %v548
        %606 = vmatpush1.bf16.msra.mxu0 %v547
        %607 = vmatprep.subr.bf16.mxu0 %v546
        %608 = vmatpush1.bf16.msra.mxu0 %v545
        %609 = vmatprep.subr.bf16.mxu0 %v544
        %610 = vmatpush1.bf16.msra.mxu0 %v543
        %611 = vmatprep.subr.bf16.mxu0 %v542
        %612 = vmatpush1.bf16.msra.mxu0 %v541
        %613 = vmatprep.subr.bf16.mxu0 %v540
        %614 = vmatpush1.bf16.msra.mxu0 %v539
        %615 = vmatprep.subr.bf16.mxu0 %v538
        %616 = vmatpush1.bf16.msra.mxu0 %v537
        %617 = vmatprep.subr.bf16.mxu0 %v568
        %618 = vmatpush2.bf16.msra.mxu0 %v567
        %619 = vmatprep.subr.bf16.mxu0 %v566
        %620 = vmatpush2.bf16.msra.mxu0 %v565
        %621 = vmatprep.subr.bf16.mxu0 %v564
        %622 = vmatpush2.bf16.msra.mxu0 %v563
        %623 = vmatprep.subr.bf16.mxu0 %v562
        %624 = vmatpush2.bf16.msra.mxu0 %v561
        %625 = vmatprep.subr.bf16.mxu0 %v560
        %626 = vmatpush2.bf16.msra.mxu0 %v559
        %627 = vmatprep.subr.bf16.mxu0 %v558
        %628 = vmatpush2.bf16.msra.mxu0 %v557
        %629 = vmatprep.subr.bf16.mxu0 %v556
        %630 = vmatpush2.bf16.msra.mxu0 %v555
        %631 = vmatprep.subr.bf16.mxu0 %v554
        %632 = vmatpush2.bf16.msra.mxu0 %v553
        %633 = vmatprep.mubr.bf16.mxu0 %v438
        %634 = vmatmul.mubr.bf16.gmra.mxu0 %v437
        %v635 = vpop.f32.mrf.mxu0
        %v636 = vadd.f32 0.0, %v635
        %v637 = vpop.f32.mrf.mxu0
        %v638 = vadd.f32 0.0, %v637
        %v639 = vpop.f32.mrf.mxu0
        %v640 = vadd.f32 0.0, %v639
        %v641 = vpop.f32.mrf.mxu0
        %v642 = vadd.f32 0.0, %v641
        %643 = vdwg.mxu0
        %s644 = smul.u32 %s24, 256
        %p645 = scmp.lt.s32.totalorder %s644, 512
        // Predicated region
        $region65: #{transformer_block.3} parent=39 // pred_check
          %p646 = pneg %p645
        $region66: #{transformer_block.3} parent=39 // pred_check_branch
          %648 = sbr.rel (%p646) target = $region68
        $region67: #{transformer_block.3} parent=39 // pred_region
          %v649 = vld [vmem:[#allocation8] sm:$0xff]
          %v650 = vld [vmem:[#allocation8 + $0x8] sm:$0xff]
          %v651 = vld [vmem:[#allocation9] sm:$0xff]
          %v652 = vld [vmem:[#allocation9 + $0x8] sm:$0xff]
          %v653 = vmul.f32 %v636, %v649
          %v654 = vmul.f32 %v640, %v650
          %657 = vrot.lane.b32.xlu0 %v651, 32
          %v658 = vpop.permute.xlu0 %657
          %659 = vrot.lane.b32.xlu0 %v652, 32
          %v660 = vpop.permute.xlu0 %659
          %v663 = vmul.f32 %v636, %v658
          %v664 = vmul.f32 %v640, %v660
          %667 = vrot.lane.b32.xlu0 %v663, 96
          %v668 = vpop.permute.xlu0 %667
          %669 = vrot.lane.b32.xlu0 %v664, 96
          %v670 = vpop.permute.xlu0 %669
          %v673 = vsub.f32 %v653, %v668
          %v674 = vsub.f32 %v654, %v670
          %v675 = vmul.f32 %v636, %v651
          %v676 = vmul.f32 %v640, %v652
          %679 = vrot.lane.b32.xlu0 %v649, 32
          %v680 = vpop.permute.xlu0 %679
          %681 = vrot.lane.b32.xlu0 %v650, 32
          %v682 = vpop.permute.xlu0 %681
          %v685 = vmul.f32 %v636, %v680
          %v686 = vmul.f32 %v640, %v682
          %689 = vrot.lane.b32.xlu0 %v685, 96
          %v690 = vpop.permute.xlu0 %689
          %691 = vrot.lane.b32.xlu0 %v686, 96
          %v692 = vpop.permute.xlu0 %691
          %v695 = vadd.f32 %v675, %v690
          %v696 = vadd.f32 %v676, %v692
          %697 = vrot.lane.b32.xlu0 %v649, 64
          %v698 = vpop.permute.xlu0 %697
          %699 = vrot.lane.b32.xlu0 %v650, 64
          %v700 = vpop.permute.xlu0 %699
          %v703 = vmul.f32 %v636, %v698
          %v704 = vmul.f32 %v640, %v700
          %705 = vrot.lane.b32.xlu0 %v651, 96
          %v706 = vpop.permute.xlu0 %705
          %707 = vrot.lane.b32.xlu0 %v652, 96
          %v708 = vpop.permute.xlu0 %707
          %v711 = vmul.f32 %v636, %v706
          %v712 = vmul.f32 %v640, %v708
          %715 = vrot.lane.b32.xlu0 %v711, 96
          %v716 = vpop.permute.xlu0 %715
          %717 = vrot.lane.b32.xlu0 %v712, 96
          %v718 = vpop.permute.xlu0 %717
          %v721 = vsub.f32 %v703, %v716
          %v722 = vsub.f32 %v704, %v718
          %723 = vrot.lane.b32.xlu0 %v651, 64
          %v724 = vpop.permute.xlu0 %723
          %725 = vrot.lane.b32.xlu0 %v652, 64
          %v726 = vpop.permute.xlu0 %725
          %v729 = vmul.f32 %v636, %v724
          %v730 = vmul.f32 %v640, %v726
          %731 = vrot.lane.b32.xlu0 %v649, 96
          %v732 = vpop.permute.xlu0 %731
          %733 = vrot.lane.b32.xlu0 %v650, 96
          %v734 = vpop.permute.xlu0 %733
          %v737 = vmul.f32 %v636, %v732
          %v738 = vmul.f32 %v640, %v734
          %741 = vrot.lane.b32.xlu0 %v737, 96
          %v742 = vpop.permute.xlu0 %741
          %743 = vrot.lane.b32.xlu0 %v738, 96
          %v744 = vpop.permute.xlu0 %743
          %v747 = vadd.f32 %v729, %v742
          %v748 = vadd.f32 %v730, %v744
          %v749 = vmul.f32 %v638, %v649
          %v750 = vmul.f32 %v642, %v650
          %v751 = vmul.f32 %v638, %v658
          %v752 = vmul.f32 %v642, %v660
          %755 = vrot.lane.b32.xlu0 %v751, 96
          %v756 = vpop.permute.xlu0 %755
          %757 = vrot.lane.b32.xlu0 %v752, 96
          %v758 = vpop.permute.xlu0 %757
          %v761 = vsub.f32 %v749, %v756
          %v762 = vsub.f32 %v750, %v758
          %v763 = vmul.f32 %v638, %v651
          %v764 = vmul.f32 %v642, %v652
          %v765 = vmul.f32 %v638, %v680
          %v766 = vmul.f32 %v642, %v682
          %769 = vrot.lane.b32.xlu0 %v765, 96
          %v770 = vpop.permute.xlu0 %769
          %771 = vrot.lane.b32.xlu0 %v766, 96
          %v772 = vpop.permute.xlu0 %771
          %v775 = vadd.f32 %v763, %v770
          %v776 = vadd.f32 %v764, %v772
          %v777 = vmul.f32 %v638, %v698
          %v778 = vmul.f32 %v642, %v700
          %v779 = vmul.f32 %v638, %v706
          %v780 = vmul.f32 %v642, %v708
          %783 = vrot.lane.b32.xlu0 %v779, 96
          %v784 = vpop.permute.xlu0 %783
          %785 = vrot.lane.b32.xlu0 %v780, 96
          %v786 = vpop.permute.xlu0 %785
          %v789 = vsub.f32 %v777, %v784
          %v790 = vsub.f32 %v778, %v786
          %v791 = vmul.f32 %v638, %v724
          %v792 = vmul.f32 %v642, %v726
          %v793 = vmul.f32 %v638, %v732
          %v794 = vmul.f32 %v642, %v734
          %797 = vrot.lane.b32.xlu0 %v793, 96
          %v798 = vpop.permute.xlu0 %797
          %799 = vrot.lane.b32.xlu0 %v794, 96
          %v800 = vpop.permute.xlu0 %799
          %v803 = vadd.f32 %v791, %v798
          %v804 = vadd.f32 %v792, %v800
          %807 = vrot.lane.b32.xlu0 %v695, 32
          %v808 = vpop.permute.xlu0 %807
          %809 = vrot.lane.b32.xlu0 %v696, 32
          %v810 = vpop.permute.xlu0 %809
          %815 = vrot.lane.b32.xlu0 %v747, 32
          %v816 = vpop.permute.xlu0 %815
          %817 = vrot.lane.b32.xlu0 %v748, 32
          %v818 = vpop.permute.xlu0 %817
          %823 = vrot.lane.b32.xlu0 %v775, 32
          %v824 = vpop.permute.xlu0 %823
          %825 = vrot.lane.b32.xlu0 %v776, 32
          %v826 = vpop.permute.xlu0 %825
          %831 = vrot.lane.b32.xlu0 %v803, 32
          %v832 = vpop.permute.xlu0 %831
          %833 = vrot.lane.b32.xlu0 %v804, 32
          %v834 = vpop.permute.xlu0 %833
          %vm837 = vcmask 261120
          %v838 = vsel %vm837, %v673, %v808
          %v839 = vsel %vm837, %v674, %v810
          %vm840 = vcmask 523264
          %v841 = vsel %vm840, %v838, %v721
          %v842 = vsel %vm840, %v839, %v722
          %vm843 = vcmask 785408
          %v844 = vsel %vm843, %v841, %v816
          %v845 = vsel %vm843, %v842, %v818
          %v846 = vsel %vm837, %v761, %v824
          %v847 = vsel %vm837, %v762, %v826
          %v848 = vsel %vm840, %v846, %v789
          %v849 = vsel %vm840, %v847, %v790
          %v850 = vsel %vm843, %v848, %v832
          %v851 = vsel %vm843, %v849, %v834
          %v852 = vpack.c.bf16 %v845, %v844
          %v853 = vpack.c.bf16 %v851, %v850
          %v856 = vunpack.c.l.b16 %v852
          %v857 = vunpack.c.l.b16 %v853
          %v858 = vunpack.c.h.b16 %v852
          %v859 = vunpack.c.h.b16 %v853
          %v860 = vpack.c.b16 %v857, %v856
          %v861 = vpack.c.b16 %v859, %v858
          %864 = vst [vmem:[%s331] sm:$0xff] %v860
          %865 = vst [vmem:[%s331 + $0x8] sm:$0xff] %v861
        $region68: #{transformer_block.3} parent=39 // pred_fallthru
          _
        %p866 = scmp.ge.s32.totalorder %s644, 512
        // Predicated region
        $region69: #{transformer_block.3} parent=39 // pred_check
          %p867 = pneg %p866
        $region70: #{transformer_block.3} parent=39 // pred_check_branch
          %869 = sbr.rel (%p867) target = $region72
        $region71: #{transformer_block.3} parent=39 // pred_region
          %v870 = vpack.c.bf16 %v640, %v636
          %v871 = vpack.c.bf16 %v642, %v638
          %v874 = vunpack.c.l.b16 %v870
          %v875 = vunpack.c.l.b16 %v871
          %v876 = vunpack.c.h.b16 %v870
          %v877 = vunpack.c.h.b16 %v871
          %v878 = vpack.c.b16 %v875, %v874
          %v879 = vpack.c.b16 %v877, %v876
          %882 = vst [vmem:[%s331] sm:$0xff] %v878
          %883 = vst [vmem:[%s331 + $0x8] sm:$0xff] %v879
        $region72: #{transformer_block.3} parent=39 // pred_fallthru
          _
        %s884 = sand.u32 %s166, 1
        %s885 = sand.u32 %s166, 1
        %s886 = smul.addr %s885, 16
        %s887 = scalar_lea.vmem [#allocation11], %s886
        // Predicated region
        $region73: #{transformer_block.3} parent=39 // pred_check
          %p888 = pneg %p176
        $region74: #{transformer_block.3} parent=39 // pred_check_branch
          %890 = sbr.rel (%p888) target = $region76
        $region75: #{transformer_block.3} parent=39 // pred_region
          %s891 = smul.u32 2, %s23
          %s892 = smul.u32 2, %s24
          %s893 = smul.addr %s891, 6
          %s894 = sadd.s32 %s892, %s893
          %s895 = smul.addr %s894, 4
          %s896 = scalar_lea.vmem %s5, %s895
          // Predicated region
          $region77: #{transformer_block.3} parent=75 // pred_check
            _
          $region78: #{transformer_block.3} parent=75 // pred_check_branch
            %898 = sbr.rel (0) target = $region80
          $region79: #{transformer_block.3} parent=75 // pred_region
            // Predicated region
            $region81: #{transformer_block.3} parent=79 // pred_check
              _
            $region82: #{transformer_block.3} parent=79 // pred_check_branch
              %900 = sbr.rel (0) target = $region84
            $region83: #{transformer_block.3} parent=79 // pred_region
              // Predicated region
              $region96: #{transformer_block.3} parent=83 // pred_check
                _
              $region97: #{transformer_block.3} parent=83 // pred_check_branch
                %918 = sbr.rel (0) target = $region99
              $region98: #{transformer_block.3} parent=83 // pred_region
                loop: start=0, step=1, limit=1
                $region100: #{transformer_block.3} parent=98 // loop_pre_header
                  _
                $region101: #{transformer_block.3} parent=98 // loop_header
                  %s920 = sphi 0, %s924
                  %p921 = scmp.ge.s32.totalorder %s920, 1
                  %s925 = sphi %s887, %s887
                  %s926 = sphi %s896, %s896
                $region102: #{transformer_block.3} parent=98 // loop_header_branch
                  %923 = sbr.rel (%p921) target = $region106
                $region103: #{transformer_block.3} parent=98 // loop_body
                  %v927 = vld [vmem:[%s925] sm:$0xff]
                  %928 = vst [vmem:[%s926] sm:$0xff] %v927
                  %v929 = vld [vmem:[%s925 + $0x8] sm:$0xff]
                  %930 = vst [vmem:[%s926 + $0x18] sm:$0xff] %v929
                $region104: #{transformer_block.3} parent=98 // loop_footer
                  %s924 = sadd.s32 1, %s920
                $region105: #{transformer_block.3} parent=98 // loop_footer_branch
                  %919 = sbr.rel target = $region101
                $region106: #{transformer_block.3} parent=98 // loop_exit
                  _
              $region99: #{transformer_block.3} parent=83 // pred_fallthru
                _
              // Predicated region
              $region107: #{transformer_block.3} parent=83 // pred_check
                _
              $region108: #{transformer_block.3} parent=83 // pred_check_branch
                %932 = sbr.rel target = $region110
              $region109: #{transformer_block.3} parent=83 // pred_region
                _
              $region110: #{transformer_block.3} parent=83 // pred_fallthru
                _
            $region84: #{transformer_block.3} parent=79 // pred_fallthru
              _
            // Predicated region
            $region85: #{transformer_block.3} parent=79 // pred_check
              _
            $region86: #{transformer_block.3} parent=79 // pred_check_branch
              %902 = sbr.rel target = $region88
            $region87: #{transformer_block.3} parent=79 // pred_region
              %s904 = ssub.s32 256, 1
              loop: start=0, step=1, limit=1
              $region89: #{transformer_block.3} parent=87 // loop_pre_header
                _
              $region90: #{transformer_block.3} parent=87 // loop_header
                %s906 = sphi 0, %s910
                %p907 = scmp.ge.s32.totalorder %s906, 1
                %s911 = sphi %s887, %s887
                %s912 = sphi %s896, %s896
              $region91: #{transformer_block.3} parent=87 // loop_header_branch
                %909 = sbr.rel (%p907) target = $region95
              $region92: #{transformer_block.3} parent=87 // loop_body
                %v913 = vld [vmem:[%s911] sm:%s904]
                %914 = vst [vmem:[%s912] sm:%s904] %v913
                %v915 = vld [vmem:[%s911 + $0x8] sm:%s904]
                %916 = vst [vmem:[%s912 + $0x18] sm:%s904] %v915
              $region93: #{transformer_block.3} parent=87 // loop_footer
                %s910 = sadd.s32 1, %s906
              $region94: #{transformer_block.3} parent=87 // loop_footer_branch
                %905 = sbr.rel target = $region90
              $region95: #{transformer_block.3} parent=87 // loop_exit
                _
            $region88: #{transformer_block.3} parent=79 // pred_fallthru
              _
          $region80: #{transformer_block.3} parent=75 // pred_fallthru
            _
          %933 = vnop
        $region76: #{transformer_block.3} parent=39 // pred_fallthru
          _
      $region40: #{transformer_block.3} parent=5 // pred_fallthru
        _
      %p934 = scmp.le.s32.totalorder 2, %s14
      // Predicated region
      $region111: #{transformer_block.3} parent=5 // pred_check
        %p935 = pneg %p934
      $region112: #{transformer_block.3} parent=5 // pred_check_branch
        %937 = sbr.rel (%p935) target = $region114
      $region113: #{transformer_block.3} parent=5 // pred_region
        %s938 = ssub.s32 %s14, 2
        // Predicated region
        $region115: #{transformer_block.3} parent=113 // pred_check
          %p939 = pneg %p182
        $region116: #{transformer_block.3} parent=113 // pred_check_branch
          %941 = sbr.rel (%p939) target = $region118
        $region117: #{transformer_block.3} parent=113 // pred_region
          %s942 = sand.u32 %s167, 1
          %s943 = sand.u32 %s167, 1
          %s944 = smul.addr %s943, 16
          %s945 = scalar_lea.vmem [#allocation11], %s944
        $region118: #{transformer_block.3} parent=113 // pred_fallthru
          _
      $region114: #{transformer_block.3} parent=5 // pred_fallthru
        _
    $region6: #{transformer_block.3} parent=1 // loop_footer
      %s18 = sadd.s32 1, %s14
    $region7: #{transformer_block.3} parent=1 // loop_footer_branch
      %13 = sbr.rel target = $region3
    $region8: #{transformer_block.3} parent=1 // loop_exit
      _
    %946 = vsyncpa [#allocation4], 1
    %s947 = scalar_lea.sflag [#allocation4], 1
    %948 = vsyncpa %s947, 1
    %949 = vsyncpa [#allocation6], 1
    %950 = vsyncpa [#allocation10], 1

// kernel: transformer_block.5
$region0: #{transformer_block.5}
  #allocation0 [shape = 'u32[]', space=smem, size = 0x4, offset = 0x4, fixed_abs, tag = 'smem constant byte address 0x4 - core index']
  #allocation1 [shape = 'u32[144,128]{1,0:T(1,128)}', space=vmem, size = 0x12000, scoped, tag = 'internal scratch']
  #allocation2 [shape = 'f32[16,256]{1,0:T(8,128)}', space=vmem, size = 0x4000, scoped, tag = 'scratch operand']
  #allocation3 [shape = 'bf16[16,256]{1,0:T(8,128)(2,1)}', space=vmem, size = 0x2000, scoped, tag = 'scratch operand']
  #allocation4 [shape = 'f32[16,256]{1,0:T(8,128)}', space=vmem, size = 0x4000, scoped, tag = 'scratch operand']
  %s0 = inlined_call_operand.vmem [shape: bf16[16,256], index: 0, kind: input, shape index: {}]
  %s1 = inlined_call_operand.vmem [shape: f32[16,256], index: 1, kind: input, shape index: {}]
  %s2 = inlined_call_operand.vmem [shape: bf16[256,256], index: 2, kind: input, shape index: {}]
  %s3 = inlined_call_operand.hbm [shape: f32[1,256], index: 3, kind: input, shape index: {}]
  %s4 = inlined_call_operand.vmem [shape: bf16[256,768], index: 4, kind: input, shape index: {}]
  %s5 = inlined_call_operand.hbm [shape: bf16[256,768], index: 5, kind: input, shape index: {}]
  %s6 = inlined_call_operand.hbm [shape: bf16[768,256], index: 6, kind: input, shape index: {}]
  %s7 = inlined_call_operand.hbm [shape: f32[16,256], index: 7, kind: output, shape index: {}]
  %s8 = sld [smem:[#allocation0]]
  $region119: #{transformer_block.5} parent=0
    _
  %s10 = ssub.s32 1, %s8
  %s11 = scalar_select 0, %s10, %s8
  $region1: #{transformer_block.5} parent=0
    #allocation5 [shape = 'u8[1024]{0}', space=vmem, size = 0x400, scoped, tag = 'input window, operand 3, single buffered']
    #allocation6 [shape = 's32[2]{0}', space=sflag, size = 0x8, scoped, tag = 'scoped memory for transformer_block.5']
    #allocation7 [shape = 's32[2]{0}', space=sflag, size = 0x8, scoped, tag = 'scoped memory for transformer_block.5']
    #allocation8 [shape = 'u8[262144]{0}', space=vmem, size = 0x40000, scoped, tag = 'input window, operand 4']
    #allocation9 [shape = 'u8[262144]{0}', space=vmem, size = 0x40000, scoped, tag = 'input window, operand 5']
    #allocation10 [shape = 's32[2]{0}', space=sflag, size = 0x8, scoped, tag = 'scoped memory for transformer_block.5']
    #allocation11 [shape = 'u8[262144]{0}', space=vmem, size = 0x40000, scoped, tag = 'input window, operand 6']
    #allocation12 [shape = 'u8[16384]{0}', space=vmem, size = 0x4000, scoped, tag = 'output window, operand 0, single buffered']
    %12 = vsyncpa [#allocation6], 0
    %13 = vsyncpa [#allocation10], 0
    %s14 = scalar_lea.sflag [#allocation10], 1
    %15 = vsyncpa %s14, 0
    %16 = vsyncpa [#allocation7], 0
    loop: start=0, step=1, limit=5
    $region2: #{transformer_block.5} parent=1 // loop_pre_header
      _
    $region3: #{transformer_block.5} parent=1 // loop_header
      %s18 = sphi 0, %s22
      %p19 = scmp.ge.s32.totalorder %s18, 5
      %s25 = sphi 0, %s37
      %s26 = sphi 0, %s33
      %s27 = sphi 0, %s25
      %s28 = sphi 0, %s26
      %s29 = sphi 0, %s27
      %s30 = sphi 0, %s28
      %s40 = sphi 0, %s42
      %s43 = sphi 0, %s40
      %s44 = sphi 0, %s43
      %s60 = sphi 0, %s44
      %s66 = sphi 0, %s68
      %s69 = sphi 0, %s66
      %s70 = sphi 0, %s69
      %s86 = sphi 0, %s70
      %s90 = sphi 0, %s90
      %s92 = sphi 0, %s90
      %s93 = sphi 0, %s92
      %s107 = sphi 0, %s93
      %s111 = sphi 0, %s111
      %s113 = sphi 0, %s111
      %s114 = sphi 0, %s113
      %s128 = sphi 0, %s114
      %s134 = sphi 0, %s136
      %s137 = sphi 0, %s134
      %s138 = sphi 0, %s137
      %s154 = sphi 0, %s138
      %s160 = sphi 0, %s162
      %s163 = sphi 0, %s160
      %s164 = sphi 0, %s163
      %s180 = sphi 0, %s164
      %s186 = sphi 0, %s188
      %s189 = sphi 0, %s186
      %s190 = sphi 0, %s189
      %s206 = sphi 0, %s190
      %s212 = sphi 0, %s214
      %s215 = sphi 0, %s212
      %s216 = sphi 0, %s215
      %s232 = sphi 0, %s216
    $region4: #{transformer_block.5} parent=1 // loop_header_branch
      %21 = sbr.rel (%p19) target = $region8
    $region5: #{transformer_block.5} parent=1 // loop_body
      %s23 = ssub.s32 %s18, 1
      %s24 = ssub.s32 %s18, 2
      %s31 = sadd.s32 1, %s26
      %p32 = scmp.ge.s32.totalorder %s31, 3
      %s33 = scalar_select %p32, 0, %s31
      %s34 = sadd.s32 1, %s25
      %s35 = scalar_select %p32, %s34, %s25
      %p36 = scmp.ge.s32.totalorder %s35, 1
      %s37 = scalar_select %p36, 0, %s35
      %s38 = ssub.s32 %s25, %s37
      %p39 = scmp.eq.s32.totalorder %s38, 0
      %s41 = sadd.s32 %s40, 1
      %s42 = scalar_select %p39, %s40, %s41
      %p45 = pneg %p39
      %p46 = scmp.eq.s32.totalorder %s18, 2
      %p47 = por %p45, %p46
      %p48 = scmp.ne.s32.totalorder %s40, %s43
      %p49 = scmp.eq.s32.totalorder %s18, 0
      %p50 = por %p48, %p49
      %p51 = scmp.ne.s32.totalorder %s40, %s43
      %p52 = scmp.eq.s32.totalorder %s23, 2
      %p53 = por %p51, %p52
      %p54 = scmp.ne.s32.totalorder %s43, %s44
      %p55 = scmp.eq.s32.totalorder %s23, 0
      %p56 = por %p54, %p55
      %p57 = scmp.ne.s32.totalorder %s43, %s44
      %p58 = scmp.eq.s32.totalorder %s24, 2
      %p59 = por %p57, %p58
      %p61 = scmp.ne.s32.totalorder %s44, %s60
      %p62 = scmp.eq.s32.totalorder %s24, 0
      %p63 = por %p61, %p62
      %s64 = ssub.s32 %s25, %s37
      %p65 = scmp.eq.s32.totalorder %s64, 0
      %s67 = sadd.s32 %s66, 1
      %s68 = scalar_select %p65, %s66, %s67
      %p71 = pneg %p65
      %p72 = scmp.eq.s32.totalorder %s18, 2
      %p73 = por %p71, %p72
      %p74 = scmp.ne.s32.totalorder %s66, %s69
      %p75 = scmp.eq.s32.totalorder %s18, 0
      %p76 = por %p74, %p75
      %p77 = scmp.ne.s32.totalorder %s66, %s69
      %p78 = scmp.eq.s32.totalorder %s23, 2
      %p79 = por %p77, %p78
      %p80 = scmp.ne.s32.totalorder %s69, %s70
      %p81 = scmp.eq.s32.totalorder %s23, 0
      %p82 = por %p80, %p81
      %p83 = scmp.ne.s32.totalorder %s69, %s70
      %p84 = scmp.eq.s32.totalorder %s24, 2
      %p85 = por %p83, %p84
      %p87 = scmp.ne.s32.totalorder %s70, %s86
      %p88 = scmp.eq.s32.totalorder %s24, 0
      %p89 = por %p87, %p88
      %s91 = sadd.s32 %s90, 1
      %p94 = scmp.eq.s32.totalorder %s18, 2
      %p95 = scmp.ne.s32.totalorder %s90, %s92
      %p96 = scmp.eq.s32.totalorder %s18, 0
      %p97 = por %p95, %p96
      %p98 = scmp.ne.s32.totalorder %s90, %s92
      %p99 = scmp.eq.s32.totalorder %s23, 2
      %p100 = por %p98, %p99
      %p101 = scmp.ne.s32.totalorder %s92, %s93
      %p102 = scmp.eq.s32.totalorder %s23, 0
      %p103 = por %p101, %p102
      %p104 = scmp.ne.s32.totalorder %s92, %s93
      %p105 = scmp.eq.s32.totalorder %s24, 2
      %p106 = por %p104, %p105
      %p108 = scmp.ne.s32.totalorder %s93, %s107
      %p109 = scmp.eq.s32.totalorder %s24, 0
      %p110 = por %p108, %p109
      %s112 = sadd.s32 %s111, 1
      %p115 = scmp.eq.s32.totalorder %s18, 2
      %p116 = scmp.ne.s32.totalorder %s111, %s113
      %p117 = scmp.eq.s32.totalorder %s18, 0
      %p118 = por %p116, %p117
      %p119 = scmp.ne.s32.totalorder %s111, %s113
      %p120 = scmp.eq.s32.totalorder %s23, 2
      %p121 = por %p119, %p120
      %p122 = scmp.ne.s32.totalorder %s113, %s114
      %p123 = scmp.eq.s32.totalorder %s23, 0
      %p124 = por %p122, %p123
      %p125 = scmp.ne.s32.totalorder %s113, %s114
      %p126 = scmp.eq.s32.totalorder %s24, 2
      %p127 = por %p125, %p126
      %p129 = scmp.ne.s32.totalorder %s114, %s128
      %p130 = scmp.eq.s32.totalorder %s24, 0
      %p131 = por %p129, %p130
      %s132 = ssub.s32 %s26, %s33
      %p133 = scmp.eq.s32.totalorder %s132, 0
      %s135 = sadd.s32 %s134, 1
      %s136 = scalar_select %p133, %s134, %s135
      %p139 = pneg %p133
      %p140 = scmp.eq.s32.totalorder %s18, 2
      %p141 = por %p139, %p140
      %p142 = scmp.ne.s32.totalorder %s134, %s137
      %p143 = scmp.eq.s32.totalorder %s18, 0
      %p144 = por %p142, %p143
      %p145 = scmp.ne.s32.totalorder %s134, %s137
      %p146 = scmp.eq.s32.totalorder %s23, 2
      %p147 = por %p145, %p146
      %p148 = scmp.ne.s32.totalorder %s137, %s138
      %p149 = scmp.eq.s32.totalorder %s23, 0
      %p150 = por %p148, %p149
      %p151 = scmp.ne.s32.totalorder %s137, %s138
      %p152 = scmp.eq.s32.totalorder %s24, 2
      %p153 = por %p151, %p152
      %p155 = scmp.ne.s32.totalorder %s138, %s154
      %p156 = scmp.eq.s32.totalorder %s24, 0
      %p157 = por %p155, %p156
      %s158 = ssub.s32 %s26, %s33
      %p159 = scmp.eq.s32.totalorder %s158, 0
      %s161 = sadd.s32 %s160, 1
      %s162 = scalar_select %p159, %s160, %s161
      %p165 = pneg %p159
      %p166 = scmp.eq.s32.totalorder %s18, 2
      %p167 = por %p165, %p166
      %p168 = scmp.ne.s32.totalorder %s160, %s163
      %p169 = scmp.eq.s32.totalorder %s18, 0
      %p170 = por %p168, %p169
      %p171 = scmp.ne.s32.totalorder %s160, %s163
      %p172 = scmp.eq.s32.totalorder %s23, 2
      %p173 = por %p171, %p172
      %p174 = scmp.ne.s32.totalorder %s163, %s164
      %p175 = scmp.eq.s32.totalorder %s23, 0
      %p176 = por %p174, %p175
      %p177 = scmp.ne.s32.totalorder %s163, %s164
      %p178 = scmp.eq.s32.totalorder %s24, 2
      %p179 = por %p177, %p178
      %p181 = scmp.ne.s32.totalorder %s164, %s180
      %p182 = scmp.eq.s32.totalorder %s24, 0
      %p183 = por %p181, %p182
      %s184 = ssub.s32 %s26, %s33
      %p185 = scmp.eq.s32.totalorder %s184, 0
      %s187 = sadd.s32 %s186, 1
      %s188 = scalar_select %p185, %s186, %s187
      %p191 = pneg %p185
      %p192 = scmp.eq.s32.totalorder %s18, 2
      %p193 = por %p191, %p192
      %p194 = scmp.ne.s32.totalorder %s186, %s189
      %p195 = scmp.eq.s32.totalorder %s18, 0
      %p196 = por %p194, %p195
      %p197 = scmp.ne.s32.totalorder %s186, %s189
      %p198 = scmp.eq.s32.totalorder %s23, 2
      %p199 = por %p197, %p198
      %p200 = scmp.ne.s32.totalorder %s189, %s190
      %p201 = scmp.eq.s32.totalorder %s23, 0
      %p202 = por %p200, %p201
      %p203 = scmp.ne.s32.totalorder %s189, %s190
      %p204 = scmp.eq.s32.totalorder %s24, 2
      %p205 = por %p203, %p204
      %p207 = scmp.ne.s32.totalorder %s190, %s206
      %p208 = scmp.eq.s32.totalorder %s24, 0
      %p209 = por %p207, %p208
      %s210 = ssub.s32 %s25, %s37
      %p211 = scmp.eq.s32.totalorder %s210, 0
      %s213 = sadd.s32 %s212, 1
      %s214 = scalar_select %p211, %s212, %s213
      %p217 = pneg %p211
      %p218 = scmp.eq.s32.totalorder %s18, 2
      %p219 = por %p217, %p218
      %p220 = scmp.ne.s32.totalorder %s212, %s215
      %p221 = scmp.eq.s32.totalorder %s18, 0
      %p222 = por %p220, %p221
      %p223 = scmp.ne.s32.totalorder %s212, %s215
      %p224 = scmp.eq.s32.totalorder %s23, 2
      %p225 = por %p223, %p224
      %p226 = scmp.ne.s32.totalorder %s215, %s216
      %p227 = scmp.eq.s32.totalorder %s23, 0
      %p228 = por %p226, %p227
      %p229 = scmp.ne.s32.totalorder %s215, %s216
      %p230 = scmp.eq.s32.totalorder %s24, 2
      %p231 = por %p229, %p230
      %p233 = scmp.ne.s32.totalorder %s216, %s232
      %p234 = scmp.eq.s32.totalorder %s24, 0
      %p235 = por %p233, %p234
      %p236 = scmp.le.s32.totalorder 1, %s18
      %p237 = scmp.lt.s32.totalorder %s18, 4
      %p238 = pnand %p236, %p237
      %p239 = pneg %p238
      // Predicated region
      $region9: #{transformer_block.5} parent=5 // pred_check
        _
      $region10: #{transformer_block.5} parent=5 // pred_check_branch
        %241 = sbr.rel (%p238) target = $region12
      $region11: #{transformer_block.5} parent=5 // pred_region
        %s242 = ssub.s32 %s18, 1
        // Predicated region
        $region13: #{transformer_block.5} parent=11 // pred_check
          %p243 = pneg %p56
        $region14: #{transformer_block.5} parent=11 // pred_check_branch
          %245 = sbr.rel (%p243) target = $region16
        $region15: #{transformer_block.5} parent=11 // pred_region
          %s246 = smul.u32 2, %s27
          %p247 = scmp.lt.s32.totalorder %s246, 1
          %s248 = scalar_select %p247, %s246, 1
          %s249 = smul.addr %s248, 2
          %s250 = smul.addr %s249, 4
          %s251 = scalar_lea.vmem %s0, %s250
          %s252 = smul.u32 2, %s27
        $region16: #{transformer_block.5} parent=11 // pred_fallthru
          _
        // Predicated region
        $region17: #{transformer_block.5} parent=11 // pred_check
          %p253 = pneg %p82
        $region18: #{transformer_block.5} parent=11 // pred_check_branch
          %255 = sbr.rel (%p253) target = $region20
        $region19: #{transformer_block.5} parent=11 // pred_region
          %s256 = smul.u32 2, %s27
          %p257 = scmp.lt.s32.totalorder %s256, 1
          %s258 = scalar_select %p257, %s256, 1
          %s259 = smul.addr %s258, 2
          %s260 = smul.addr %s259, 8
          %s261 = scalar_lea.vmem %s1, %s260
          %s262 = smul.u32 2, %s27
        $region20: #{transformer_block.5} parent=11 // pred_fallthru
          _
        // Predicated region
        $region21: #{transformer_block.5} parent=11 // pred_check
          %p263 = pneg %p103
        $region22: #{transformer_block.5} parent=11 // pred_check_branch
          %265 = sbr.rel (%p263) target = $region24
        $region23: #{transformer_block.5} parent=11 // pred_region
          _
        $region24: #{transformer_block.5} parent=11 // pred_fallthru
          _
        // Predicated region
        $region25: #{transformer_block.5} parent=11 // pred_check
          %p266 = pneg %p124
        $region26: #{transformer_block.5} parent=11 // pred_check_branch
          %268 = sbr.rel (%p266) target = $region28
        $region27: #{transformer_block.5} parent=11 // pred_region
          %s270 = ssub.s32 32, 32
          %271 = vsyncadd [#allocation6], %s270
          %s273 = sshll.u32 [#allocation5], 4
          %s274 = int_to_ptr.vmem [resolvable:$true] %s273
          %276 = dma.hbm_to_vmem [thread:$0]  %s3, 32, %s274, [#allocation6]
        $region28: #{transformer_block.5} parent=11 // pred_fallthru
          _
      $region12: #{transformer_block.5} parent=5 // pred_fallthru
        _
      %p277 = scmp.lt.s32.totalorder %s18, 3
      // Predicated region
      $region29: #{transformer_block.5} parent=5 // pred_check
        %p278 = pneg %p277
      $region30: #{transformer_block.5} parent=5 // pred_check_branch
        %280 = sbr.rel (%p278) target = $region32
      $region31: #{transformer_block.5} parent=5 // pred_region
        // Predicated region
        $region33: #{transformer_block.5} parent=31 // pred_check
          %p281 = pneg %p144
        $region34: #{transformer_block.5} parent=31 // pred_check_branch
          %283 = sbr.rel (%p281) target = $region36
        $region35: #{transformer_block.5} parent=31 // pred_region
          %s284 = sand.u32 %s134, 1
          %s285 = sand.u32 %s134, 1
          %s286 = smul.addr %s285, 256
          %s287 = scalar_lea.vmem [#allocation8], %s286
          %s288 = smul.u32 2, %s26
          %s289 = smul.addr %s288, 4
          %s290 = scalar_lea.vmem %s4, %s289
          // Predicated region
          $region37: #{transformer_block.5} parent=35 // pred_check
            _
          $region38: #{transformer_block.5} parent=35 // pred_check_branch
            %292 = sbr.rel (0) target = $region40
          $region39: #{transformer_block.5} parent=35 // pred_region
            // Predicated region
            $region41: #{transformer_block.5} parent=39 // pred_check
              _
            $region42: #{transformer_block.5} parent=39 // pred_check_branch
              %294 = sbr.rel (0) target = $region44
            $region43: #{transformer_block.5} parent=39 // pred_region
              // Predicated region
              $region56: #{transformer_block.5} parent=43 // pred_check
                _
              $region57: #{transformer_block.5} parent=43 // pred_check_branch
                %372 = sbr.rel (0) target = $region59
              $region58: #{transformer_block.5} parent=43 // pred_region
                loop: start=0, step=1, limit=1
                $region60: #{transformer_block.5} parent=58 // loop_pre_header
                  _
                $region61: #{transformer_block.5} parent=58 // loop_header
                  %s374 = sphi 0, %s378
                  %p375 = scmp.ge.s32.totalorder %s374, 1
                  %s379 = sphi %s290, %s290
                  %s380 = sphi %s287, %s287
                $region62: #{transformer_block.5} parent=58 // loop_header_branch
                  %377 = sbr.rel (%p375) target = $region66
                $region63: #{transformer_block.5} parent=58 // loop_body
                  %v381 = vld [vmem:[%s379] sm:$0xff]
                  %382 = vst [vmem:[%s380] sm:$0xff] %v381
                  %v383 = vld [vmem:[%s379 + $0x18] sm:$0xff]
                  %384 = vst [vmem:[%s380 + $0x8] sm:$0xff] %v383
                  %v385 = vld [vmem:[%s379 + $0x30] sm:$0xff]
                  %386 = vst [vmem:[%s380 + $0x10] sm:$0xff] %v385
                  %v387 = vld [vmem:[%s379 + $0x48] sm:$0xff]
                  %388 = vst [vmem:[%s380 + $0x18] sm:$0xff] %v387
                  %v389 = vld [vmem:[%s379 + $0x60] sm:$0xff]
                  %390 = vst [vmem:[%s380 + $0x20] sm:$0xff] %v389
                  %v391 = vld [vmem:[%s379 + $0x78] sm:$0xff]
                  %392 = vst [vmem:[%s380 + $0x28] sm:$0xff] %v391
                  %v393 = vld [vmem:[%s379 + $0x90] sm:$0xff]
                  %394 = vst [vmem:[%s380 + $0x30] sm:$0xff] %v393
                  %v395 = vld [vmem:[%s379 + $0xa8] sm:$0xff]
                  %396 = vst [vmem:[%s380 + $0x38] sm:$0xff] %v395
                  %v397 = vld [vmem:[%s379 + $0xc0] sm:$0xff]
                  %398 = vst [vmem:[%s380 + $0x40] sm:$0xff] %v397
                  %v399 = vld [vmem:[%s379 + $0xd8] sm:$0xff]
                  %400 = vst [vmem:[%s380 + $0x48] sm:$0xff] %v399
                  %v401 = vld [vmem:[%s379 + $0xf0] sm:$0xff]
                  %402 = vst [vmem:[%s380 + $0x50] sm:$0xff] %v401
                  %v403 = vld [vmem:[%s379 + $0x108] sm:$0xff]
                  %404 = vst [vmem:[%s380 + $0x58] sm:$0xff] %v403
                  %v405 = vld [vmem:[%s379 + $0x120] sm:$0xff]
                  %406 = vst [vmem:[%s380 + $0x60] sm:$0xff] %v405
                  %v407 = vld [vmem:[%s379 + $0x138] sm:$0xff]
                  %408 = vst [vmem:[%s380 + $0x68] sm:$0xff] %v407
                  %v409 = vld [vmem:[%s379 + $0x150] sm:$0xff]
                  %410 = vst [vmem:[%s380 + $0x70] sm:$0xff] %v409
                  %v411 = vld [vmem:[%s379 + $0x168] sm:$0xff]
                  %412 = vst [vmem:[%s380 + $0x78] sm:$0xff] %v411
                  %v413 = vld [vmem:[%s379 + $0x180] sm:$0xff]
                  %414 = vst [vmem:[%s380 + $0x80] sm:$0xff] %v413
                  %v415 = vld [vmem:[%s379 + $0x198] sm:$0xff]
                  %416 = vst [vmem:[%s380 + $0x88] sm:$0xff] %v415
                  %v417 = vld [vmem:[%s379 + $0x1b0] sm:$0xff]
                  %418 = vst [vmem:[%s380 + $0x90] sm:$0xff] %v417
                  %v419 = vld [vmem:[%s379 + $0x1c8] sm:$0xff]
                  %420 = vst [vmem:[%s380 + $0x98] sm:$0xff] %v419
                  %v421 = vld [vmem:[%s379 + $0x1e0] sm:$0xff]
                  %422 = vst [vmem:[%s380 + $0xa0] sm:$0xff] %v421
                  %v423 = vld [vmem:[%s379 + $0x1f8] sm:$0xff]
                  %424 = vst [vmem:[%s380 + $0xa8] sm:$0xff] %v423
                  %v425 = vld [vmem:[%s379 + $0x210] sm:$0xff]
                  %426 = vst [vmem:[%s380 + $0xb0] sm:$0xff] %v425
                  %v427 = vld [vmem:[%s379 + $0x228] sm:$0xff]
                  %428 = vst [vmem:[%s380 + $0xb8] sm:$0xff] %v427
                  %v429 = vld [vmem:[%s379 + $0x240] sm:$0xff]
                  %430 = vst [vmem:[%s380 + $0xc0] sm:$0xff] %v429
                  %v431 = vld [vmem:[%s379 + $0x258] sm:$0xff]
                  %432 = vst [vmem:[%s380 + $0xc8] sm:$0xff] %v431
                  %v433 = vld [vmem:[%s379 + $0x270] sm:$0xff]
                  %434 = vst [vmem:[%s380 + $0xd0] sm:$0xff] %v433
                  %v435 = vld [vmem:[%s379 + $0x288] sm:$0xff]
                  %436 = vst [vmem:[%s380 + $0xd8] sm:$0xff] %v435
                  %v437 = vld [vmem:[%s379 + $0x2a0] sm:$0xff]
                  %438 = vst [vmem:[%s380 + $0xe0] sm:$0xff] %v437
                  %v439 = vld [vmem:[%s379 + $0x2b8] sm:$0xff]
                  %440 = vst [vmem:[%s380 + $0xe8] sm:$0xff] %v439
                  %v441 = vld [vmem:[%s379 + $0x2d0] sm:$0xff]
                  %442 = vst [vmem:[%s380 + $0xf0] sm:$0xff] %v441
                  %v443 = vld [vmem:[%s379 + $0x2e8] sm:$0xff]
                  %444 = vst [vmem:[%s380 + $0xf8] sm:$0xff] %v443
                $region64: #{transformer_block.5} parent=58 // loop_footer
                  %s378 = sadd.s32 1, %s374
                $region65: #{transformer_block.5} parent=58 // loop_footer_branch
                  %373 = sbr.rel target = $region61
                $region66: #{transformer_block.5} parent=58 // loop_exit
                  _
              $region59: #{transformer_block.5} parent=43 // pred_fallthru
                _
              // Predicated region
              $region67: #{transformer_block.5} parent=43 // pred_check
                _
              $region68: #{transformer_block.5} parent=43 // pred_check_branch
                %446 = sbr.rel target = $region70
              $region69: #{transformer_block.5} parent=43 // pred_region
                _
              $region70: #{transformer_block.5} parent=43 // pred_fallthru
                _
            $region44: #{transformer_block.5} parent=39 // pred_fallthru
              _
            // Predicated region
            $region45: #{transformer_block.5} parent=39 // pred_check
              _
            $region46: #{transformer_block.5} parent=39 // pred_check_branch
              %296 = sbr.rel target = $region48
            $region47: #{transformer_block.5} parent=39 // pred_region
              %s298 = ssub.s32 256, 1
              loop: start=0, step=1, limit=1
              $region49: #{transformer_block.5} parent=47 // loop_pre_header
                _
              $region50: #{transformer_block.5} parent=47 // loop_header
                %s300 = sphi 0, %s304
                %p301 = scmp.ge.s32.totalorder %s300, 1
                %s305 = sphi %s290, %s290
                %s306 = sphi %s287, %s287
              $region51: #{transformer_block.5} parent=47 // loop_header_branch
                %303 = sbr.rel (%p301) target = $region55
              $region52: #{transformer_block.5} parent=47 // loop_body
                %v307 = vld [vmem:[%s305] sm:%s298]
                %308 = vst [vmem:[%s306] sm:%s298] %v307
                %v309 = vld [vmem:[%s305 + $0x18] sm:%s298]
                %310 = vst [vmem:[%s306 + $0x8] sm:%s298] %v309
                %v311 = vld [vmem:[%s305 + $0x30] sm:%s298]
                %312 = vst [vmem:[%s306 + $0x10] sm:%s298] %v311
                %v313 = vld [vmem:[%s305 + $0x48] sm:%s298]
                %314 = vst [vmem:[%s306 + $0x18] sm:%s298] %v313
                %v315 = vld [vmem:[%s305 + $0x60] sm:%s298]
                %316 = vst [vmem:[%s306 + $0x20] sm:%s298] %v315
                %v317 = vld [vmem:[%s305 + $0x78] sm:%s298]
                %318 = vst [vmem:[%s306 + $0x28] sm:%s298] %v317
                %v319 = vld [vmem:[%s305 + $0x90] sm:%s298]
                %320 = vst [vmem:[%s306 + $0x30] sm:%s298] %v319
                %v321 = vld [vmem:[%s305 + $0xa8] sm:%s298]
                %322 = vst [vmem:[%s306 + $0x38] sm:%s298] %v321
                %v323 = vld [vmem:[%s305 + $0xc0] sm:%s298]
                %324 = vst [vmem:[%s306 + $0x40] sm:%s298] %v323
                %v325 = vld [vmem:[%s305 + $0xd8] sm:%s298]
                %326 = vst [vmem:[%s306 + $0x48] sm:%s298] %v325
                %v327 = vld [vmem:[%s305 + $0xf0] sm:%s298]
                %328 = vst [vmem:[%s306 + $0x50] sm:%s298] %v327
                %v329 = vld [vmem:[%s305 + $0x108] sm:%s298]
                %330 = vst [vmem:[%s306 + $0x58] sm:%s298] %v329
                %v331 = vld [vmem:[%s305 + $0x120] sm:%s298]
                %332 = vst [vmem:[%s306 + $0x60] sm:%s298] %v331
                %v333 = vld [vmem:[%s305 + $0x138] sm:%s298]
                %334 = vst [vmem:[%s306 + $0x68] sm:%s298] %v333
                %v335 = vld [vmem:[%s305 + $0x150] sm:%s298]
                %336 = vst [vmem:[%s306 + $0x70] sm:%s298] %v335
                %v337 = vld [vmem:[%s305 + $0x168] sm:%s298]
                %338 = vst [vmem:[%s306 + $0x78] sm:%s298] %v337
                %v339 = vld [vmem:[%s305 + $0x180] sm:%s298]
                %340 = vst [vmem:[%s306 + $0x80] sm:%s298] %v339
                %v341 = vld [vmem:[%s305 + $0x198] sm:%s298]
                %342 = vst [vmem:[%s306 + $0x88] sm:%s298] %v341
                %v343 = vld [vmem:[%s305 + $0x1b0] sm:%s298]
                %344 = vst [vmem:[%s306 + $0x90] sm:%s298] %v343
                %v345 = vld [vmem:[%s305 + $0x1c8] sm:%s298]
                %346 = vst [vmem:[%s306 + $0x98] sm:%s298] %v345
                %v347 = vld [vmem:[%s305 + $0x1e0] sm:%s298]
                %348 = vst [vmem:[%s306 + $0xa0] sm:%s298] %v347
                %v349 = vld [vmem:[%s305 + $0x1f8] sm:%s298]
                %350 = vst [vmem:[%s306 + $0xa8] sm:%s298] %v349
                %v351 = vld [vmem:[%s305 + $0x210] sm:%s298]
                %352 = vst [vmem:[%s306 + $0xb0] sm:%s298] %v351
                %v353 = vld [vmem:[%s305 + $0x228] sm:%s298]
                %354 = vst [vmem:[%s306 + $0xb8] sm:%s298] %v353
                %v355 = vld [vmem:[%s305 + $0x240] sm:%s298]
                %356 = vst [vmem:[%s306 + $0xc0] sm:%s298] %v355
                %v357 = vld [vmem:[%s305 + $0x258] sm:%s298]
                %358 = vst [vmem:[%s306 + $0xc8] sm:%s298] %v357
                %v359 = vld [vmem:[%s305 + $0x270] sm:%s298]
                %360 = vst [vmem:[%s306 + $0xd0] sm:%s298] %v359
                %v361 = vld [vmem:[%s305 + $0x288] sm:%s298]
                %362 = vst [vmem:[%s306 + $0xd8] sm:%s298] %v361
                %v363 = vld [vmem:[%s305 + $0x2a0] sm:%s298]
                %364 = vst [vmem:[%s306 + $0xe0] sm:%s298] %v363
                %v365 = vld [vmem:[%s305 + $0x2b8] sm:%s298]
                %366 = vst [vmem:[%s306 + $0xe8] sm:%s298] %v365
                %v367 = vld [vmem:[%s305 + $0x2d0] sm:%s298]
                %368 = vst [vmem:[%s306 + $0xf0] sm:%s298] %v367
                %v369 = vld [vmem:[%s305 + $0x2e8] sm:%s298]
                %370 = vst [vmem:[%s306 + $0xf8] sm:%s298] %v369
              $region53: #{transformer_block.5} parent=47 // loop_footer
                %s304 = sadd.s32 1, %s300
              $region54: #{transformer_block.5} parent=47 // loop_footer_branch
                %299 = sbr.rel target = $region50
              $region55: #{transformer_block.5} parent=47 // loop_exit
                _
            $region48: #{transformer_block.5} parent=39 // pred_fallthru
              _
          $region40: #{transformer_block.5} parent=35 // pred_fallthru
            _
          %447 = vnop
        $region36: #{transformer_block.5} parent=31 // pred_fallthru
          _
        // Predicated region
        $region71: #{transformer_block.5} parent=31 // pred_check
          %p448 = pneg %p170
        $region72: #{transformer_block.5} parent=31 // pred_check_branch
          %450 = sbr.rel (%p448) target = $region74
        $region73: #{transformer_block.5} parent=31 // pred_region
          %s451 = sand.u32 %s18, 1
          %s452 = scalar_lea.sflag [#allocation10], %s451
          %s453 = sand.u32 %s160, 1
          %s454 = smul.addr %s453, 256
          %s455 = scalar_lea.vmem [#allocation9], %s454
          %s456 = smul.u32 2, %s26
          %s458 = ssub.s32 4096, 4096
          %459 = vsyncadd %s452, %s458
          %s460 = smul.addr %s456, 64
          %s461 = scalar_lea.hbm %s5, %s460
          %s462 = sshll.u32 %s455, 4
          %s463 = int_to_ptr.vmem [resolvable:$true] %s462
          %468 = dma.hbm_to_vmem [thread:$0]  %s461, 4096, %s463, %s452, 384, 128, 8
        $region74: #{transformer_block.5} parent=31 // pred_fallthru
          _
        // Predicated region
        $region75: #{transformer_block.5} parent=31 // pred_check
          %p469 = pneg %p196
        $region76: #{transformer_block.5} parent=31 // pred_check_branch
          %471 = sbr.rel (%p469) target = $region78
        $region77: #{transformer_block.5} parent=31 // pred_region
          %s472 = sand.u32 %s18, 1
          %s473 = scalar_lea.sflag [#allocation10], %s472
          %s474 = sand.u32 %s186, 1
          %s475 = smul.addr %s474, 256
          %s476 = scalar_lea.vmem [#allocation11], %s475
          %s477 = smul.u32 32, %s26
          %s479 = ssub.s32 4096, 4096
          %480 = vsyncadd %s473, %s479
          %s481 = smul.addr %s477, 2
          %s482 = smul.addr %s481, 64
          %s483 = scalar_lea.hbm %s6, %s482
          %s484 = sshll.u32 %s476, 4
          %s485 = int_to_ptr.vmem [resolvable:$true] %s484
          %490 = dma.hbm_to_vmem [thread:$0]  %s483, 4096, %s485, %s473, 128, 128, 8
        $region78: #{transformer_block.5} parent=31 // pred_fallthru
          _
      $region32: #{transformer_block.5} parent=5 // pred_fallthru
        _
      %p491 = scmp.le.s32.totalorder 1, %s18
      %p492 = scmp.lt.s32.totalorder %s18, 4
      %p493 = pnand %p491, %p492
      %p494 = pneg %p493
      // Predicated region
      $region79: #{transformer_block.5} parent=5 // pred_check
        _
      $region80: #{transformer_block.5} parent=5 // pred_check_branch
        %496 = sbr.rel (%p493) target = $region82
      $region81: #{transformer_block.5} parent=5 // pred_region
        %s497 = ssub.s32 %s18, 1
        // Predicated region
        $region83: #{transformer_block.5} parent=81 // pred_check
          %p498 = pneg %p124
        $region84: #{transformer_block.5} parent=81 // pred_check_branch
          %500 = sbr.rel (%p498) target = $region86
        $region85: #{transformer_block.5} parent=81 // pred_region
          %501 = dma.done [#allocation6], 32
        $region86: #{transformer_block.5} parent=81 // pred_fallthru
          _
        %s502 = sand.u32 %s137, 1
        %s503 = sand.u32 %s137, 1
        %s504 = smul.addr %s503, 256
        %s505 = scalar_lea.vmem [#allocation8], %s504
        // Predicated region
        $region87: #{transformer_block.5} parent=81 // pred_check
          %p506 = pneg %p150
        $region88: #{transformer_block.5} parent=81 // pred_check_branch
          %508 = sbr.rel (%p506) target = $region90
        $region89: #{transformer_block.5} parent=81 // pred_region
          _
        $region90: #{transformer_block.5} parent=81 // pred_fallthru
          _
        %s509 = sand.u32 %s23, 1
        %s510 = scalar_lea.sflag [#allocation10], %s509
        %s511 = sand.u32 %s163, 1
        %s512 = smul.addr %s511, 256
        %s513 = scalar_lea.vmem [#allocation9], %s512
        // Predicated region
        $region91: #{transformer_block.5} parent=81 // pred_check
          %p514 = pneg %p176
        $region92: #{transformer_block.5} parent=81 // pred_check_branch
          %516 = sbr.rel (%p514) target = $region94
        $region93: #{transformer_block.5} parent=81 // pred_region
          %517 = dma.done %s510, 4096
        $region94: #{transformer_block.5} parent=81 // pred_fallthru
          _
        %s518 = sand.u32 %s23, 1
        %s519 = scalar_lea.sflag [#allocation10], %s518
        %s520 = sand.u32 %s189, 1
        %s521 = smul.addr %s520, 256
        %s522 = scalar_lea.vmem [#allocation11], %s521
        // Predicated region
        $region95: #{transformer_block.5} parent=81 // pred_check
          %p523 = pneg %p202
        $region96: #{transformer_block.5} parent=81 // pred_check_branch
          %525 = sbr.rel (%p523) target = $region98
        $region97: #{transformer_block.5} parent=81 // pred_region
          %526 = dma.done %s519, 4096
        $region98: #{transformer_block.5} parent=81 // pred_fallthru
          _
        %s527 = smul.u32 2, %s27
        %p528 = scmp.lt.s32.totalorder %s527, 1
        %s529 = scalar_select %p528, %s527, 1
        %s530 = smul.addr %s529, 2
        %s531 = smul.addr %s530, 4
        %s532 = scalar_lea.vmem %s0, %s531
        %p533 = pneg %p56
        %p534 = pneg %p53
        %s535 = smul.u32 2, %s27
        %p536 = scmp.lt.s32.totalorder %s535, 1
        %s537 = scalar_select %p536, %s535, 1
        %s538 = smul.addr %s537, 2
        %s539 = smul.addr %s538, 8
        %s540 = scalar_lea.vmem %s1, %s539
        %p541 = pneg %p82
        %p542 = pneg %p79
        %p543 = pneg %p103
        %p544 = pneg %p100
        %p545 = pneg %p124
        %p546 = pneg %p121
        %s547 = sand.u32 %s137, 1
        %s548 = sand.u32 %s137, 1
        %s549 = smul.addr %s548, 256
        %s550 = scalar_lea.vmem [#allocation8], %s549
        %p551 = pneg %p150
        %p552 = pneg %p147
        %s553 = sand.u32 %s23, 1
        %s554 = scalar_lea.sflag [#allocation10], %s553
        %s555 = sand.u32 %s163, 1
        %s556 = smul.addr %s555, 256
        %s557 = scalar_lea.vmem [#allocation9], %s556
        %p558 = pneg %p176
        %p559 = pneg %p173
        %s560 = sand.u32 %s23, 1
        %s561 = scalar_lea.sflag [#allocation10], %s560
        %s562 = sand.u32 %s189, 1
        %s563 = smul.addr %s562, 256
        %s564 = scalar_lea.vmem [#allocation11], %s563
        %p565 = pneg %p202
        %p566 = pneg %p199
        %p567 = pneg %p228
        %p568 = pneg %p225
        %s569 = smul.u32 2, %s27
        %p570 = scmp.lt.s32.totalorder %s569, 1
        %s571 = scalar_select %p570, %s569, 1
        %s572 = smul.addr %s571, 2
        %s573 = smul.addr %s572, 4
        %s574 = scalar_lea.vmem %s0, %s573
        %s575 = smul.u32 2, %s27
        %s576 = smul.u32 2, %s27
        %p577 = scmp.lt.s32.totalorder %s576, 1
        %s578 = scalar_select %p577, %s576, 1
        %s579 = smul.addr %s578, 2
        %s580 = smul.addr %s579, 8
        %s581 = scalar_lea.vmem %s1, %s580
        %s582 = smul.u32 2, %s27
        %s583 = smul.u32 2, %s28
        %s584 = smul.u32 2, %s28
        %s585 = smul.u32 32, %s28
        %s586 = smul.u32 2, %s27
        %p587 = scmp.eq.s32.totalorder %s28, 0
        // Predicated region
        $region99: #{transformer_block.5} parent=81 // pred_check
          %p588 = pneg %p587
        $region100: #{transformer_block.5} parent=81 // pred_check_branch
          %590 = sbr.rel (%p588) target = $region102
        $region101: #{transformer_block.5} parent=81 // pred_region
          %v591 = vld [vmem:[%s581] sm:$0xff]
          %v592 = vld [vmem:[%s581 + $0x8] sm:$0xff]
          %v593 = vld [vmem:[%s581 + $0x10] sm:$0xff]
          %v594 = vld [vmem:[%s581 + $0x18] sm:$0xff]
          %v595 = vld [vmem:[%s574] sm:$0xff]
          %v596 = vld [vmem:[%s574 + $0x8] sm:$0xff]
          %v597 = vld [vmem:[%s2] sm:$0xff]
          %v598 = vld [vmem:[%s2 + $0x8] sm:$0xff]
          %v599 = vld [vmem:[%s2 + $0x10] sm:$0xff]
          %v600 = vld [vmem:[%s2 + $0x18] sm:$0xff]
          %v601 = vld [vmem:[%s2 + $0x20] sm:$0xff]
          %v602 = vld [vmem:[%s2 + $0x28] sm:$0xff]
          %v603 = vld [vmem:[%s2 + $0x30] sm:$0xff]
          %v604 = vld [vmem:[%s2 + $0x38] sm:$0xff]
          %v605 = vld [vmem:[%s2 + $0x40] sm:$0xff]
          %v606 = vld [vmem:[%s2 + $0x48] sm:$0xff]
          %v607 = vld [vmem:[%s2 + $0x50] sm:$0xff]
          %v608 = vld [vmem:[%s2 + $0x58] sm:$0xff]
          %v609 = vld [vmem:[%s2 + $0x60] sm:$0xff]
          %v610 = vld [vmem:[%s2 + $0x68] sm:$0xff]
          %v611 = vld [vmem:[%s2 + $0x70] sm:$0xff]
          %v612 = vld [vmem:[%s2 + $0x78] sm:$0xff]
          %v613 = vld [vmem:[%s2 + $0x80] sm:$0xff]
          %v614 = vld [vmem:[%s2 + $0x88] sm:$0xff]
          %v615 = vld [vmem:[%s2 + $0x90] sm:$0xff]
          %v616 = vld [vmem:[%s2 + $0x98] sm:$0xff]
          %v617 = vld [vmem:[%s2 + $0xa0] sm:$0xff]
          %v618 = vld [vmem:[%s2 + $0xa8] sm:$0xff]
          %v619 = vld [vmem:[%s2 + $0xb0] sm:$0xff]
          %v620 = vld [vmem:[%s2 + $0xb8] sm:$0xff]
          %v621 = vld [vmem:[%s2 + $0xc0] sm:$0xff]
          %v622 = vld [vmem:[%s2 + $0xc8] sm:$0xff]
          %v623 = vld [vmem:[%s2 + $0xd0] sm:$0xff]
          %v624 = vld [vmem:[%s2 + $0xd8] sm:$0xff]
          %v625 = vld [vmem:[%s2 + $0xe0] sm:$0xff]
          %v626 = vld [vmem:[%s2 + $0xe8] sm:$0xff]
          %v627 = vld [vmem:[%s2 + $0xf0] sm:$0xff]
          %v628 = vld [vmem:[%s2 + $0xf8] sm:$0xff]
          %v631 = vunpack.c.l.b16 %v595
          %v632 = vunpack.c.h.b16 %v595
          %v633 = vunpack.c.l.b16 %v596
          %v634 = vunpack.c.h.b16 %v596
          %v635 = vpack.c.b16 %v633, %v631
          %v636 = vpack.c.b16 %v634, %v632
          %v671 = vunpack.c.l.b16 %v597
          %v672 = vunpack.c.h.b16 %v597
          %v673 = vunpack.c.l.b16 %v598
          %v674 = vunpack.c.h.b16 %v598
          %v675 = vunpack.c.l.b16 %v599
          %v676 = vunpack.c.h.b16 %v599
          %v677 = vunpack.c.l.b16 %v600
          %v678 = vunpack.c.h.b16 %v600
          %v679 = vunpack.c.l.b16 %v601
          %v680 = vunpack.c.h.b16 %v601
          %v681 = vunpack.c.l.b16 %v602
          %v682 = vunpack.c.h.b16 %v602
          %v683 = vunpack.c.l.b16 %v603
          %v684 = vunpack.c.h.b16 %v603
          %v685 = vunpack.c.l.b16 %v604
          %v686 = vunpack.c.h.b16 %v604
          %v687 = vunpack.c.l.b16 %v605
          %v688 = vunpack.c.h.b16 %v605
          %v689 = vunpack.c.l.b16 %v606
          %v690 = vunpack.c.h.b16 %v606
          %v691 = vunpack.c.l.b16 %v607
          %v692 = vunpack.c.h.b16 %v607
          %v693 = vunpack.c.l.b16 %v608
          %v694 = vunpack.c.h.b16 %v608
          %v695 = vunpack.c.l.b16 %v609
          %v696 = vunpack.c.h.b16 %v609
          %v697 = vunpack.c.l.b16 %v610
          %v698 = vunpack.c.h.b16 %v610
          %v699 = vunpack.c.l.b16 %v611
          %v700 = vunpack.c.h.b16 %v611
          %v701 = vunpack.c.l.b16 %v612
          %v702 = vunpack.c.h.b16 %v612
          %v703 = vunpack.c.l.b16 %v613
          %v704 = vunpack.c.h.b16 %v613
          %v705 = vunpack.c.l.b16 %v614
          %v706 = vunpack.c.h.b16 %v614
          %v707 = vunpack.c.l.b16 %v615
          %v708 = vunpack.c.h.b16 %v615
          %v709 = vunpack.c.l.b16 %v616
          %v710 = vunpack.c.h.b16 %v616
          %v711 = vunpack.c.l.b16 %v617
          %v712 = vunpack.c.h.b16 %v617
          %v713 = vunpack.c.l.b16 %v618
          %v714 = vunpack.c.h.b16 %v618
          %v715 = vunpack.c.l.b16 %v619
          %v716 = vunpack.c.h.b16 %v619
          %v717 = vunpack.c.l.b16 %v620
          %v718 = vunpack.c.h.b16 %v620
          %v719 = vunpack.c.l.b16 %v621
          %v720 = vunpack.c.h.b16 %v621
          %v721 = vunpack.c.l.b16 %v622
          %v722 = vunpack.c.h.b16 %v622
          %v723 = vunpack.c.l.b16 %v623
          %v724 = vunpack.c.h.b16 %v623
          %v725 = vunpack.c.l.b16 %v624
          %v726 = vunpack.c.h.b16 %v624
          %v727 = vunpack.c.l.b16 %v625
          %v728 = vunpack.c.h.b16 %v625
          %v729 = vunpack.c.l.b16 %v626
          %v730 = vunpack.c.h.b16 %v626
          %v731 = vunpack.c.l.b16 %v627
          %v732 = vunpack.c.h.b16 %v627
          %v733 = vunpack.c.l.b16 %v628
          %v734 = vunpack.c.h.b16 %v628
          %v735 = vpack.c.b16 %v673, %v671
          %v736 = vpack.c.b16 %v674, %v672
          %v737 = vpack.c.b16 %v677, %v675
          %v738 = vpack.c.b16 %v678, %v676
          %v739 = vpack.c.b16 %v681, %v679
          %v740 = vpack.c.b16 %v682, %v680
          %v741 = vpack.c.b16 %v685, %v683
          %v742 = vpack.c.b16 %v686, %v684
          %v743 = vpack.c.b16 %v689, %v687
          %v744 = vpack.c.b16 %v690, %v688
          %v745 = vpack.c.b16 %v693, %v691
          %v746 = vpack.c.b16 %v694, %v692
          %v747 = vpack.c.b16 %v697, %v695
          %v748 = vpack.c.b16 %v698, %v696
          %v749 = vpack.c.b16 %v701, %v699
          %v750 = vpack.c.b16 %v702, %v700
          %v751 = vpack.c.b16 %v705, %v703
          %v752 = vpack.c.b16 %v706, %v704
          %v753 = vpack.c.b16 %v709, %v707
          %v754 = vpack.c.b16 %v710, %v708
          %v755 = vpack.c.b16 %v713, %v711
          %v756 = vpack.c.b16 %v714, %v712
          %v757 = vpack.c.b16 %v717, %v715
          %v758 = vpack.c.b16 %v718, %v716
          %v759 = vpack.c.b16 %v721, %v719
          %v760 = vpack.c.b16 %v722, %v720
          %v761 = vpack.c.b16 %v725, %v723
          %v762 = vpack.c.b16 %v726, %v724
          %v763 = vpack.c.b16 %v729, %v727
          %v764 = vpack.c.b16 %v730, %v728
          %v765 = vpack.c.b16 %v733, %v731
          %v766 = vpack.c.b16 %v734, %v732
          %799 = vmatprep.subr.bf16.mxu0 %v750
          %800 = vmatpush1.bf16.msra.mxu0 %v749
          %801 = vmatprep.subr.bf16.mxu0 %v748
          %802 = vmatpush1.bf16.msra.mxu0 %v747
          %803 = vmatprep.subr.bf16.mxu0 %v746
          %804 = vmatpush1.bf16.msra.mxu0 %v745
          %805 = vmatprep.subr.bf16.mxu0 %v744
          %806 = vmatpush1.bf16.msra.mxu0 %v743
          %807 = vmatprep.subr.bf16.mxu0 %v742
          %808 = vmatpush1.bf16.msra.mxu0 %v741
          %809 = vmatprep.subr.bf16.mxu0 %v740
          %810 = vmatpush1.bf16.msra.mxu0 %v739
          %811 = vmatprep.subr.bf16.mxu0 %v738
          %812 = vmatpush1.bf16.msra.mxu0 %v737
          %813 = vmatprep.subr.bf16.mxu0 %v736
          %814 = vmatpush1.bf16.msra.mxu0 %v735
          %815 = vmatprep.subr.bf16.mxu0 %v766
          %816 = vmatpush2.bf16.msra.mxu0 %v765
          %817 = vmatprep.subr.bf16.mxu0 %v764
          %818 = vmatpush2.bf16.msra.mxu0 %v763
          %819 = vmatprep.subr.bf16.mxu0 %v762
          %820 = vmatpush2.bf16.msra.mxu0 %v761
          %821 = vmatprep.subr.bf16.mxu0 %v760
          %822 = vmatpush2.bf16.msra.mxu0 %v759
          %823 = vmatprep.subr.bf16.mxu0 %v758
          %824 = vmatpush2.bf16.msra.mxu0 %v757
          %825 = vmatprep.subr.bf16.mxu0 %v756
          %826 = vmatpush2.bf16.msra.mxu0 %v755
          %827 = vmatprep.subr.bf16.mxu0 %v754
          %828 = vmatpush2.bf16.msra.mxu0 %v753
          %829 = vmatprep.subr.bf16.mxu0 %v752
          %830 = vmatpush2.bf16.msra.mxu0 %v751
          %831 = vmatprep.mubr.bf16.mxu0 %v636
          %832 = vmatmul.mubr.bf16.gmra.mxu0 %v635
          %v833 = vpop.f32.mrf.mxu0
          %v834 = vadd.f32 0.0, %v833
          %v835 = vpop.f32.mrf.mxu0
          %v836 = vadd.f32 0.0, %v835
          %v837 = vpop.f32.mrf.mxu0
          %v838 = vadd.f32 0.0, %v837
          %v839 = vpop.f32.mrf.mxu0
          %v840 = vadd.f32 0.0, %v839
          %841 = vdwg.mxu0
          %v842 = vadd.f32 %v591, %v834
          %v843 = vadd.f32 %v592, %v836
          %v844 = vadd.f32 %v593, %v838
          %v845 = vadd.f32 %v594, %v840
          %846 = vst [vmem:[#allocation2] sm:$0xff] %v842
          %847 = vst [vmem:[#allocation2 + $0x8] sm:$0xff] %v843
          %848 = vst [vmem:[#allocation2 + $0x10] sm:$0xff] %v844
          %849 = vst [vmem:[#allocation2 + $0x18] sm:$0xff] %v845
          %v850 = vmul.f32 %v842, %v842
          %v851 = vmul.f32 %v843, %v843
          %v852 = vmul.f32 %v844, %v844
          %v853 = vmul.f32 %v845, %v845
          %v854 = vadd.f32 %v850, %v851
          %855 = vadd.xlane.f32.xlu0 %v854
          %v856 = vpop.xlane.xlu0 %855
          %v857 = vadd.f32 %v852, %v853
          %858 = vadd.xlane.f32.xlu0 %v857
          %v859 = vpop.xlane.xlu0 %858
          %v860 = vrcp.pop 256.0
          %v861 = vmul.f32 %v856, %v860
          %v862 = vmul.f32 %v859, %v860
          %v863 = vadd.f32 %v861, 1e-05
          %v864 = vadd.f32 %v862, 1e-05
          %v865 = vrsqrt.pop %v863
          %v866 = vrsqrt.pop %v864
          %v867 = vmul.f32 %v842, %v865
          %v868 = vmul.f32 %v843, %v865
          %v869 = vmul.f32 %v844, %v866
          %v870 = vmul.f32 %v845, %v866
          %v871 = vld [vmem:[#allocation5] sm:$0x3]
          %v873 = vlaneseq
          %v874 = vshrl.u32 %v873, 7
          %v875 = vsub.s32 0, %v874
          %v876 = vrot.slane %v871, %v875
          %v877 = vlaneseq
          %v878 = vshrl.u32 %v877, 7
          %v879 = vsub.s32 1, %v878
          %v880 = vrot.slane %v871, %v879
          %v883 = vmul.f32 %v867, %v876
          %v884 = vmul.f32 %v868, %v880
          %v885 = vmul.f32 %v869, %v876
          %v886 = vmul.f32 %v870, %v880
          %v887 = vpack.c.bf16 %v885, %v883
          %v888 = vpack.c.bf16 %v886, %v884
          %v891 = vunpack.c.l.b16 %v887
          %v892 = vunpack.c.l.b16 %v888
          %v893 = vunpack.c.h.b16 %v887
          %v894 = vunpack.c.h.b16 %v888
          %v895 = vpack.c.b16 %v892, %v891
          %v896 = vpack.c.b16 %v894, %v893
          %899 = vst [vmem:[#allocation3] sm:$0xff] %v895
          %900 = vst [vmem:[#allocation3 + $0x8] sm:$0xff] %v896
          %901 = vst [vmem:[#allocation4] sm:$0xff] 0.0
          %902 = vst [vmem:[#allocation4 + $0x8] sm:$0xff] 0.0
          %903 = vst [vmem:[#allocation4 + $0x10] sm:$0xff] 0.0
          %904 = vst [vmem:[#allocation4 + $0x18] sm:$0xff] 0.0
        $region102: #{transformer_block.5} parent=81 // pred_fallthru
          _
        %v905 = vld [vmem:[#allocation3] sm:$0xff]
        %v906 = vld [vmem:[#allocation3 + $0x8] sm:$0xff]
        %v907 = vld [vmem:[%s505] sm:$0xff]
        %v908 = vld [vmem:[%s505 + $0x8] sm:$0xff]
        %v909 = vld [vmem:[%s505 + $0x10] sm:$0xff]
        %v910 = vld [vmem:[%s505 + $0x18] sm:$0xff]
        %v911 = vld [vmem:[%s505 + $0x20] sm:$0xff]
        %v912 = vld [vmem:[%s505 + $0x28] sm:$0xff]
        %v913 = vld [vmem:[%s505 + $0x30] sm:$0xff]
        %v914 = vld [vmem:[%s505 + $0x38] sm:$0xff]
        %v915 = vld [vmem:[%s505 + $0x40] sm:$0xff]
        %v916 = vld [vmem:[%s505 + $0x48] sm:$0xff]
        %v917 = vld [vmem:[%s505 + $0x50] sm:$0xff]
        %v918 = vld [vmem:[%s505 + $0x58] sm:$0xff]
        %v919 = vld [vmem:[%s505 + $0x60] sm:$0xff]
        %v920 = vld [vmem:[%s505 + $0x68] sm:$0xff]
        %v921 = vld [vmem:[%s505 + $0x70] sm:$0xff]
        %v922 = vld [vmem:[%s505 + $0x78] sm:$0xff]
        %v923 = vld [vmem:[%s505 + $0x80] sm:$0xff]
        %v924 = vld [vmem:[%s505 + $0x88] sm:$0xff]
        %v925 = vld [vmem:[%s505 + $0x90] sm:$0xff]
        %v926 = vld [vmem:[%s505 + $0x98] sm:$0xff]
        %v927 = vld [vmem:[%s505 + $0xa0] sm:$0xff]
        %v928 = vld [vmem:[%s505 + $0xa8] sm:$0xff]
        %v929 = vld [vmem:[%s505 + $0xb0] sm:$0xff]
        %v930 = vld [vmem:[%s505 + $0xb8] sm:$0xff]
        %v931 = vld [vmem:[%s505 + $0xc0] sm:$0xff]
        %v932 = vld [vmem:[%s505 + $0xc8] sm:$0xff]
        %v933 = vld [vmem:[%s505 + $0xd0] sm:$0xff]
        %v934 = vld [vmem:[%s505 + $0xd8] sm:$0xff]
        %v935 = vld [vmem:[%s505 + $0xe0] sm:$0xff]
        %v936 = vld [vmem:[%s505 + $0xe8] sm:$0xff]
        %v937 = vld [vmem:[%s505 + $0xf0] sm:$0xff]
        %v938 = vld [vmem:[%s505 + $0xf8] sm:$0xff]
        %v941 = vunpack.c.l.b16 %v905
        %v942 = vunpack.c.h.b16 %v905
        %v943 = vunpack.c.l.b16 %v906
        %v944 = vunpack.c.h.b16 %v906
        %v945 = vpack.c.b16 %v943, %v941
        %v946 = vpack.c.b16 %v944, %v942
        %v981 = vunpack.c.l.b16 %v907
        %v982 = vunpack.c.h.b16 %v907
        %v983 = vunpack.c.l.b16 %v908
        %v984 = vunpack.c.h.b16 %v908
        %v985 = vunpack.c.l.b16 %v909
        %v986 = vunpack.c.h.b16 %v909
        %v987 = vunpack.c.l.b16 %v910
        %v988 = vunpack.c.h.b16 %v910
        %v989 = vunpack.c.l.b16 %v911
        %v990 = vunpack.c.h.b16 %v911
        %v991 = vunpack.c.l.b16 %v912
        %v992 = vunpack.c.h.b16 %v912
        %v993 = vunpack.c.l.b16 %v913
        %v994 = vunpack.c.h.b16 %v913
        %v995 = vunpack.c.l.b16 %v914
        %v996 = vunpack.c.h.b16 %v914
        %v997 = vunpack.c.l.b16 %v915
        %v998 = vunpack.c.h.b16 %v915
        %v999 = vunpack.c.l.b16 %v916
        %v1000 = vunpack.c.h.b16 %v916
        %v1001 = vunpack.c.l.b16 %v917
        %v1002 = vunpack.c.h.b16 %v917
        %v1003 = vunpack.c.l.b16 %v918
        %v1004 = vunpack.c.h.b16 %v918
        %v1005 = vunpack.c.l.b16 %v919
        %v1006 = vunpack.c.h.b16 %v919
        %v1007 = vunpack.c.l.b16 %v920
        %v1008 = vunpack.c.h.b16 %v920
        %v1009 = vunpack.c.l.b16 %v921
        %v1010 = vunpack.c.h.b16 %v921
        %v1011 = vunpack.c.l.b16 %v922
        %v1012 = vunpack.c.h.b16 %v922
        %v1013 = vunpack.c.l.b16 %v923
        %v1014 = vunpack.c.h.b16 %v923
        %v1015 = vunpack.c.l.b16 %v924
        %v1016 = vunpack.c.h.b16 %v924
        %v1017 = vunpack.c.l.b16 %v925
        %v1018 = vunpack.c.h.b16 %v925
        %v1019 = vunpack.c.l.b16 %v926
        %v1020 = vunpack.c.h.b16 %v926
        %v1021 = vunpack.c.l.b16 %v927
        %v1022 = vunpack.c.h.b16 %v927
        %v1023 = vunpack.c.l.b16 %v928
        %v1024 = vunpack.c.h.b16 %v928
        %v1025 = vunpack.c.l.b16 %v929
        %v1026 = vunpack.c.h.b16 %v929
        %v1027 = vunpack.c.l.b16 %v930
        %v1028 = vunpack.c.h.b16 %v930
        %v1029 = vunpack.c.l.b16 %v931
        %v1030 = vunpack.c.h.b16 %v931
        %v1031 = vunpack.c.l.b16 %v932
        %v1032 = vunpack.c.h.b16 %v932
        %v1033 = vunpack.c.l.b16 %v933
        %v1034 = vunpack.c.h.b16 %v933
        %v1035 = vunpack.c.l.b16 %v934
        %v1036 = vunpack.c.h.b16 %v934
        %v1037 = vunpack.c.l.b16 %v935
        %v1038 = vunpack.c.h.b16 %v935
        %v1039 = vunpack.c.l.b16 %v936
        %v1040 = vunpack.c.h.b16 %v936
        %v1041 = vunpack.c.l.b16 %v937
        %v1042 = vunpack.c.h.b16 %v937
        %v1043 = vunpack.c.l.b16 %v938
        %v1044 = vunpack.c.h.b16 %v938
        %v1045 = vpack.c.b16 %v983, %v981
        %v1046 = vpack.c.b16 %v984, %v982
        %v1047 = vpack.c.b16 %v987, %v985
        %v1048 = vpack.c.b16 %v988, %v986
        %v1049 = vpack.c.b16 %v991, %v989
        %v1050 = vpack.c.b16 %v992, %v990
        %v1051 = vpack.c.b16 %v995, %v993
        %v1052 = vpack.c.b16 %v996, %v994
        %v1053 = vpack.c.b16 %v999, %v997
        %v1054 = vpack.c.b16 %v1000, %v998
        %v1055 = vpack.c.b16 %v1003, %v1001
        %v1056 = vpack.c.b16 %v1004, %v1002
        %v1057 = vpack.c.b16 %v1007, %v1005
        %v1058 = vpack.c.b16 %v1008, %v1006
        %v1059 = vpack.c.b16 %v1011, %v1009
        %v1060 = vpack.c.b16 %v1012, %v1010
        %v1061 = vpack.c.b16 %v1015, %v1013
        %v1062 = vpack.c.b16 %v1016, %v1014
        %v1063 = vpack.c.b16 %v1019, %v1017
        %v1064 = vpack.c.b16 %v1020, %v1018
        %v1065 = vpack.c.b16 %v1023, %v1021
        %v1066 = vpack.c.b16 %v1024, %v1022
        %v1067 = vpack.c.b16 %v1027, %v1025
        %v1068 = vpack.c.b16 %v1028, %v1026
        %v1069 = vpack.c.b16 %v1031, %v1029
        %v1070 = vpack.c.b16 %v1032, %v1030
        %v1071 = vpack.c.b16 %v1035, %v1033
        %v1072 = vpack.c.b16 %v1036, %v1034
        %v1073 = vpack.c.b16 %v1039, %v1037
        %v1074 = vpack.c.b16 %v1040, %v1038
        %v1075 = vpack.c.b16 %v1043, %v1041
        %v1076 = vpack.c.b16 %v1044, %v1042
        %1109 = vmatprep.subr.bf16.mxu0 %v1060
        %1110 = vmatpush1.bf16.msra.mxu0 %v1059
        %1111 = vmatprep.subr.bf16.mxu0 %v1058
        %1112 = vmatpush1.bf16.msra.mxu0 %v1057
        %1113 = vmatprep.subr.bf16.mxu0 %v1056
        %1114 = vmatpush1.bf16.msra.mxu0 %v1055
        %1115 = vmatprep.subr.bf16.mxu0 %v1054
        %1116 = vmatpush1.bf16.msra.mxu0 %v1053
        %1117 = vmatprep.subr.bf16.mxu0 %v1052
        %1118 = vmatpush1.bf16.msra.mxu0 %v1051
        %1119 = vmatprep.subr.bf16.mxu0 %v1050
        %1120 = vmatpush1.bf16.msra.mxu0 %v1049
        %1121 = vmatprep.subr.bf16.mxu0 %v1048
        %1122 = vmatpush1.bf16.msra.mxu0 %v1047
        %1123 = vmatprep.subr.bf16.mxu0 %v1046
        %1124 = vmatpush1.bf16.msra.mxu0 %v1045
        %1125 = vmatprep.subr.bf16.mxu0 %v1076
        %1126 = vmatpush2.bf16.msra.mxu0 %v1075
        %1127 = vmatprep.subr.bf16.mxu0 %v1074
        %1128 = vmatpush2.bf16.msra.mxu0 %v1073
        %1129 = vmatprep.subr.bf16.mxu0 %v1072
        %1130 = vmatpush2.bf16.msra.mxu0 %v1071
        %1131 = vmatprep.subr.bf16.mxu0 %v1070
        %1132 = vmatpush2.bf16.msra.mxu0 %v1069
        %1133 = vmatprep.subr.bf16.mxu0 %v1068
        %1134 = vmatpush2.bf16.msra.mxu0 %v1067
        %1135 = vmatprep.subr.bf16.mxu0 %v1066
        %1136 = vmatpush2.bf16.msra.mxu0 %v1065
        %1137 = vmatprep.subr.bf16.mxu0 %v1064
        %1138 = vmatpush2.bf16.msra.mxu0 %v1063
        %1139 = vmatprep.subr.bf16.mxu0 %v1062
        %1140 = vmatpush2.bf16.msra.mxu0 %v1061
        %1141 = vmatprep.mubr.bf16.mxu0 %v946
        %1142 = vmatmul.mubr.bf16.gmra.mxu0 %v945
        %v1143 = vpop.f32.mrf.mxu0
        %v1144 = vadd.f32 0.0, %v1143
        %v1145 = vpop.f32.mrf.mxu0
        %v1146 = vadd.f32 0.0, %v1145
        %v1147 = vpop.f32.mrf.mxu0
        %v1148 = vadd.f32 0.0, %v1147
        %v1149 = vpop.f32.mrf.mxu0
        %v1150 = vadd.f32 0.0, %v1149
        %1151 = vdwg.mxu0
        %v1152 = vld [vmem:[%s513] sm:$0xff]
        %v1153 = vld [vmem:[%s513 + $0x8] sm:$0xff]
        %v1154 = vld [vmem:[%s513 + $0x10] sm:$0xff]
        %v1155 = vld [vmem:[%s513 + $0x18] sm:$0xff]
        %v1156 = vld [vmem:[%s513 + $0x20] sm:$0xff]
        %v1157 = vld [vmem:[%s513 + $0x28] sm:$0xff]
        %v1158 = vld [vmem:[%s513 + $0x30] sm:$0xff]
        %v1159 = vld [vmem:[%s513 + $0x38] sm:$0xff]
        %v1160 = vld [vmem:[%s513 + $0x40] sm:$0xff]
        %v1161 = vld [vmem:[%s513 + $0x48] sm:$0xff]
        %v1162 = vld [vmem:[%s513 + $0x50] sm:$0xff]
        %v1163 = vld [vmem:[%s513 + $0x58] sm:$0xff]
        %v1164 = vld [vmem:[%s513 + $0x60] sm:$0xff]
        %v1165 = vld [vmem:[%s513 + $0x68] sm:$0xff]
        %v1166 = vld [vmem:[%s513 + $0x70] sm:$0xff]
        %v1167 = vld [vmem:[%s513 + $0x78] sm:$0xff]
        %v1168 = vld [vmem:[%s513 + $0x80] sm:$0xff]
        %v1169 = vld [vmem:[%s513 + $0x88] sm:$0xff]
        %v1170 = vld [vmem:[%s513 + $0x90] sm:$0xff]
        %v1171 = vld [vmem:[%s513 + $0x98] sm:$0xff]
        %v1172 = vld [vmem:[%s513 + $0xa0] sm:$0xff]
        %v1173 = vld [vmem:[%s513 + $0xa8] sm:$0xff]
        %v1174 = vld [vmem:[%s513 + $0xb0] sm:$0xff]
        %v1175 = vld [vmem:[%s513 + $0xb8] sm:$0xff]
        %v1176 = vld [vmem:[%s513 + $0xc0] sm:$0xff]
        %v1177 = vld [vmem:[%s513 + $0xc8] sm:$0xff]
        %v1178 = vld [vmem:[%s513 + $0xd0] sm:$0xff]
        %v1179 = vld [vmem:[%s513 + $0xd8] sm:$0xff]
        %v1180 = vld [vmem:[%s513 + $0xe0] sm:$0xff]
        %v1181 = vld [vmem:[%s513 + $0xe8] sm:$0xff]
        %v1182 = vld [vmem:[%s513 + $0xf0] sm:$0xff]
        %v1183 = vld [vmem:[%s513 + $0xf8] sm:$0xff]
        %v1216 = vunpack.c.l.b16 %v1152
        %v1217 = vunpack.c.h.b16 %v1152
        %v1218 = vunpack.c.l.b16 %v1153
        %v1219 = vunpack.c.h.b16 %v1153
        %v1220 = vunpack.c.l.b16 %v1154
        %v1221 = vunpack.c.h.b16 %v1154
        %v1222 = vunpack.c.l.b16 %v1155
        %v1223 = vunpack.c.h.b16 %v1155
        %v1224 = vunpack.c.l.b16 %v1156
        %v1225 = vunpack.c.h.b16 %v1156
        %v1226 = vunpack.c.l.b16 %v1157
        %v1227 = vunpack.c.h.b16 %v1157
        %v1228 = vunpack.c.l.b16 %v1158
        %v1229 = vunpack.c.h.b16 %v1158
        %v1230 = vunpack.c.l.b16 %v1159
        %v1231 = vunpack.c.h.b16 %v1159
        %v1232 = vunpack.c.l.b16 %v1160
        %v1233 = vunpack.c.h.b16 %v1160
        %v1234 = vunpack.c.l.b16 %v1161
        %v1235 = vunpack.c.h.b16 %v1161
        %v1236 = vunpack.c.l.b16 %v1162
        %v1237 = vunpack.c.h.b16 %v1162
        %v1238 = vunpack.c.l.b16 %v1163
        %v1239 = vunpack.c.h.b16 %v1163
        %v1240 = vunpack.c.l.b16 %v1164
        %v1241 = vunpack.c.h.b16 %v1164
        %v1242 = vunpack.c.l.b16 %v1165
        %v1243 = vunpack.c.h.b16 %v1165
        %v1244 = vunpack.c.l.b16 %v1166
        %v1245 = vunpack.c.h.b16 %v1166
        %v1246 = vunpack.c.l.b16 %v1167
        %v1247 = vunpack.c.h.b16 %v1167
        %v1248 = vunpack.c.l.b16 %v1168
        %v1249 = vunpack.c.h.b16 %v1168
        %v1250 = vunpack.c.l.b16 %v1169
        %v1251 = vunpack.c.h.b16 %v1169
        %v1252 = vunpack.c.l.b16 %v1170
        %v1253 = vunpack.c.h.b16 %v1170
        %v1254 = vunpack.c.l.b16 %v1171
        %v1255 = vunpack.c.h.b16 %v1171
        %v1256 = vunpack.c.l.b16 %v1172
        %v1257 = vunpack.c.h.b16 %v1172
        %v1258 = vunpack.c.l.b16 %v1173
        %v1259 = vunpack.c.h.b16 %v1173
        %v1260 = vunpack.c.l.b16 %v1174
        %v1261 = vunpack.c.h.b16 %v1174
        %v1262 = vunpack.c.l.b16 %v1175
        %v1263 = vunpack.c.h.b16 %v1175
        %v1264 = vunpack.c.l.b16 %v1176
        %v1265 = vunpack.c.h.b16 %v1176
        %v1266 = vunpack.c.l.b16 %v1177
        %v1267 = vunpack.c.h.b16 %v1177
        %v1268 = vunpack.c.l.b16 %v1178
        %v1269 = vunpack.c.h.b16 %v1178
        %v1270 = vunpack.c.l.b16 %v1179
        %v1271 = vunpack.c.h.b16 %v1179
        %v1272 = vunpack.c.l.b16 %v1180
        %v1273 = vunpack.c.h.b16 %v1180
        %v1274 = vunpack.c.l.b16 %v1181
        %v1275 = vunpack.c.h.b16 %v1181
        %v1276 = vunpack.c.l.b16 %v1182
        %v1277 = vunpack.c.h.b16 %v1182
        %v1278 = vunpack.c.l.b16 %v1183
        %v1279 = vunpack.c.h.b16 %v1183
        %v1280 = vpack.c.b16 %v1218, %v1216
        %v1281 = vpack.c.b16 %v1219, %v1217
        %v1282 = vpack.c.b16 %v1222, %v1220
        %v1283 = vpack.c.b16 %v1223, %v1221
        %v1284 = vpack.c.b16 %v1226, %v1224
        %v1285 = vpack.c.b16 %v1227, %v1225
        %v1286 = vpack.c.b16 %v1230, %v1228
        %v1287 = vpack.c.b16 %v1231, %v1229
        %v1288 = vpack.c.b16 %v1234, %v1232
        %v1289 = vpack.c.b16 %v1235, %v1233
        %v1290 = vpack.c.b16 %v1238, %v1236
        %v1291 = vpack.c.b16 %v1239, %v1237
        %v1292 = vpack.c.b16 %v1242, %v1240
        %v1293 = vpack.c.b16 %v1243, %v1241
        %v1294 = vpack.c.b16 %v1246, %v1244
        %v1295 = vpack.c.b16 %v1247, %v1245
        %v1296 = vpack.c.b16 %v1250, %v1248
        %v1297 = vpack.c.b16 %v1251, %v1249
        %v1298 = vpack.c.b16 %v1254, %v1252
        %v1299 = vpack.c.b16 %v1255, %v1253
        %v1300 = vpack.c.b16 %v1258, %v1256
        %v1301 = vpack.c.b16 %v1259, %v1257
        %v1302 = vpack.c.b16 %v1262, %v1260
        %v1303 = vpack.c.b16 %v1263, %v1261
        %v1304 = vpack.c.b16 %v1266, %v1264
        %v1305 = vpack.c.b16 %v1267, %v1265
        %v1306 = vpack.c.b16 %v1270, %v1268
        %v1307 = vpack.c.b16 %v1271, %v1269
        %v1308 = vpack.c.b16 %v1274, %v1272
        %v1309 = vpack.c.b16 %v1275, %v1273
        %v1310 = vpack.c.b16 %v1278, %v1276
        %v1311 = vpack.c.b16 %v1279, %v1277
        %1344 = vmatprep.subr.bf16.mxu0 %v1295
        %1345 = vmatpush1.bf16.msra.mxu0 %v1294
        %1346 = vmatprep.subr.bf16.mxu0 %v1293
        %1347 = vmatpush1.bf16.msra.mxu0 %v1292
        %1348 = vmatprep.subr.bf16.mxu0 %v1291
        %1349 = vmatpush1.bf16.msra.mxu0 %v1290
        %1350 = vmatprep.subr.bf16.mxu0 %v1289
        %1351 = vmatpush1.bf16.msra.mxu0 %v1288
        %1352 = vmatprep.subr.bf16.mxu0 %v1287
        %1353 = vmatpush1.bf16.msra.mxu0 %v1286
        %1354 = vmatprep.subr.bf16.mxu0 %v1285
        %1355 = vmatpush1.bf16.msra.mxu0 %v1284
        %1356 = vmatprep.subr.bf16.mxu0 %v1283
        %1357 = vmatpush1.bf16.msra.mxu0 %v1282
        %1358 = vmatprep.subr.bf16.mxu0 %v1281
        %1359 = vmatpush1.bf16.msra.mxu0 %v1280
        %1360 = vmatprep.subr.bf16.mxu0 %v1311
        %1361 = vmatpush2.bf16.msra.mxu0 %v1310
        %1362 = vmatprep.subr.bf16.mxu0 %v1309
        %1363 = vmatpush2.bf16.msra.mxu0 %v1308
        %1364 = vmatprep.subr.bf16.mxu0 %v1307
        %1365 = vmatpush2.bf16.msra.mxu0 %v1306
        %1366 = vmatprep.subr.bf16.mxu0 %v1305
        %1367 = vmatpush2.bf16.msra.mxu0 %v1304
        %1368 = vmatprep.subr.bf16.mxu0 %v1303
        %1369 = vmatpush2.bf16.msra.mxu0 %v1302
        %1370 = vmatprep.subr.bf16.mxu0 %v1301
        %1371 = vmatpush2.bf16.msra.mxu0 %v1300
        %1372 = vmatprep.subr.bf16.mxu0 %v1299
        %1373 = vmatpush2.bf16.msra.mxu0 %v1298
        %1374 = vmatprep.subr.bf16.mxu0 %v1297
        %1375 = vmatpush2.bf16.msra.mxu0 %v1296
        %1376 = vmatprep.mubr.bf16.mxu0 %v946
        %1377 = vmatmul.mubr.bf16.gmra.mxu0 %v945
        %v1378 = vpop.f32.mrf.mxu0
        %v1379 = vadd.f32 0.0, %v1378
        %v1380 = vpop.f32.mrf.mxu0
        %v1381 = vadd.f32 0.0, %v1380
        %v1382 = vpop.f32.mrf.mxu0
        %v1383 = vadd.f32 0.0, %v1382
        %v1384 = vpop.f32.mrf.mxu0
        %v1385 = vadd.f32 0.0, %v1384
        %1386 = vdwg.mxu0
        %v1387 = vxor.u32 %v1144, 2147483648
        %v1388 = vxor.u32 %v1146, 2147483648
        %v1389 = vxor.u32 %v1148, 2147483648
        %v1390 = vxor.u32 %v1150, 2147483648
        %v1391 = vmul.f32 %v1387, 1.442695
        %v1392 = vpow.pop %v1391
        %v1393 = vmul.f32 %v1388, 1.442695
        %v1394 = vpow.pop %v1393
        %v1395 = vmul.f32 %v1389, 1.442695
        %v1396 = vpow.pop %v1395
        %v1397 = vmul.f32 %v1390, 1.442695
        %v1398 = vpow.pop %v1397
        %v1399 = vadd.f32 %v1392, 1.0
        %v1400 = vadd.f32 %v1394, 1.0
        %v1401 = vadd.f32 %v1396, 1.0
        %v1402 = vadd.f32 %v1398, 1.0
        %v1403 = vrcp.pop %v1399
        %v1404 = vmul.f32 1.0, %v1403
        %v1405 = vrcp.pop %v1400
        %v1406 = vmul.f32 1.0, %v1405
        %v1407 = vrcp.pop %v1401
        %v1408 = vmul.f32 1.0, %v1407
        %v1409 = vrcp.pop %v1402
        %v1410 = vmul.f32 1.0, %v1409
        %v1411 = vmul.f32 %v1144, %v1404
        %v1412 = vmul.f32 %v1146, %v1406
        %v1413 = vmul.f32 %v1148, %v1408
        %v1414 = vmul.f32 %v1150, %v1410
        %v1415 = vmul.f32 %v1411, %v1379
        %v1416 = vmul.f32 %v1412, %v1381
        %v1417 = vmul.f32 %v1413, %v1383
        %v1418 = vmul.f32 %v1414, %v1385
        %v1419 = vld [vmem:[#allocation4] sm:$0xff]
        %v1420 = vld [vmem:[#allocation4 + $0x8] sm:$0xff]
        %v1421 = vld [vmem:[#allocation4 + $0x10] sm:$0xff]
        %v1422 = vld [vmem:[#allocation4 + $0x18] sm:$0xff]
        %v1423 = vpack.c.bf16 %v1417, %v1415
        %v1424 = vpack.c.bf16 %v1418, %v1416
        %v1425 = vld [vmem:[%s522] sm:$0xff]
        %v1426 = vld [vmem:[%s522 + $0x8] sm:$0xff]
        %v1427 = vld [vmem:[%s522 + $0x10] sm:$0xff]
        %v1428 = vld [vmem:[%s522 + $0x18] sm:$0xff]
        %v1429 = vld [vmem:[%s522 + $0x20] sm:$0xff]
        %v1430 = vld [vmem:[%s522 + $0x28] sm:$0xff]
        %v1431 = vld [vmem:[%s522 + $0x30] sm:$0xff]
        %v1432 = vld [vmem:[%s522 + $0x38] sm:$0xff]
        %v1433 = vld [vmem:[%s522 + $0x40] sm:$0xff]
        %v1434 = vld [vmem:[%s522 + $0x48] sm:$0xff]
        %v1435 = vld [vmem:[%s522 + $0x50] sm:$0xff]
        %v1436 = vld [vmem:[%s522 + $0x58] sm:$0xff]
        %v1437 = vld [vmem:[%s522 + $0x60] sm:$0xff]
        %v1438 = vld [vmem:[%s522 + $0x68] sm:$0xff]
        %v1439 = vld [vmem:[%s522 + $0x70] sm:$0xff]
        %v1440 = vld [vmem:[%s522 + $0x78] sm:$0xff]
        %v1441 = vld [vmem:[%s522 + $0x80] sm:$0xff]
        %v1442 = vld [vmem:[%s522 + $0x88] sm:$0xff]
        %v1443 = vld [vmem:[%s522 + $0x90] sm:$0xff]
        %v1444 = vld [vmem:[%s522 + $0x98] sm:$0xff]
        %v1445 = vld [vmem:[%s522 + $0xa0] sm:$0xff]
        %v1446 = vld [vmem:[%s522 + $0xa8] sm:$0xff]
        %v1447 = vld [vmem:[%s522 + $0xb0] sm:$0xff]
        %v1448 = vld [vmem:[%s522 + $0xb8] sm:$0xff]
        %v1449 = vld [vmem:[%s522 + $0xc0] sm:$0xff]
        %v1450 = vld [vmem:[%s522 + $0xc8] sm:$0xff]
        %v1451 = vld [vmem:[%s522 + $0xd0] sm:$0xff]
        %v1452 = vld [vmem:[%s522 + $0xd8] sm:$0xff]
        %v1453 = vld [vmem:[%s522 + $0xe0] sm:$0xff]
        %v1454 = vld [vmem:[%s522 + $0xe8] sm:$0xff]
        %v1455 = vld [vmem:[%s522 + $0xf0] sm:$0xff]
        %v1456 = vld [vmem:[%s522 + $0xf8] sm:$0xff]
        %v1489 = vunpack.c.l.b16 %v1425
        %v1490 = vunpack.c.h.b16 %v1425
        %v1491 = vunpack.c.l.b16 %v1426
        %v1492 = vunpack.c.h.b16 %v1426
        %v1493 = vunpack.c.l.b16 %v1427
        %v1494 = vunpack.c.h.b16 %v1427
        %v1495 = vunpack.c.l.b16 %v1428
        %v1496 = vunpack.c.h.b16 %v1428
        %v1497 = vunpack.c.l.b16 %v1429
        %v1498 = vunpack.c.h.b16 %v1429
        %v1499 = vunpack.c.l.b16 %v1430
        %v1500 = vunpack.c.h.b16 %v1430
        %v1501 = vunpack.c.l.b16 %v1431
        %v1502 = vunpack.c.h.b16 %v1431
        %v1503 = vunpack.c.l.b16 %v1432
        %v1504 = vunpack.c.h.b16 %v1432
        %v1505 = vunpack.c.l.b16 %v1433
        %v1506 = vunpack.c.h.b16 %v1433
        %v1507 = vunpack.c.l.b16 %v1434
        %v1508 = vunpack.c.h.b16 %v1434
        %v1509 = vunpack.c.l.b16 %v1435
        %v1510 = vunpack.c.h.b16 %v1435
        %v1511 = vunpack.c.l.b16 %v1436
        %v1512 = vunpack.c.h.b16 %v1436
        %v1513 = vunpack.c.l.b16 %v1437
        %v1514 = vunpack.c.h.b16 %v1437
        %v1515 = vunpack.c.l.b16 %v1438
        %v1516 = vunpack.c.h.b16 %v1438
        %v1517 = vunpack.c.l.b16 %v1439
        %v1518 = vunpack.c.h.b16 %v1439
        %v1519 = vunpack.c.l.b16 %v1440
        %v1520 = vunpack.c.h.b16 %v1440
        %v1521 = vunpack.c.l.b16 %v1441
        %v1522 = vunpack.c.h.b16 %v1441
        %v1523 = vunpack.c.l.b16 %v1442
        %v1524 = vunpack.c.h.b16 %v1442
        %v1525 = vunpack.c.l.b16 %v1443
        %v1526 = vunpack.c.h.b16 %v1443
        %v1527 = vunpack.c.l.b16 %v1444
        %v1528 = vunpack.c.h.b16 %v1444
        %v1529 = vunpack.c.l.b16 %v1445
        %v1530 = vunpack.c.h.b16 %v1445
        %v1531 = vunpack.c.l.b16 %v1446
        %v1532 = vunpack.c.h.b16 %v1446
        %v1533 = vunpack.c.l.b16 %v1447
        %v1534 = vunpack.c.h.b16 %v1447
        %v1535 = vunpack.c.l.b16 %v1448
        %v1536 = vunpack.c.h.b16 %v1448
        %v1537 = vunpack.c.l.b16 %v1449
        %v1538 = vunpack.c.h.b16 %v1449
        %v1539 = vunpack.c.l.b16 %v1450
        %v1540 = vunpack.c.h.b16 %v1450
        %v1541 = vunpack.c.l.b16 %v1451
        %v1542 = vunpack.c.h.b16 %v1451
        %v1543 = vunpack.c.l.b16 %v1452
        %v1544 = vunpack.c.h.b16 %v1452
        %v1545 = vunpack.c.l.b16 %v1453
        %v1546 = vunpack.c.h.b16 %v1453
        %v1547 = vunpack.c.l.b16 %v1454
        %v1548 = vunpack.c.h.b16 %v1454
        %v1549 = vunpack.c.l.b16 %v1455
        %v1550 = vunpack.c.h.b16 %v1455
        %v1551 = vunpack.c.l.b16 %v1456
        %v1552 = vunpack.c.h.b16 %v1456
        %v1553 = vpack.c.b16 %v1491, %v1489
        %v1554 = vpack.c.b16 %v1492, %v1490
        %v1555 = vpack.c.b16 %v1495, %v1493
        %v1556 = vpack.c.b16 %v1496, %v1494
        %v1557 = vpack.c.b16 %v1499, %v1497
        %v1558 = vpack.c.b16 %v1500, %v1498
        %v1559 = vpack.c.b16 %v1503, %v1501
        %v1560 = vpack.c.b16 %v1504, %v1502
        %v1561 = vpack.c.b16 %v1507, %v1505
        %v1562 = vpack.c.b16 %v1508, %v1506
        %v1563 = vpack.c.b16 %v1511, %v1509
        %v1564 = vpack.c.b16 %v1512, %v1510
        %v1565 = vpack.c.b16 %v1515, %v1513
        %v1566 = vpack.c.b16 %v1516, %v1514
        %v1567 = vpack.c.b16 %v1519, %v1517
        %v1568 = vpack.c.b16 %v1520, %v1518
        %v1569 = vpack.c.b16 %v1523, %v1521
        %v1570 = vpack.c.b16 %v1524, %v1522
        %v1571 = vpack.c.b16 %v1527, %v1525
        %v1572 = vpack.c.b16 %v1528, %v1526
        %v1573 = vpack.c.b16 %v1531, %v1529
        %v1574 = vpack.c.b16 %v1532, %v1530
        %v1575 = vpack.c.b16 %v1535, %v1533
        %v1576 = vpack.c.b16 %v1536, %v1534
        %v1577 = vpack.c.b16 %v1539, %v1537
        %v1578 = vpack.c.b16 %v1540, %v1538
        %v1579 = vpack.c.b16 %v1543, %v1541
        %v1580 = vpack.c.b16 %v1544, %v1542
        %v1581 = vpack.c.b16 %v1547, %v1545
        %v1582 = vpack.c.b16 %v1548, %v1546
        %v1583 = vpack.c.b16 %v1551, %v1549
        %v1584 = vpack.c.b16 %v1552, %v1550
        %1617 = vmatprep.subr.bf16.mxu0 %v1568
        %1618 = vmatpush1.bf16.msra.mxu0 %v1567
        %1619 = vmatprep.subr.bf16.mxu0 %v1566
        %1620 = vmatpush1.bf16.msra.mxu0 %v1565
        %1621 = vmatprep.subr.bf16.mxu0 %v1564
        %1622 = vmatpush1.bf16.msra.mxu0 %v1563
        %1623 = vmatprep.subr.bf16.mxu0 %v1562
        %1624 = vmatpush1.bf16.msra.mxu0 %v1561
        %1625 = vmatprep.subr.bf16.mxu0 %v1560
        %1626 = vmatpush1.bf16.msra.mxu0 %v1559
        %1627 = vmatprep.subr.bf16.mxu0 %v1558
        %1628 = vmatpush1.bf16.msra.mxu0 %v1557
        %1629 = vmatprep.subr.bf16.mxu0 %v1556
        %1630 = vmatpush1.bf16.msra.mxu0 %v1555
        %1631 = vmatprep.subr.bf16.mxu0 %v1554
        %1632 = vmatpush1.bf16.msra.mxu0 %v1553
        %1633 = vmatprep.subr.bf16.mxu0 %v1584
        %1634 = vmatpush2.bf16.msra.mxu0 %v1583
        %1635 = vmatprep.subr.bf16.mxu0 %v1582
        %1636 = vmatpush2.bf16.msra.mxu0 %v1581
        %1637 = vmatprep.subr.bf16.mxu0 %v1580
        %1638 = vmatpush2.bf16.msra.mxu0 %v1579
        %1639 = vmatprep.subr.bf16.mxu0 %v1578
        %1640 = vmatpush2.bf16.msra.mxu0 %v1577
        %1641 = vmatprep.subr.bf16.mxu0 %v1576
        %1642 = vmatpush2.bf16.msra.mxu0 %v1575
        %1643 = vmatprep.subr.bf16.mxu0 %v1574
        %1644 = vmatpush2.bf16.msra.mxu0 %v1573
        %1645 = vmatprep.subr.bf16.mxu0 %v1572
        %1646 = vmatpush2.bf16.msra.mxu0 %v1571
        %1647 = vmatprep.subr.bf16.mxu0 %v1570
        %1648 = vmatpush2.bf16.msra.mxu0 %v1569
        %1649 = vmatprep.mubr.bf16.mxu0 %v1424
        %1650 = vmatmul.mubr.bf16.gmra.mxu0 %v1423
        %v1651 = vpop.f32.mrf.mxu0
        %v1652 = vadd.f32 0.0, %v1651
        %v1653 = vpop.f32.mrf.mxu0
        %v1654 = vadd.f32 0.0, %v1653
        %v1655 = vpop.f32.mrf.mxu0
        %v1656 = vadd.f32 0.0, %v1655
        %v1657 = vpop.f32.mrf.mxu0
        %v1658 = vadd.f32 0.0, %v1657
        %1659 = vdwg.mxu0
        %v1660 = vadd.f32 %v1419, %v1652
        %v1661 = vadd.f32 %v1420, %v1654
        %v1662 = vadd.f32 %v1421, %v1656
        %v1663 = vadd.f32 %v1422, %v1658
        %1664 = vst [vmem:[#allocation4] sm:$0xff] %v1660
        %1665 = vst [vmem:[#allocation4 + $0x8] sm:$0xff] %v1661
        %1666 = vst [vmem:[#allocation4 + $0x10] sm:$0xff] %v1662
        %1667 = vst [vmem:[#allocation4 + $0x18] sm:$0xff] %v1663
        %p1668 = scmp.eq.s32.totalorder %s28, 2
        // Predicated region
        $region103: #{transformer_block.5} parent=81 // pred_check
          %p1669 = pneg %p1668
        $region104: #{transformer_block.5} parent=81 // pred_check_branch
          %1671 = sbr.rel (%p1669) target = $region106
        $region105: #{transformer_block.5} parent=81 // pred_region
          %v1672 = vld [vmem:[#allocation2] sm:$0xff]
          %v1673 = vld [vmem:[#allocation2 + $0x8] sm:$0xff]
          %v1674 = vld [vmem:[#allocation2 + $0x10] sm:$0xff]
          %v1675 = vld [vmem:[#allocation2 + $0x18] sm:$0xff]
          %v1676 = vld [vmem:[#allocation4] sm:$0xff]
          %v1677 = vld [vmem:[#allocation4 + $0x8] sm:$0xff]
          %v1678 = vld [vmem:[#allocation4 + $0x10] sm:$0xff]
          %v1679 = vld [vmem:[#allocation4 + $0x18] sm:$0xff]
          %v1680 = vadd.f32 %v1672, %v1676
          %v1681 = vadd.f32 %v1673, %v1677
          %v1682 = vadd.f32 %v1674, %v1678
          %v1683 = vadd.f32 %v1675, %v1679
          %1684 = vst [vmem:[#allocation12] sm:$0xff] %v1680
          %1685 = vst [vmem:[#allocation12 + $0x8] sm:$0xff] %v1681
          %1686 = vst [vmem:[#allocation12 + $0x10] sm:$0xff] %v1682
          %1687 = vst [vmem:[#allocation12 + $0x18] sm:$0xff] %v1683
        $region106: #{transformer_block.5} parent=81 // pred_fallthru
          _
        // Predicated region
        $region107: #{transformer_block.5} parent=81 // pred_check
          %p1688 = pneg %p225
        $region108: #{transformer_block.5} parent=81 // pred_check_branch
          %1690 = sbr.rel (%p1688) target = $region110
        $region109: #{transformer_block.5} parent=81 // pred_region
          %s1691 = smul.u32 2, %s27
          %s1693 = ssub.s32 512, 512
          %1694 = vsyncadd [#allocation7], %s1693
          %s1695 = smul.addr %s1691, 2
          %s1696 = smul.addr %s1695, 128
          %s1697 = scalar_lea.hbm %s7, %s1696
          %s1698 = sshll.u32 [#allocation12], 4
          %s1699 = int_to_ptr.vmem [resolvable:$true] %s1698
          %1704 = dma.vmem_to_hbm [thread:$0]  %s1699, 512, %s1697, [#allocation7], 256, 256, 16
        $region110: #{transformer_block.5} parent=81 // pred_fallthru
          _
        // Predicated region
        $region111: #{transformer_block.5} parent=81 // pred_check
          %p1705 = pneg %p225
        $region112: #{transformer_block.5} parent=81 // pred_check_branch
          %1707 = sbr.rel (%p1705) target = $region114
        $region113: #{transformer_block.5} parent=81 // pred_region
          %1708 = dma.done [#allocation7], 512
        $region114: #{transformer_block.5} parent=81 // pred_fallthru
          _
      $region82: #{transformer_block.5} parent=5 // pred_fallthru
        _
      %p1709 = scmp.le.s32.totalorder 2, %s18
      // Predicated region
      $region115: #{transformer_block.5} parent=5 // pred_check
        %p1710 = pneg %p1709
      $region116: #{transformer_block.5} parent=5 // pred_check_branch
        %1712 = sbr.rel (%p1710) target = $region118
      $region117: #{transformer_block.5} parent=5 // pred_region
        %s1713 = ssub.s32 %s18, 2
      $region118: #{transformer_block.5} parent=5 // pred_fallthru
        _
    $region6: #{transformer_block.5} parent=1 // loop_footer
      %s22 = sadd.s32 1, %s18
    $region7: #{transformer_block.5} parent=1 // loop_footer_branch
      %17 = sbr.rel target = $region3
    $region8: #{transformer_block.5} parent=1 // loop_exit
      _
    %1714 = vsyncpa [#allocation6], 1
    %s1715 = scalar_lea.sflag [#allocation6], 1
    %1716 = vsyncpa %s1715, 1
    %1717 = vsyncpa [#allocation10], 1
    %s1718 = scalar_lea.sflag [#allocation10], 1
    %1719 = vsyncpa %s1718, 1
    %1720 = vsyncpa [#allocation7], 1
    %s1721 = scalar_lea.sflag [#allocation7], 1
    %1722 = vsyncpa %s1721, 1

</llo_original>
